<compile_context>
chip_gen: v6e
topology: v6e:2x2x1
jax: 0.10.0
libtpu: 0.0.40
codegen_flags: <defaults>
</compile_context>

<pallas_src>
import functools
import math

import jax
import jax.numpy as jnp
from jax.experimental import pallas as pl
from jax.experimental.pallas import tpu as pltpu


# per-layer ref order: wqkv, bqkv, wo, bo, w1, b1, w2, b2, g1, be1, g2, be2
_LAYER_REFS = 12


def _layer_norm(x, gamma, beta, eps=1e-5):
    mu = jnp.mean(x, axis=-1, keepdims=True)
    d = x - mu
    var = jnp.mean(d * d, axis=-1, keepdims=True)
    return d * jax.lax.rsqrt(var + eps) * gamma + beta


# ------------------------- fused forward kernel -----------------------------

def _make_forward_kernel(n_layers, n_heads, d_head, bt, seq, compute_dtype,
                         eps=1e-5):
    """Builds the fused kernel body for a fixed configuration."""
    d_model = n_heads * d_head
    rows = bt * seq
    cdt = compute_dtype

    def kernel(src_ref, causal_ref, pad_ref, pe_ref,
               in_w_ref, out_w_ref, out_b_ref, *rest):
        layer_refs = rest[:n_layers * _LAYER_REFS]
        o_ref = rest[n_layers * _LAYER_REFS]

        # Additive attention mask shared by every layer / head: [Bt, S, S].
        mask = causal_ref[...][None, :, :] + pad_ref[...]      # (1,S,S)+(Bt,1,S)

        # InputLinear (sqrt(d_model) folded into weights) + PE (+ folded bias).
        x = src_ref[...].reshape(rows, -1)                      # [Bt*S, F]
        h = jnp.dot(x.astype(cdt), in_w_ref[...],
                    preferred_element_type=jnp.float32) + pe_ref[...]

        for li in range(n_layers):
            (wqkv, bqkv, wo, bo, w1, b1, w2, b2,
             g1, be1, g2, be2) = layer_refs[li * _LAYER_REFS:
                                            (li + 1) * _LAYER_REFS]

            # --- multi-head self attention (1/sqrt(d_head) folded into Wq) ---
            qkv = jnp.dot(h.astype(cdt), wqkv[...],
                          preferred_element_type=jnp.float32) + bqkv[...]
            qkv_c = qkv.astype(cdt)                             # [Bt*S, 3D]
            wo_full = wo[...]                                   # [D, D] bf16

            attn = None
            for hh in range(n_heads):                           # static unroll
                lo = hh * d_head
                qh = qkv_c[:, lo:lo + d_head].reshape(bt, seq, d_head)
                kh = qkv_c[:, d_model + lo:d_model + lo + d_head]
                kh = kh.reshape(bt, seq, d_head)
                vh = qkv_c[:, 2 * d_model + lo:2 * d_model + lo + d_head]
                vh = vh.reshape(bt, seq, d_head)

                s = jnp.einsum('bqd,bkd->bqk', qh, kh,
                               preferred_element_type=jnp.float32) + mask
                s = s - jnp.max(s, axis=-1, keepdims=True)
                p = jnp.exp(s)
                p = p * pl.reciprocal(jnp.sum(p, axis=-1, keepdims=True),
                                      approx=True)
                ctx = jnp.einsum('bqk,bkd->bqd', p.astype(cdt), vh,
                                 preferred_element_type=jnp.float32)
                # out_proj applied per head (no concatenate): sum_h ctx_h @ Wo_h
                part = jnp.dot(ctx.reshape(rows, d_head).astype(cdt),
                               wo_full[lo:lo + d_head, :],
                               preferred_element_type=jnp.float32)
                attn = part if attn is None else attn + part
            attn = attn + bo[...]
            h = _layer_norm(h + attn, g1[...], be1[...], eps)    # norm1(x+sa)

            # --- feed forward (w1 -> relu -> w2) ---
            ff = jnp.dot(h.astype(cdt), w1[...],
                         preferred_element_type=jnp.float32) + b1[...]
            ff = jnp.maximum(ff, 0.0)
            ff = jnp.dot(ff.astype(cdt), w2[...],
                         preferred_element_type=jnp.float32) + b2[...]
            h = _layer_norm(h + ff, g2[...], be2[...], eps)      # norm2(x+ff)

        # OutputLinear (lane-padded to 128 cols) + sigmoid.
        y = jnp.dot(h.astype(cdt), out_w_ref[...],
                    preferred_element_type=jnp.float32) + out_b_ref[...]
        o_ref[...] = jax.nn.sigmoid(y).reshape(bt, seq, -1)

    return kernel


# ------------------------------ model wrapper --------------------------------

def time_series_transformer(src, src_mask, padding_mask, kp, *,
                            n_heads, batch_tile):
    """src: [B,S,F] f32; src_mask: [S,S] additive f32; padding_mask: [B,S] bool.
    kp: kernel-ready params from prepare_params()."""
    B, S, F = src.shape
    D = kp["in_w"].shape[1]
    Dh = D // n_heads
    n_layers = len(kp["layers"])
    Fp = kp["out_w"].shape[1]
    Bt = batch_tile
    assert B % Bt == 0, "batch must be divisible by batch_tile"

    # Per-batch key-padding row (additive), broadcast against the causal mask
    # inside the kernel -- no [B,S,S] mask ever materialized in HBM.
    pad_add = jnp.where(padding_mask, jnp.float32(-1e9),
                        jnp.float32(0.0))[:, None, :]            # [B,1,S]
    causal = src_mask.astype(jnp.float32)                        # [S,S]

    flat_layer_params = [t for lp in kp["layers"] for t in lp]
    operands = [src, causal, pad_add, kp["pe"], kp["in_w"],
                kp["out_w"], kp["out_b"], *flat_layer_params]

    in_specs = [
        pl.BlockSpec((Bt, S, F), lambda g: (g, 0, 0)),   # src: Bt-element slab
        pl.BlockSpec((S, S), lambda g: (0, 0)),          # causal mask: once
        pl.BlockSpec((Bt, 1, S), lambda g: (g, 0, 0)),   # padding rows
    ] + [
        pl.BlockSpec(t.shape, lambda g: (0, 0))          # PE + all weights: once
        for t in operands[3:]
    ]

    kernel = _make_forward_kernel(n_layers, n_heads, Dh, Bt, S,
                                  kp["in_w"].dtype)
    out = pl.pallas_call(
        kernel,
        out_shape=jax.ShapeDtypeStruct((B, S, Fp), jnp.float32),
        grid=(B // Bt,),
        in_specs=in_specs,
        out_specs=pl.BlockSpec((Bt, S, Fp), lambda g: (g, 0, 0)),
        compiler_params=pltpu.CompilerParams(
            dimension_semantics=("parallel",),
            vmem_limit_bytes=32 * 1024 * 1024),
    )(*operands)
    return out[:, :, :F]                                  # drop lane padding


# ------------------------------ params & prep --------------------------------

def positional_encoding(S, D):
    position = jnp.arange(S, dtype=jnp.float32)[:, None]
    div_term = jnp.exp(jnp.arange(0, D, 2, dtype=jnp.float32) *
                       (-math.log(10000.0) / D))
    pe = jnp.zeros((S, D), jnp.float32)
    pe = pe.at[:, 0::2].set(jnp.sin(position * div_term))
    pe = pe.at[:, 1::2].set(jnp.cos(position * div_term))
    return pe


def init_params(key, *, n_features, d_model, n_heads, n_hidden, n_layers):
    """PyTorch-equivalent parameters (weights stored transposed, as W^T)."""
    def u(k, shape, scale=0.1):
        return jax.random.uniform(k, shape, jnp.float32, -scale, scale)

    keys = jax.random.split(key, n_layers + 1)
    k_in, k_out = jax.random.split(keys[0])
    params = {
        "in_w": u(k_in, (n_features, d_model)),
        "in_b": jnp.zeros((d_model,), jnp.float32),
        "out_w": u(k_out, (d_model, n_features)),
        "out_b": jnp.zeros((n_features,), jnp.float32),  # OutputLinear.bias.zero_()
        "layers": [],
    }
    for li in range(n_layers):
        ks = jax.random.split(keys[li + 1], 4)
        params["layers"].append({
            "in_proj_w": u(ks[0], (d_model, 3 * d_model)),   # packed q,k,v
            "in_proj_b": jnp.zeros((3 * d_model,), jnp.float32),
            "out_proj_w": u(ks[1], (d_model, d_model)),
            "out_proj_b": jnp.zeros((d_model,), jnp.float32),
            "ffn_w1": u(ks[2], (d_model, n_hidden)),
            "ffn_b1": jnp.zeros((n_hidden,), jnp.float32),
            "ffn_w2": u(ks[3], (n_hidden, d_model)),
            "ffn_b2": jnp.zeros((d_model,), jnp.float32),
            "ln1_g": jnp.ones((d_model,), jnp.float32),
            "ln1_b": jnp.zeros((d_model,), jnp.float32),
            "ln2_g": jnp.ones((d_model,), jnp.float32),
            "ln2_b": jnp.zeros((d_model,), jnp.float32),
        })
    return params


def prepare_params(params, *, n_heads, seq_len, batch_tile,
                   compute_dtype=jnp.bfloat16):
    """Fold scales/biases, keep QKV packed, bf16 MXU weights, lane-pad output."""
    F, D = params["in_w"].shape
    Dh = D // n_heads
    s_in = math.sqrt(D)               # InputLinear(src) * sqrt(d_model)
    s_att = 1.0 / math.sqrt(Dh)       # attention score scale (folded into Wq)
    Fp = ((F + 127) // 128) * 128     # lane-dense output width

    # Positional encoding with the (scaled) InputLinear bias folded in,
    # pre-tiled to the [Bt*S, D] activation slab (DMA'd once, constant map).
    pe = positional_encoding(seq_len, D) + (params["in_b"] * s_in)[None, :]
    pe_tiled = jnp.tile(pe, (batch_tile, 1)).astype(jnp.float32)

    out_w_pad = jnp.zeros((D, Fp), jnp.float32).at[:, :F].set(params["out_w"])
    out_b_pad = jnp.zeros((Fp,), jnp.float32).at[:F].set(params["out_b"])

    kp = {
        "pe": pe_tiled,
        "in_w": (params["in_w"] * s_in).astype(compute_dtype),
        "out_w": out_w_pad.astype(compute_dtype),
        "out_b": out_b_pad.reshape(1, Fp),
        "layers": [],
    }
    # Fold 1/sqrt(d_head) into the q-third of the packed in_proj.
    qkv_scale = jnp.concatenate([jnp.full((D,), s_att, jnp.float32),
                                 jnp.ones((2 * D,), jnp.float32)])
    for lp in params["layers"]:
        wqkv = lp["in_proj_w"] * qkv_scale[None, :]
        bqkv = lp["in_proj_b"] * qkv_scale
        n_hidden = lp["ffn_w1"].shape[1]
        kp["layers"].append([
            wqkv.astype(compute_dtype), bqkv.reshape(1, 3 * D),
            lp["out_proj_w"].astype(compute_dtype),
            lp["out_proj_b"].reshape(1, D),
            lp["ffn_w1"].astype(compute_dtype), lp["ffn_b1"].reshape(1, n_hidden),
            lp["ffn_w2"].astype(compute_dtype), lp["ffn_b2"].reshape(1, D),
            lp["ln1_g"].reshape(1, D), lp["ln1_b"].reshape(1, D),
            lp["ln2_g"].reshape(1, D), lp["ln2_b"].reshape(1, D),
        ])
    return kp


def generate_square_subsequent_mask(sz):
    allow = jnp.tril(jnp.ones((sz, sz), jnp.float32)) == 1.0
    return jnp.where(allow, jnp.float32(0.0), jnp.float32(-1e7))


# ----------------------- pure-JAX reference (f32) ----------------------------

def reference_forward(params, src, src_mask, padding_mask, *, n_heads):
    B, S, F = src.shape
    D = params["in_w"].shape[1]
    Dh = D // n_heads
    pe = positional_encoding(S, D)
    h = (src @ params["in_w"] + params["in_b"]) * math.sqrt(D) + pe[None]
    pad_add = jnp.where(padding_mask, -1e9, 0.0)[:, None, None, :]  # [B,1,1,S]
    mask = src_mask[None, None, :, :] + pad_add
    for lp in params["layers"]:
        qkv = h @ lp["in_proj_w"] + lp["in_proj_b"]
        q, k, v = jnp.split(qkv, 3, axis=-1)
        sh = lambda t: t.reshape(B, S, n_heads, Dh).transpose(0, 2, 1, 3)
        qh, kh, vh = sh(q), sh(k), sh(v)
        s = jnp.einsum('bhqd,bhkd->bhqk', qh, kh) / math.sqrt(Dh) + mask
        p = jax.nn.softmax(s, axis=-1)
        ctx = jnp.einsum('bhqk,bhkd->bhqd', p, vh)
        ctx = ctx.transpose(0, 2, 1, 3).reshape(B, S, D)
        attn = ctx @ lp["out_proj_w"] + lp["out_proj_b"]
        h = _layer_norm(h + attn, lp["ln1_g"], lp["ln1_b"])
        ff = jax.nn.relu(h @ lp["ffn_w1"] + lp["ffn_b1"])
        ff = ff @ lp["ffn_w2"] + lp["ffn_b2"]
        h = _layer_norm(h + ff, lp["ln2_g"], lp["ln2_b"])
    return jax.nn.sigmoid(h @ params["out_w"] + params["out_b"])


# --------------------------------- main --------------------------------------

if __name__ == "__main__":
    # Small shapes consistent with the module (n_features=4, d_model=32,
    # n_heads=4, n_hidden=64, n_layers=2, batch=4, seq=8, Bt=2 -> grid=(2,)).
    B, S, Bt = 4, 8, 2
    n_features, d_model, n_heads, n_hidden, n_layers = 4, 32, 4, 64, 2

    root = jax.random.PRNGKey(0)
    k_param, k_src = jax.random.split(root)

    params = init_params(k_param, n_features=n_features, d_model=d_model,
                         n_heads=n_heads, n_hidden=n_hidden, n_layers=n_layers)
    kparams = prepare_params(params, n_heads=n_heads, seq_len=S,
                             batch_tile=Bt)

    src = jax.random.normal(k_src, (B, S, n_features), jnp.float32)
    src_mask = generate_square_subsequent_mask(S)
    # padding_mask: True = padded position (last 2 steps of batch element 1),
    # standing in for (data_gen_flag == 0) from the original script.
    padding_mask = jnp.zeros((B, S), bool).at[1, S - 2:].set(True)

    fwd = jax.jit(functools.partial(time_series_transformer,
                                    n_heads=n_heads, batch_tile=Bt))
    out = fwd(src, src_mask, padding_mask, kparams)
    out = jax.block_until_ready(out)

    ref = reference_forward(params, src, src_mask, padding_mask,
                            n_heads=n_heads)

    assert out.shape == (B, S, n_features)
    assert bool(jnp.all(jnp.isfinite(out)))
    assert bool(jnp.all((out > 0.0) & (out < 1.0)))       # sigmoid output range
    # bf16 MXU operands + approx reciprocal => loose tolerance vs f32 reference.
    assert float(jnp.max(jnp.abs(out - ref))) < 5e-2
    print("KERNEL_OK")
</pallas_src>

<mosaic_0001>
module attributes {stable_mosaic.version = 11 : i64} {
  func.func @kernel(%arg0: i32, %arg1: memref<2x8x4xf32, #tpu.memory_space<vmem>>, %arg2: memref<8x8xf32, #tpu.memory_space<vmem>>, %arg3: memref<2x1x8xf32, #tpu.memory_space<vmem>>, %arg4: memref<16x32xf32, #tpu.memory_space<vmem>>, %arg5: memref<4x32xbf16, #tpu.memory_space<vmem>>, %arg6: memref<32x128xbf16, #tpu.memory_space<vmem>>, %arg7: memref<1x128xf32, #tpu.memory_space<vmem>>, %arg8: memref<32x96xbf16, #tpu.memory_space<vmem>>, %arg9: memref<1x96xf32, #tpu.memory_space<vmem>>, %arg10: memref<32x32xbf16, #tpu.memory_space<vmem>>, %arg11: memref<1x32xf32, #tpu.memory_space<vmem>>, %arg12: memref<32x64xbf16, #tpu.memory_space<vmem>>, %arg13: memref<1x64xf32, #tpu.memory_space<vmem>>, %arg14: memref<64x32xbf16, #tpu.memory_space<vmem>>, %arg15: memref<1x32xf32, #tpu.memory_space<vmem>>, %arg16: memref<1x32xf32, #tpu.memory_space<vmem>>, %arg17: memref<1x32xf32, #tpu.memory_space<vmem>>, %arg18: memref<1x32xf32, #tpu.memory_space<vmem>>, %arg19: memref<1x32xf32, #tpu.memory_space<vmem>>, %arg20: memref<32x96xbf16, #tpu.memory_space<vmem>>, %arg21: memref<1x96xf32, #tpu.memory_space<vmem>>, %arg22: memref<32x32xbf16, #tpu.memory_space<vmem>>, %arg23: memref<1x32xf32, #tpu.memory_space<vmem>>, %arg24: memref<32x64xbf16, #tpu.memory_space<vmem>>, %arg25: memref<1x64xf32, #tpu.memory_space<vmem>>, %arg26: memref<64x32xbf16, #tpu.memory_space<vmem>>, %arg27: memref<1x32xf32, #tpu.memory_space<vmem>>, %arg28: memref<1x32xf32, #tpu.memory_space<vmem>>, %arg29: memref<1x32xf32, #tpu.memory_space<vmem>>, %arg30: memref<1x32xf32, #tpu.memory_space<vmem>>, %arg31: memref<1x32xf32, #tpu.memory_space<vmem>>, %arg32: memref<2x8x128xf32, #tpu.memory_space<vmem>>) attributes {dimension_semantics = [#tpu.dimension_semantics<parallel>], iteration_bounds = array<i64: 2>, scalar_prefetch = 0 : i64, scratch_operands = 0 : i64, tpu.core_type = #tpu.core_type<tc>, window_params = [{transform_indices = @transform_0, window_bounds = array<i64: 2, 8, 4>}, {pipeline_mode = #tpu.pipeline_mode<synchronous>, transform_indices = @transform_1, window_bounds = array<i64: 8, 8>}, {transform_indices = @transform_2, window_bounds = array<i64: 2, 1, 8>}, {pipeline_mode = #tpu.pipeline_mode<synchronous>, transform_indices = @transform_3, window_bounds = array<i64: 16, 32>}, {pipeline_mode = #tpu.pipeline_mode<synchronous>, transform_indices = @transform_4, window_bounds = array<i64: 4, 32>}, {pipeline_mode = #tpu.pipeline_mode<synchronous>, transform_indices = @transform_5, window_bounds = array<i64: 32, 128>}, {pipeline_mode = #tpu.pipeline_mode<synchronous>, transform_indices = @transform_6, window_bounds = array<i64: 1, 128>}, {pipeline_mode = #tpu.pipeline_mode<synchronous>, transform_indices = @transform_7, window_bounds = array<i64: 32, 96>}, {pipeline_mode = #tpu.pipeline_mode<synchronous>, transform_indices = @transform_8, window_bounds = array<i64: 1, 96>}, {pipeline_mode = #tpu.pipeline_mode<synchronous>, transform_indices = @transform_9, window_bounds = array<i64: 32, 32>}, {pipeline_mode = #tpu.pipeline_mode<synchronous>, transform_indices = @transform_10, window_bounds = array<i64: 1, 32>}, {pipeline_mode = #tpu.pipeline_mode<synchronous>, transform_indices = @transform_11, window_bounds = array<i64: 32, 64>}, {pipeline_mode = #tpu.pipeline_mode<synchronous>, transform_indices = @transform_12, window_bounds = array<i64: 1, 64>}, {pipeline_mode = #tpu.pipeline_mode<synchronous>, transform_indices = @transform_13, window_bounds = array<i64: 64, 32>}, {pipeline_mode = #tpu.pipeline_mode<synchronous>, transform_indices = @transform_14, window_bounds = array<i64: 1, 32>}, {pipeline_mode = #tpu.pipeline_mode<synchronous>, transform_indices = @transform_15, window_bounds = array<i64: 1, 32>}, {pipeline_mode = #tpu.pipeline_mode<synchronous>, transform_indices = @transform_16, window_bounds = array<i64: 1, 32>}, {pipeline_mode = #tpu.pipeline_mode<synchronous>, transform_indices = @transform_17, window_bounds = array<i64: 1, 32>}, {pipeline_mode = #tpu.pipeline_mode<synchronous>, transform_indices = @transform_18, window_bounds = array<i64: 1, 32>}, {pipeline_mode = #tpu.pipeline_mode<synchronous>, transform_indices = @transform_19, window_bounds = array<i64: 32, 96>}, {pipeline_mode = #tpu.pipeline_mode<synchronous>, transform_indices = @transform_20, window_bounds = array<i64: 1, 96>}, {pipeline_mode = #tpu.pipeline_mode<synchronous>, transform_indices = @transform_21, window_bounds = array<i64: 32, 32>}, {pipeline_mode = #tpu.pipeline_mode<synchronous>, transform_indices = @transform_22, window_bounds = array<i64: 1, 32>}, {pipeline_mode = #tpu.pipeline_mode<synchronous>, transform_indices = @transform_23, window_bounds = array<i64: 32, 64>}, {pipeline_mode = #tpu.pipeline_mode<synchronous>, transform_indices = @transform_24, window_bounds = array<i64: 1, 64>}, {pipeline_mode = #tpu.pipeline_mode<synchronous>, transform_indices = @transform_25, window_bounds = array<i64: 64, 32>}, {pipeline_mode = #tpu.pipeline_mode<synchronous>, transform_indices = @transform_26, window_bounds = array<i64: 1, 32>}, {pipeline_mode = #tpu.pipeline_mode<synchronous>, transform_indices = @transform_27, window_bounds = array<i64: 1, 32>}, {pipeline_mode = #tpu.pipeline_mode<synchronous>, transform_indices = @transform_28, window_bounds = array<i64: 1, 32>}, {pipeline_mode = #tpu.pipeline_mode<synchronous>, transform_indices = @transform_29, window_bounds = array<i64: 1, 32>}, {pipeline_mode = #tpu.pipeline_mode<synchronous>, transform_indices = @transform_30, window_bounds = array<i64: 1, 32>}, {transform_indices = @transform_31, window_bounds = array<i64: 2, 8, 128>}]} {
    %c0 = arith.constant 0 : index
    %c0_0 = arith.constant 0 : index
    %0 = vector.load %arg2[%c0, %c0_0] : memref<8x8xf32, #tpu.memory_space<vmem>>, vector<8x8xf32>
    %1 = vector.shape_cast %0 : vector<8x8xf32> to vector<1x8x8xf32>
    %c0_1 = arith.constant 0 : index
    %c0_2 = arith.constant 0 : index
    %c0_3 = arith.constant 0 : index
    %2 = vector.load %arg3[%c0_1, %c0_2, %c0_3] : memref<2x1x8xf32, #tpu.memory_space<vmem>>, vector<2x1x8xf32>
    %3 = vector.broadcast %1 : vector<1x8x8xf32> to vector<2x8x8xf32>
    %4 = vector.broadcast %2 : vector<2x1x8xf32> to vector<2x8x8xf32>
    %5 = arith.addf %3, %4 : vector<2x8x8xf32>
    %c0_4 = arith.constant 0 : index
    %c0_5 = arith.constant 0 : index
    %c0_6 = arith.constant 0 : index
    %6 = vector.load %arg1[%c0_4, %c0_5, %c0_6] : memref<2x8x4xf32, #tpu.memory_space<vmem>>, vector<2x8x4xf32>
    %7 = vector.shape_cast %6 : vector<2x8x4xf32> to vector<16x4xf32>
    %8 = arith.truncf %7 : vector<16x4xf32> to vector<16x4xbf16>
    %c0_7 = arith.constant 0 : index
    %c0_8 = arith.constant 0 : index
    %9 = vector.load %arg5[%c0_7, %c0_8] : memref<4x32xbf16, #tpu.memory_space<vmem>>, vector<4x32xbf16>
    %cst = arith.constant dense<0.000000e+00> : vector<16x32xf32>
    %10 = tpu.matmul %8, %9, %cst {dimension_numbers = #tpu.dot_dimension_numbers<[1], [0], [0], [1], [0, 0, 1, 1], [], []>} : vector<16x4xbf16>, vector<4x32xbf16>, vector<16x32xf32> -> vector<16x32xf32>
    %c0_9 = arith.constant 0 : index
    %c0_10 = arith.constant 0 : index
    %11 = vector.load %arg4[%c0_9, %c0_10] : memref<16x32xf32, #tpu.memory_space<vmem>>, vector<16x32xf32>
    %12 = arith.addf %10, %11 : vector<16x32xf32>
    %13 = arith.truncf %12 : vector<16x32xf32> to vector<16x32xbf16>
    %c0_11 = arith.constant 0 : index
    %c0_12 = arith.constant 0 : index
    %14 = vector.load %arg8[%c0_11, %c0_12] : memref<32x96xbf16, #tpu.memory_space<vmem>>, vector<32x96xbf16>
    %cst_13 = arith.constant dense<0.000000e+00> : vector<16x96xf32>
    %15 = tpu.matmul %13, %14, %cst_13 {dimension_numbers = #tpu.dot_dimension_numbers<[1], [0], [0], [1], [0, 0, 1, 1], [], []>} : vector<16x32xbf16>, vector<32x96xbf16>, vector<16x96xf32> -> vector<16x96xf32>
    %c0_14 = arith.constant 0 : index
    %c0_15 = arith.constant 0 : index
    %16 = vector.load %arg9[%c0_14, %c0_15] : memref<1x96xf32, #tpu.memory_space<vmem>>, vector<1x96xf32>
    %17 = vector.broadcast %16 : vector<1x96xf32> to vector<16x96xf32>
    %18 = arith.addf %15, %17 : vector<16x96xf32>
    %19 = arith.truncf %18 : vector<16x96xf32> to vector<16x96xbf16>
    %c0_16 = arith.constant 0 : index
    %c0_17 = arith.constant 0 : index
    %20 = vector.load %arg10[%c0_16, %c0_17] : memref<32x32xbf16, #tpu.memory_space<vmem>>, vector<32x32xbf16>
    %21 = vector.extract_strided_slice %19 {offsets = [0, 0], sizes = [16, 8], strides = [1, 1]} : vector<16x96xbf16> to vector<16x8xbf16>
    %22 = vector.shape_cast %21 : vector<16x8xbf16> to vector<2x8x8xbf16>
    %23 = vector.extract_strided_slice %19 {offsets = [0, 32], sizes = [16, 8], strides = [1, 1]} : vector<16x96xbf16> to vector<16x8xbf16>
    %24 = vector.shape_cast %23 : vector<16x8xbf16> to vector<2x8x8xbf16>
    %25 = vector.extract_strided_slice %19 {offsets = [0, 64], sizes = [16, 8], strides = [1, 1]} : vector<16x96xbf16> to vector<16x8xbf16>
    %26 = vector.shape_cast %25 : vector<16x8xbf16> to vector<2x8x8xbf16>
    "tpu.trace_start"() <{level = 10 : i32, message = "bqd,bkd->bqk"}> : () -> ()
    %cst_18 = arith.constant dense<0.000000e+00> : vector<2x8x8xf32>
    %27 = tpu.matmul %22, %24, %cst_18 {dimension_numbers = #tpu.dot_dimension_numbers<[2], [2], [1], [1], [0, 0, 0, 1, 1, 1], [0], [0]>} : vector<2x8x8xbf16>, vector<2x8x8xbf16>, vector<2x8x8xf32> -> vector<2x8x8xf32>
    "tpu.trace_stop"() : () -> ()
    %28 = arith.addf %27, %5 : vector<2x8x8xf32>
    %cst_19 = arith.constant dense<0xFF800000> : vector<2x8xf32>
    %29 = vector.multi_reduction <maximumf>, %28, %cst_19 [2] : vector<2x8x8xf32> to vector<2x8xf32>
    %30 = vector.shape_cast %29 : vector<2x8xf32> to vector<2x8x1xf32>
    %31 = vector.broadcast %30 : vector<2x8x1xf32> to vector<2x8x8xf32>
    %32 = arith.subf %28, %31 : vector<2x8x8xf32>
    %33 = math.exp %32 : vector<2x8x8xf32>
    %cst_20 = arith.constant dense<0.000000e+00> : vector<2x8xf32>
    %34 = vector.multi_reduction <add>, %33, %cst_20 [2] : vector<2x8x8xf32> to vector<2x8xf32>
    %35 = vector.shape_cast %34 : vector<2x8xf32> to vector<2x8x1xf32>
    %36 = tpu.reciprocal %35 {approx = true} : vector<2x8x1xf32> -> vector<2x8x1xf32>
    %37 = vector.broadcast %36 : vector<2x8x1xf32> to vector<2x8x8xf32>
    %38 = arith.mulf %33, %37 : vector<2x8x8xf32>
    %39 = arith.truncf %38 : vector<2x8x8xf32> to vector<2x8x8xbf16>
    "tpu.trace_start"() <{level = 10 : i32, message = "bqk,bkd->bqd"}> : () -> ()
    %cst_21 = arith.constant dense<0.000000e+00> : vector<2x8x8xf32>
    %40 = tpu.matmul %39, %26, %cst_21 {dimension_numbers = #tpu.dot_dimension_numbers<[2], [1], [1], [2], [0, 0, 0, 1, 1, 2], [0], [0]>} : vector<2x8x8xbf16>, vector<2x8x8xbf16>, vector<2x8x8xf32> -> vector<2x8x8xf32>
    "tpu.trace_stop"() : () -> ()
    %41 = vector.shape_cast %40 : vector<2x8x8xf32> to vector<16x8xf32>
    %42 = arith.truncf %41 : vector<16x8xf32> to vector<16x8xbf16>
    %43 = vector.extract_strided_slice %20 {offsets = [0, 0], sizes = [8, 32], strides = [1, 1]} : vector<32x32xbf16> to vector<8x32xbf16>
    %cst_22 = arith.constant dense<0.000000e+00> : vector<16x32xf32>
    %44 = tpu.matmul %42, %43, %cst_22 {dimension_numbers = #tpu.dot_dimension_numbers<[1], [0], [0], [1], [0, 0, 1, 1], [], []>} : vector<16x8xbf16>, vector<8x32xbf16>, vector<16x32xf32> -> vector<16x32xf32>
    %45 = vector.extract_strided_slice %19 {offsets = [0, 8], sizes = [16, 8], strides = [1, 1]} : vector<16x96xbf16> to vector<16x8xbf16>
    %46 = vector.shape_cast %45 : vector<16x8xbf16> to vector<2x8x8xbf16>
    %47 = vector.extract_strided_slice %19 {offsets = [0, 40], sizes = [16, 8], strides = [1, 1]} : vector<16x96xbf16> to vector<16x8xbf16>
    %48 = vector.shape_cast %47 : vector<16x8xbf16> to vector<2x8x8xbf16>
    %49 = vector.extract_strided_slice %19 {offsets = [0, 72], sizes = [16, 8], strides = [1, 1]} : vector<16x96xbf16> to vector<16x8xbf16>
    %50 = vector.shape_cast %49 : vector<16x8xbf16> to vector<2x8x8xbf16>
    "tpu.trace_start"() <{level = 10 : i32, message = "bqd,bkd->bqk"}> : () -> ()
    %cst_23 = arith.constant dense<0.000000e+00> : vector<2x8x8xf32>
    %51 = tpu.matmul %46, %48, %cst_23 {dimension_numbers = #tpu.dot_dimension_numbers<[2], [2], [1], [1], [0, 0, 0, 1, 1, 1], [0], [0]>} : vector<2x8x8xbf16>, vector<2x8x8xbf16>, vector<2x8x8xf32> -> vector<2x8x8xf32>
    "tpu.trace_stop"() : () -> ()
    %52 = arith.addf %51, %5 : vector<2x8x8xf32>
    %cst_24 = arith.constant dense<0xFF800000> : vector<2x8xf32>
    %53 = vector.multi_reduction <maximumf>, %52, %cst_24 [2] : vector<2x8x8xf32> to vector<2x8xf32>
    %54 = vector.shape_cast %53 : vector<2x8xf32> to vector<2x8x1xf32>
    %55 = vector.broadcast %54 : vector<2x8x1xf32> to vector<2x8x8xf32>
    %56 = arith.subf %52, %55 : vector<2x8x8xf32>
    %57 = math.exp %56 : vector<2x8x8xf32>
    %cst_25 = arith.constant dense<0.000000e+00> : vector<2x8xf32>
    %58 = vector.multi_reduction <add>, %57, %cst_25 [2] : vector<2x8x8xf32> to vector<2x8xf32>
    %59 = vector.shape_cast %58 : vector<2x8xf32> to vector<2x8x1xf32>
    %60 = tpu.reciprocal %59 {approx = true} : vector<2x8x1xf32> -> vector<2x8x1xf32>
    %61 = vector.broadcast %60 : vector<2x8x1xf32> to vector<2x8x8xf32>
    %62 = arith.mulf %57, %61 : vector<2x8x8xf32>
    %63 = arith.truncf %62 : vector<2x8x8xf32> to vector<2x8x8xbf16>
    "tpu.trace_start"() <{level = 10 : i32, message = "bqk,bkd->bqd"}> : () -> ()
    %cst_26 = arith.constant dense<0.000000e+00> : vector<2x8x8xf32>
    %64 = tpu.matmul %63, %50, %cst_26 {dimension_numbers = #tpu.dot_dimension_numbers<[2], [1], [1], [2], [0, 0, 0, 1, 1, 2], [0], [0]>} : vector<2x8x8xbf16>, vector<2x8x8xbf16>, vector<2x8x8xf32> -> vector<2x8x8xf32>
    "tpu.trace_stop"() : () -> ()
    %65 = vector.shape_cast %64 : vector<2x8x8xf32> to vector<16x8xf32>
    %66 = arith.truncf %65 : vector<16x8xf32> to vector<16x8xbf16>
    %67 = vector.extract_strided_slice %20 {offsets = [8, 0], sizes = [8, 32], strides = [1, 1]} : vector<32x32xbf16> to vector<8x32xbf16>
    %cst_27 = arith.constant dense<0.000000e+00> : vector<16x32xf32>
    %68 = tpu.matmul %66, %67, %cst_27 {dimension_numbers = #tpu.dot_dimension_numbers<[1], [0], [0], [1], [0, 0, 1, 1], [], []>} : vector<16x8xbf16>, vector<8x32xbf16>, vector<16x32xf32> -> vector<16x32xf32>
    %69 = arith.addf %44, %68 : vector<16x32xf32>
    %70 = vector.extract_strided_slice %19 {offsets = [0, 16], sizes = [16, 8], strides = [1, 1]} : vector<16x96xbf16> to vector<16x8xbf16>
    %71 = vector.shape_cast %70 : vector<16x8xbf16> to vector<2x8x8xbf16>
    %72 = vector.extract_strided_slice %19 {offsets = [0, 48], sizes = [16, 8], strides = [1, 1]} : vector<16x96xbf16> to vector<16x8xbf16>
    %73 = vector.shape_cast %72 : vector<16x8xbf16> to vector<2x8x8xbf16>
    %74 = vector.extract_strided_slice %19 {offsets = [0, 80], sizes = [16, 8], strides = [1, 1]} : vector<16x96xbf16> to vector<16x8xbf16>
    %75 = vector.shape_cast %74 : vector<16x8xbf16> to vector<2x8x8xbf16>
    "tpu.trace_start"() <{level = 10 : i32, message = "bqd,bkd->bqk"}> : () -> ()
    %cst_28 = arith.constant dense<0.000000e+00> : vector<2x8x8xf32>
    %76 = tpu.matmul %71, %73, %cst_28 {dimension_numbers = #tpu.dot_dimension_numbers<[2], [2], [1], [1], [0, 0, 0, 1, 1, 1], [0], [0]>} : vector<2x8x8xbf16>, vector<2x8x8xbf16>, vector<2x8x8xf32> -> vector<2x8x8xf32>
    "tpu.trace_stop"() : () -> ()
    %77 = arith.addf %76, %5 : vector<2x8x8xf32>
    %cst_29 = arith.constant dense<0xFF800000> : vector<2x8xf32>
    %78 = vector.multi_reduction <maximumf>, %77, %cst_29 [2] : vector<2x8x8xf32> to vector<2x8xf32>
    %79 = vector.shape_cast %78 : vector<2x8xf32> to vector<2x8x1xf32>
    %80 = vector.broadcast %79 : vector<2x8x1xf32> to vector<2x8x8xf32>
    %81 = arith.subf %77, %80 : vector<2x8x8xf32>
    %82 = math.exp %81 : vector<2x8x8xf32>
    %cst_30 = arith.constant dense<0.000000e+00> : vector<2x8xf32>
    %83 = vector.multi_reduction <add>, %82, %cst_30 [2] : vector<2x8x8xf32> to vector<2x8xf32>
    %84 = vector.shape_cast %83 : vector<2x8xf32> to vector<2x8x1xf32>
    %85 = tpu.reciprocal %84 {approx = true} : vector<2x8x1xf32> -> vector<2x8x1xf32>
    %86 = vector.broadcast %85 : vector<2x8x1xf32> to vector<2x8x8xf32>
    %87 = arith.mulf %82, %86 : vector<2x8x8xf32>
    %88 = arith.truncf %87 : vector<2x8x8xf32> to vector<2x8x8xbf16>
    "tpu.trace_start"() <{level = 10 : i32, message = "bqk,bkd->bqd"}> : () -> ()
    %cst_31 = arith.constant dense<0.000000e+00> : vector<2x8x8xf32>
    %89 = tpu.matmul %88, %75, %cst_31 {dimension_numbers = #tpu.dot_dimension_numbers<[2], [1], [1], [2], [0, 0, 0, 1, 1, 2], [0], [0]>} : vector<2x8x8xbf16>, vector<2x8x8xbf16>, vector<2x8x8xf32> -> vector<2x8x8xf32>
    "tpu.trace_stop"() : () -> ()
    %90 = vector.shape_cast %89 : vector<2x8x8xf32> to vector<16x8xf32>
    %91 = arith.truncf %90 : vector<16x8xf32> to vector<16x8xbf16>
    %92 = vector.extract_strided_slice %20 {offsets = [16, 0], sizes = [8, 32], strides = [1, 1]} : vector<32x32xbf16> to vector<8x32xbf16>
    %cst_32 = arith.constant dense<0.000000e+00> : vector<16x32xf32>
    %93 = tpu.matmul %91, %92, %cst_32 {dimension_numbers = #tpu.dot_dimension_numbers<[1], [0], [0], [1], [0, 0, 1, 1], [], []>} : vector<16x8xbf16>, vector<8x32xbf16>, vector<16x32xf32> -> vector<16x32xf32>
    %94 = arith.addf %69, %93 : vector<16x32xf32>
    %95 = vector.extract_strided_slice %19 {offsets = [0, 24], sizes = [16, 8], strides = [1, 1]} : vector<16x96xbf16> to vector<16x8xbf16>
    %96 = vector.shape_cast %95 : vector<16x8xbf16> to vector<2x8x8xbf16>
    %97 = vector.extract_strided_slice %19 {offsets = [0, 56], sizes = [16, 8], strides = [1, 1]} : vector<16x96xbf16> to vector<16x8xbf16>
    %98 = vector.shape_cast %97 : vector<16x8xbf16> to vector<2x8x8xbf16>
    %99 = vector.extract_strided_slice %19 {offsets = [0, 88], sizes = [16, 8], strides = [1, 1]} : vector<16x96xbf16> to vector<16x8xbf16>
    %100 = vector.shape_cast %99 : vector<16x8xbf16> to vector<2x8x8xbf16>
    "tpu.trace_start"() <{level = 10 : i32, message = "bqd,bkd->bqk"}> : () -> ()
    %cst_33 = arith.constant dense<0.000000e+00> : vector<2x8x8xf32>
    %101 = tpu.matmul %96, %98, %cst_33 {dimension_numbers = #tpu.dot_dimension_numbers<[2], [2], [1], [1], [0, 0, 0, 1, 1, 1], [0], [0]>} : vector<2x8x8xbf16>, vector<2x8x8xbf16>, vector<2x8x8xf32> -> vector<2x8x8xf32>
    "tpu.trace_stop"() : () -> ()
    %102 = arith.addf %101, %5 : vector<2x8x8xf32>
    %cst_34 = arith.constant dense<0xFF800000> : vector<2x8xf32>
    %103 = vector.multi_reduction <maximumf>, %102, %cst_34 [2] : vector<2x8x8xf32> to vector<2x8xf32>
    %104 = vector.shape_cast %103 : vector<2x8xf32> to vector<2x8x1xf32>
    %105 = vector.broadcast %104 : vector<2x8x1xf32> to vector<2x8x8xf32>
    %106 = arith.subf %102, %105 : vector<2x8x8xf32>
    %107 = math.exp %106 : vector<2x8x8xf32>
    %cst_35 = arith.constant dense<0.000000e+00> : vector<2x8xf32>
    %108 = vector.multi_reduction <add>, %107, %cst_35 [2] : vector<2x8x8xf32> to vector<2x8xf32>
    %109 = vector.shape_cast %108 : vector<2x8xf32> to vector<2x8x1xf32>
    %110 = tpu.reciprocal %109 {approx = true} : vector<2x8x1xf32> -> vector<2x8x1xf32>
    %111 = vector.broadcast %110 : vector<2x8x1xf32> to vector<2x8x8xf32>
    %112 = arith.mulf %107, %111 : vector<2x8x8xf32>
    %113 = arith.truncf %112 : vector<2x8x8xf32> to vector<2x8x8xbf16>
    "tpu.trace_start"() <{level = 10 : i32, message = "bqk,bkd->bqd"}> : () -> ()
    %cst_36 = arith.constant dense<0.000000e+00> : vector<2x8x8xf32>
    %114 = tpu.matmul %113, %100, %cst_36 {dimension_numbers = #tpu.dot_dimension_numbers<[2], [1], [1], [2], [0, 0, 0, 1, 1, 2], [0], [0]>} : vector<2x8x8xbf16>, vector<2x8x8xbf16>, vector<2x8x8xf32> -> vector<2x8x8xf32>
    "tpu.trace_stop"() : () -> ()
    %115 = vector.shape_cast %114 : vector<2x8x8xf32> to vector<16x8xf32>
    %116 = arith.truncf %115 : vector<16x8xf32> to vector<16x8xbf16>
    %117 = vector.extract_strided_slice %20 {offsets = [24, 0], sizes = [8, 32], strides = [1, 1]} : vector<32x32xbf16> to vector<8x32xbf16>
    %cst_37 = arith.constant dense<0.000000e+00> : vector<16x32xf32>
    %118 = tpu.matmul %116, %117, %cst_37 {dimension_numbers = #tpu.dot_dimension_numbers<[1], [0], [0], [1], [0, 0, 1, 1], [], []>} : vector<16x8xbf16>, vector<8x32xbf16>, vector<16x32xf32> -> vector<16x32xf32>
    %119 = arith.addf %94, %118 : vector<16x32xf32>
    %c0_38 = arith.constant 0 : index
    %c0_39 = arith.constant 0 : index
    %120 = vector.load %arg11[%c0_38, %c0_39] : memref<1x32xf32, #tpu.memory_space<vmem>>, vector<1x32xf32>
    %121 = vector.broadcast %120 : vector<1x32xf32> to vector<16x32xf32>
    %122 = arith.addf %119, %121 : vector<16x32xf32>
    %123 = arith.addf %12, %122 : vector<16x32xf32>
    %c0_40 = arith.constant 0 : index
    %c0_41 = arith.constant 0 : index
    %124 = vector.load %arg16[%c0_40, %c0_41] : memref<1x32xf32, #tpu.memory_space<vmem>>, vector<1x32xf32>
    %c0_42 = arith.constant 0 : index
    %c0_43 = arith.constant 0 : index
    %125 = vector.load %arg17[%c0_42, %c0_43] : memref<1x32xf32, #tpu.memory_space<vmem>>, vector<1x32xf32>
    %cst_44 = arith.constant dense<0.000000e+00> : vector<16xf32>
    %126 = vector.multi_reduction <add>, %123, %cst_44 [1] : vector<16x32xf32> to vector<16xf32>
    %127 = vector.shape_cast %126 : vector<16xf32> to vector<16x1xf32>
    %cst_45 = arith.constant 3.200000e+01 : f32
    %128 = vector.broadcast %cst_45 : f32 to vector<16x1xf32>
    %129 = arith.divf %127, %128 : vector<16x1xf32>
    %130 = vector.broadcast %129 : vector<16x1xf32> to vector<16x32xf32>
    %131 = arith.subf %123, %130 : vector<16x32xf32>
    %132 = arith.mulf %131, %131 : vector<16x32xf32>
    %cst_46 = arith.constant dense<0.000000e+00> : vector<16xf32>
    %133 = vector.multi_reduction <add>, %132, %cst_46 [1] : vector<16x32xf32> to vector<16xf32>
    %134 = vector.shape_cast %133 : vector<16xf32> to vector<16x1xf32>
    %cst_47 = arith.constant 3.200000e+01 : f32
    %135 = vector.broadcast %cst_47 : f32 to vector<16x1xf32>
    %136 = arith.divf %134, %135 : vector<16x1xf32>
    %cst_48 = arith.constant 9.99999974E-6 : f32
    %137 = vector.broadcast %cst_48 : f32 to vector<16x1xf32>
    %138 = arith.addf %136, %137 : vector<16x1xf32>
    %139 = math.rsqrt %138 : vector<16x1xf32>
    %140 = vector.broadcast %139 : vector<16x1xf32> to vector<16x32xf32>
    %141 = arith.mulf %131, %140 : vector<16x32xf32>
    %142 = vector.broadcast %124 : vector<1x32xf32> to vector<16x32xf32>
    %143 = arith.mulf %141, %142 : vector<16x32xf32>
    %144 = vector.broadcast %125 : vector<1x32xf32> to vector<16x32xf32>
    %145 = arith.addf %143, %144 : vector<16x32xf32>
    %146 = arith.truncf %145 : vector<16x32xf32> to vector<16x32xbf16>
    %c0_49 = arith.constant 0 : index
    %c0_50 = arith.constant 0 : index
    %147 = vector.load %arg12[%c0_49, %c0_50] : memref<32x64xbf16, #tpu.memory_space<vmem>>, vector<32x64xbf16>
    %cst_51 = arith.constant dense<0.000000e+00> : vector<16x64xf32>
    %148 = tpu.matmul %146, %147, %cst_51 {dimension_numbers = #tpu.dot_dimension_numbers<[1], [0], [0], [1], [0, 0, 1, 1], [], []>} : vector<16x32xbf16>, vector<32x64xbf16>, vector<16x64xf32> -> vector<16x64xf32>
    %c0_52 = arith.constant 0 : index
    %c0_53 = arith.constant 0 : index
    %149 = vector.load %arg13[%c0_52, %c0_53] : memref<1x64xf32, #tpu.memory_space<vmem>>, vector<1x64xf32>
    %150 = vector.broadcast %149 : vector<1x64xf32> to vector<16x64xf32>
    %151 = arith.addf %148, %150 : vector<16x64xf32>
    %cst_54 = arith.constant 0.000000e+00 : f32
    %152 = vector.broadcast %cst_54 : f32 to vector<16x64xf32>
    %153 = arith.maximumf %151, %152 : vector<16x64xf32>
    %154 = arith.truncf %153 : vector<16x64xf32> to vector<16x64xbf16>
    %c0_55 = arith.constant 0 : index
    %c0_56 = arith.constant 0 : index
    %155 = vector.load %arg14[%c0_55, %c0_56] : memref<64x32xbf16, #tpu.memory_space<vmem>>, vector<64x32xbf16>
    %cst_57 = arith.constant dense<0.000000e+00> : vector<16x32xf32>
    %156 = tpu.matmul %154, %155, %cst_57 {dimension_numbers = #tpu.dot_dimension_numbers<[1], [0], [0], [1], [0, 0, 1, 1], [], []>} : vector<16x64xbf16>, vector<64x32xbf16>, vector<16x32xf32> -> vector<16x32xf32>
    %c0_58 = arith.constant 0 : index
    %c0_59 = arith.constant 0 : index
    %157 = vector.load %arg15[%c0_58, %c0_59] : memref<1x32xf32, #tpu.memory_space<vmem>>, vector<1x32xf32>
    %158 = vector.broadcast %157 : vector<1x32xf32> to vector<16x32xf32>
    %159 = arith.addf %156, %158 : vector<16x32xf32>
    %160 = arith.addf %145, %159 : vector<16x32xf32>
    %c0_60 = arith.constant 0 : index
    %c0_61 = arith.constant 0 : index
    %161 = vector.load %arg18[%c0_60, %c0_61] : memref<1x32xf32, #tpu.memory_space<vmem>>, vector<1x32xf32>
    %c0_62 = arith.constant 0 : index
    %c0_63 = arith.constant 0 : index
    %162 = vector.load %arg19[%c0_62, %c0_63] : memref<1x32xf32, #tpu.memory_space<vmem>>, vector<1x32xf32>
    %cst_64 = arith.constant dense<0.000000e+00> : vector<16xf32>
    %163 = vector.multi_reduction <add>, %160, %cst_64 [1] : vector<16x32xf32> to vector<16xf32>
    %164 = vector.shape_cast %163 : vector<16xf32> to vector<16x1xf32>
    %cst_65 = arith.constant 3.200000e+01 : f32
    %165 = vector.broadcast %cst_65 : f32 to vector<16x1xf32>
    %166 = arith.divf %164, %165 : vector<16x1xf32>
    %167 = vector.broadcast %166 : vector<16x1xf32> to vector<16x32xf32>
    %168 = arith.subf %160, %167 : vector<16x32xf32>
    %169 = arith.mulf %168, %168 : vector<16x32xf32>
    %cst_66 = arith.constant dense<0.000000e+00> : vector<16xf32>
    %170 = vector.multi_reduction <add>, %169, %cst_66 [1] : vector<16x32xf32> to vector<16xf32>
    %171 = vector.shape_cast %170 : vector<16xf32> to vector<16x1xf32>
    %cst_67 = arith.constant 3.200000e+01 : f32
    %172 = vector.broadcast %cst_67 : f32 to vector<16x1xf32>
    %173 = arith.divf %171, %172 : vector<16x1xf32>
    %cst_68 = arith.constant 9.99999974E-6 : f32
    %174 = vector.broadcast %cst_68 : f32 to vector<16x1xf32>
    %175 = arith.addf %173, %174 : vector<16x1xf32>
    %176 = math.rsqrt %175 : vector<16x1xf32>
    %177 = vector.broadcast %176 : vector<16x1xf32> to vector<16x32xf32>
    %178 = arith.mulf %168, %177 : vector<16x32xf32>
    %179 = vector.broadcast %161 : vector<1x32xf32> to vector<16x32xf32>
    %180 = arith.mulf %178, %179 : vector<16x32xf32>
    %181 = vector.broadcast %162 : vector<1x32xf32> to vector<16x32xf32>
    %182 = arith.addf %180, %181 : vector<16x32xf32>
    %183 = arith.truncf %182 : vector<16x32xf32> to vector<16x32xbf16>
    %c0_69 = arith.constant 0 : index
    %c0_70 = arith.constant 0 : index
    %184 = vector.load %arg20[%c0_69, %c0_70] : memref<32x96xbf16, #tpu.memory_space<vmem>>, vector<32x96xbf16>
    %cst_71 = arith.constant dense<0.000000e+00> : vector<16x96xf32>
    %185 = tpu.matmul %183, %184, %cst_71 {dimension_numbers = #tpu.dot_dimension_numbers<[1], [0], [0], [1], [0, 0, 1, 1], [], []>} : vector<16x32xbf16>, vector<32x96xbf16>, vector<16x96xf32> -> vector<16x96xf32>
    %c0_72 = arith.constant 0 : index
    %c0_73 = arith.constant 0 : index
    %186 = vector.load %arg21[%c0_72, %c0_73] : memref<1x96xf32, #tpu.memory_space<vmem>>, vector<1x96xf32>
    %187 = vector.broadcast %186 : vector<1x96xf32> to vector<16x96xf32>
    %188 = arith.addf %185, %187 : vector<16x96xf32>
    %189 = arith.truncf %188 : vector<16x96xf32> to vector<16x96xbf16>
    %c0_74 = arith.constant 0 : index
    %c0_75 = arith.constant 0 : index
    %190 = vector.load %arg22[%c0_74, %c0_75] : memref<32x32xbf16, #tpu.memory_space<vmem>>, vector<32x32xbf16>
    %191 = vector.extract_strided_slice %189 {offsets = [0, 0], sizes = [16, 8], strides = [1, 1]} : vector<16x96xbf16> to vector<16x8xbf16>
    %192 = vector.shape_cast %191 : vector<16x8xbf16> to vector<2x8x8xbf16>
    %193 = vector.extract_strided_slice %189 {offsets = [0, 32], sizes = [16, 8], strides = [1, 1]} : vector<16x96xbf16> to vector<16x8xbf16>
    %194 = vector.shape_cast %193 : vector<16x8xbf16> to vector<2x8x8xbf16>
    %195 = vector.extract_strided_slice %189 {offsets = [0, 64], sizes = [16, 8], strides = [1, 1]} : vector<16x96xbf16> to vector<16x8xbf16>
    %196 = vector.shape_cast %195 : vector<16x8xbf16> to vector<2x8x8xbf16>
    "tpu.trace_start"() <{level = 10 : i32, message = "bqd,bkd->bqk"}> : () -> ()
    %cst_76 = arith.constant dense<0.000000e+00> : vector<2x8x8xf32>
    %197 = tpu.matmul %192, %194, %cst_76 {dimension_numbers = #tpu.dot_dimension_numbers<[2], [2], [1], [1], [0, 0, 0, 1, 1, 1], [0], [0]>} : vector<2x8x8xbf16>, vector<2x8x8xbf16>, vector<2x8x8xf32> -> vector<2x8x8xf32>
    "tpu.trace_stop"() : () -> ()
    %198 = arith.addf %197, %5 : vector<2x8x8xf32>
    %cst_77 = arith.constant dense<0xFF800000> : vector<2x8xf32>
    %199 = vector.multi_reduction <maximumf>, %198, %cst_77 [2] : vector<2x8x8xf32> to vector<2x8xf32>
    %200 = vector.shape_cast %199 : vector<2x8xf32> to vector<2x8x1xf32>
    %201 = vector.broadcast %200 : vector<2x8x1xf32> to vector<2x8x8xf32>
    %202 = arith.subf %198, %201 : vector<2x8x8xf32>
    %203 = math.exp %202 : vector<2x8x8xf32>
    %cst_78 = arith.constant dense<0.000000e+00> : vector<2x8xf32>
    %204 = vector.multi_reduction <add>, %203, %cst_78 [2] : vector<2x8x8xf32> to vector<2x8xf32>
    %205 = vector.shape_cast %204 : vector<2x8xf32> to vector<2x8x1xf32>
    %206 = tpu.reciprocal %205 {approx = true} : vector<2x8x1xf32> -> vector<2x8x1xf32>
    %207 = vector.broadcast %206 : vector<2x8x1xf32> to vector<2x8x8xf32>
    %208 = arith.mulf %203, %207 : vector<2x8x8xf32>
    %209 = arith.truncf %208 : vector<2x8x8xf32> to vector<2x8x8xbf16>
    "tpu.trace_start"() <{level = 10 : i32, message = "bqk,bkd->bqd"}> : () -> ()
    %cst_79 = arith.constant dense<0.000000e+00> : vector<2x8x8xf32>
    %210 = tpu.matmul %209, %196, %cst_79 {dimension_numbers = #tpu.dot_dimension_numbers<[2], [1], [1], [2], [0, 0, 0, 1, 1, 2], [0], [0]>} : vector<2x8x8xbf16>, vector<2x8x8xbf16>, vector<2x8x8xf32> -> vector<2x8x8xf32>
    "tpu.trace_stop"() : () -> ()
    %211 = vector.shape_cast %210 : vector<2x8x8xf32> to vector<16x8xf32>
    %212 = arith.truncf %211 : vector<16x8xf32> to vector<16x8xbf16>
    %213 = vector.extract_strided_slice %190 {offsets = [0, 0], sizes = [8, 32], strides = [1, 1]} : vector<32x32xbf16> to vector<8x32xbf16>
    %cst_80 = arith.constant dense<0.000000e+00> : vector<16x32xf32>
    %214 = tpu.matmul %212, %213, %cst_80 {dimension_numbers = #tpu.dot_dimension_numbers<[1], [0], [0], [1], [0, 0, 1, 1], [], []>} : vector<16x8xbf16>, vector<8x32xbf16>, vector<16x32xf32> -> vector<16x32xf32>
    %215 = vector.extract_strided_slice %189 {offsets = [0, 8], sizes = [16, 8], strides = [1, 1]} : vector<16x96xbf16> to vector<16x8xbf16>
    %216 = vector.shape_cast %215 : vector<16x8xbf16> to vector<2x8x8xbf16>
    %217 = vector.extract_strided_slice %189 {offsets = [0, 40], sizes = [16, 8], strides = [1, 1]} : vector<16x96xbf16> to vector<16x8xbf16>
    %218 = vector.shape_cast %217 : vector<16x8xbf16> to vector<2x8x8xbf16>
    %219 = vector.extract_strided_slice %189 {offsets = [0, 72], sizes = [16, 8], strides = [1, 1]} : vector<16x96xbf16> to vector<16x8xbf16>
    %220 = vector.shape_cast %219 : vector<16x8xbf16> to vector<2x8x8xbf16>
    "tpu.trace_start"() <{level = 10 : i32, message = "bqd,bkd->bqk"}> : () -> ()
    %cst_81 = arith.constant dense<0.000000e+00> : vector<2x8x8xf32>
    %221 = tpu.matmul %216, %218, %cst_81 {dimension_numbers = #tpu.dot_dimension_numbers<[2], [2], [1], [1], [0, 0, 0, 1, 1, 1], [0], [0]>} : vector<2x8x8xbf16>, vector<2x8x8xbf16>, vector<2x8x8xf32> -> vector<2x8x8xf32>
    "tpu.trace_stop"() : () -> ()
    %222 = arith.addf %221, %5 : vector<2x8x8xf32>
    %cst_82 = arith.constant dense<0xFF800000> : vector<2x8xf32>
    %223 = vector.multi_reduction <maximumf>, %222, %cst_82 [2] : vector<2x8x8xf32> to vector<2x8xf32>
    %224 = vector.shape_cast %223 : vector<2x8xf32> to vector<2x8x1xf32>
    %225 = vector.broadcast %224 : vector<2x8x1xf32> to vector<2x8x8xf32>
    %226 = arith.subf %222, %225 : vector<2x8x8xf32>
    %227 = math.exp %226 : vector<2x8x8xf32>
    %cst_83 = arith.constant dense<0.000000e+00> : vector<2x8xf32>
    %228 = vector.multi_reduction <add>, %227, %cst_83 [2] : vector<2x8x8xf32> to vector<2x8xf32>
    %229 = vector.shape_cast %228 : vector<2x8xf32> to vector<2x8x1xf32>
    %230 = tpu.reciprocal %229 {approx = true} : vector<2x8x1xf32> -> vector<2x8x1xf32>
    %231 = vector.broadcast %230 : vector<2x8x1xf32> to vector<2x8x8xf32>
    %232 = arith.mulf %227, %231 : vector<2x8x8xf32>
    %233 = arith.truncf %232 : vector<2x8x8xf32> to vector<2x8x8xbf16>
    "tpu.trace_start"() <{level = 10 : i32, message = "bqk,bkd->bqd"}> : () -> ()
    %cst_84 = arith.constant dense<0.000000e+00> : vector<2x8x8xf32>
    %234 = tpu.matmul %233, %220, %cst_84 {dimension_numbers = #tpu.dot_dimension_numbers<[2], [1], [1], [2], [0, 0, 0, 1, 1, 2], [0], [0]>} : vector<2x8x8xbf16>, vector<2x8x8xbf16>, vector<2x8x8xf32> -> vector<2x8x8xf32>
    "tpu.trace_stop"() : () -> ()
    %235 = vector.shape_cast %234 : vector<2x8x8xf32> to vector<16x8xf32>
    %236 = arith.truncf %235 : vector<16x8xf32> to vector<16x8xbf16>
    %237 = vector.extract_strided_slice %190 {offsets = [8, 0], sizes = [8, 32], strides = [1, 1]} : vector<32x32xbf16> to vector<8x32xbf16>
    %cst_85 = arith.constant dense<0.000000e+00> : vector<16x32xf32>
    %238 = tpu.matmul %236, %237, %cst_85 {dimension_numbers = #tpu.dot_dimension_numbers<[1], [0], [0], [1], [0, 0, 1, 1], [], []>} : vector<16x8xbf16>, vector<8x32xbf16>, vector<16x32xf32> -> vector<16x32xf32>
    %239 = arith.addf %214, %238 : vector<16x32xf32>
    %240 = vector.extract_strided_slice %189 {offsets = [0, 16], sizes = [16, 8], strides = [1, 1]} : vector<16x96xbf16> to vector<16x8xbf16>
    %241 = vector.shape_cast %240 : vector<16x8xbf16> to vector<2x8x8xbf16>
    %242 = vector.extract_strided_slice %189 {offsets = [0, 48], sizes = [16, 8], strides = [1, 1]} : vector<16x96xbf16> to vector<16x8xbf16>
    %243 = vector.shape_cast %242 : vector<16x8xbf16> to vector<2x8x8xbf16>
    %244 = vector.extract_strided_slice %189 {offsets = [0, 80], sizes = [16, 8], strides = [1, 1]} : vector<16x96xbf16> to vector<16x8xbf16>
    %245 = vector.shape_cast %244 : vector<16x8xbf16> to vector<2x8x8xbf16>
    "tpu.trace_start"() <{level = 10 : i32, message = "bqd,bkd->bqk"}> : () -> ()
    %cst_86 = arith.constant dense<0.000000e+00> : vector<2x8x8xf32>
    %246 = tpu.matmul %241, %243, %cst_86 {dimension_numbers = #tpu.dot_dimension_numbers<[2], [2], [1], [1], [0, 0, 0, 1, 1, 1], [0], [0]>} : vector<2x8x8xbf16>, vector<2x8x8xbf16>, vector<2x8x8xf32> -> vector<2x8x8xf32>
    "tpu.trace_stop"() : () -> ()
    %247 = arith.addf %246, %5 : vector<2x8x8xf32>
    %cst_87 = arith.constant dense<0xFF800000> : vector<2x8xf32>
    %248 = vector.multi_reduction <maximumf>, %247, %cst_87 [2] : vector<2x8x8xf32> to vector<2x8xf32>
    %249 = vector.shape_cast %248 : vector<2x8xf32> to vector<2x8x1xf32>
    %250 = vector.broadcast %249 : vector<2x8x1xf32> to vector<2x8x8xf32>
    %251 = arith.subf %247, %250 : vector<2x8x8xf32>
    %252 = math.exp %251 : vector<2x8x8xf32>
    %cst_88 = arith.constant dense<0.000000e+00> : vector<2x8xf32>
    %253 = vector.multi_reduction <add>, %252, %cst_88 [2] : vector<2x8x8xf32> to vector<2x8xf32>
    %254 = vector.shape_cast %253 : vector<2x8xf32> to vector<2x8x1xf32>
    %255 = tpu.reciprocal %254 {approx = true} : vector<2x8x1xf32> -> vector<2x8x1xf32>
    %256 = vector.broadcast %255 : vector<2x8x1xf32> to vector<2x8x8xf32>
    %257 = arith.mulf %252, %256 : vector<2x8x8xf32>
    %258 = arith.truncf %257 : vector<2x8x8xf32> to vector<2x8x8xbf16>
    "tpu.trace_start"() <{level = 10 : i32, message = "bqk,bkd->bqd"}> : () -> ()
    %cst_89 = arith.constant dense<0.000000e+00> : vector<2x8x8xf32>
    %259 = tpu.matmul %258, %245, %cst_89 {dimension_numbers = #tpu.dot_dimension_numbers<[2], [1], [1], [2], [0, 0, 0, 1, 1, 2], [0], [0]>} : vector<2x8x8xbf16>, vector<2x8x8xbf16>, vector<2x8x8xf32> -> vector<2x8x8xf32>
    "tpu.trace_stop"() : () -> ()
    %260 = vector.shape_cast %259 : vector<2x8x8xf32> to vector<16x8xf32>
    %261 = arith.truncf %260 : vector<16x8xf32> to vector<16x8xbf16>
    %262 = vector.extract_strided_slice %190 {offsets = [16, 0], sizes = [8, 32], strides = [1, 1]} : vector<32x32xbf16> to vector<8x32xbf16>
    %cst_90 = arith.constant dense<0.000000e+00> : vector<16x32xf32>
    %263 = tpu.matmul %261, %262, %cst_90 {dimension_numbers = #tpu.dot_dimension_numbers<[1], [0], [0], [1], [0, 0, 1, 1], [], []>} : vector<16x8xbf16>, vector<8x32xbf16>, vector<16x32xf32> -> vector<16x32xf32>
    %264 = arith.addf %239, %263 : vector<16x32xf32>
    %265 = vector.extract_strided_slice %189 {offsets = [0, 24], sizes = [16, 8], strides = [1, 1]} : vector<16x96xbf16> to vector<16x8xbf16>
    %266 = vector.shape_cast %265 : vector<16x8xbf16> to vector<2x8x8xbf16>
    %267 = vector.extract_strided_slice %189 {offsets = [0, 56], sizes = [16, 8], strides = [1, 1]} : vector<16x96xbf16> to vector<16x8xbf16>
    %268 = vector.shape_cast %267 : vector<16x8xbf16> to vector<2x8x8xbf16>
    %269 = vector.extract_strided_slice %189 {offsets = [0, 88], sizes = [16, 8], strides = [1, 1]} : vector<16x96xbf16> to vector<16x8xbf16>
    %270 = vector.shape_cast %269 : vector<16x8xbf16> to vector<2x8x8xbf16>
    "tpu.trace_start"() <{level = 10 : i32, message = "bqd,bkd->bqk"}> : () -> ()
    %cst_91 = arith.constant dense<0.000000e+00> : vector<2x8x8xf32>
    %271 = tpu.matmul %266, %268, %cst_91 {dimension_numbers = #tpu.dot_dimension_numbers<[2], [2], [1], [1], [0, 0, 0, 1, 1, 1], [0], [0]>} : vector<2x8x8xbf16>, vector<2x8x8xbf16>, vector<2x8x8xf32> -> vector<2x8x8xf32>
    "tpu.trace_stop"() : () -> ()
    %272 = arith.addf %271, %5 : vector<2x8x8xf32>
    %cst_92 = arith.constant dense<0xFF800000> : vector<2x8xf32>
    %273 = vector.multi_reduction <maximumf>, %272, %cst_92 [2] : vector<2x8x8xf32> to vector<2x8xf32>
    %274 = vector.shape_cast %273 : vector<2x8xf32> to vector<2x8x1xf32>
    %275 = vector.broadcast %274 : vector<2x8x1xf32> to vector<2x8x8xf32>
    %276 = arith.subf %272, %275 : vector<2x8x8xf32>
    %277 = math.exp %276 : vector<2x8x8xf32>
    %cst_93 = arith.constant dense<0.000000e+00> : vector<2x8xf32>
    %278 = vector.multi_reduction <add>, %277, %cst_93 [2] : vector<2x8x8xf32> to vector<2x8xf32>
    %279 = vector.shape_cast %278 : vector<2x8xf32> to vector<2x8x1xf32>
    %280 = tpu.reciprocal %279 {approx = true} : vector<2x8x1xf32> -> vector<2x8x1xf32>
    %281 = vector.broadcast %280 : vector<2x8x1xf32> to vector<2x8x8xf32>
    %282 = arith.mulf %277, %281 : vector<2x8x8xf32>
    %283 = arith.truncf %282 : vector<2x8x8xf32> to vector<2x8x8xbf16>
    "tpu.trace_start"() <{level = 10 : i32, message = "bqk,bkd->bqd"}> : () -> ()
    %cst_94 = arith.constant dense<0.000000e+00> : vector<2x8x8xf32>
    %284 = tpu.matmul %283, %270, %cst_94 {dimension_numbers = #tpu.dot_dimension_numbers<[2], [1], [1], [2], [0, 0, 0, 1, 1, 2], [0], [0]>} : vector<2x8x8xbf16>, vector<2x8x8xbf16>, vector<2x8x8xf32> -> vector<2x8x8xf32>
    "tpu.trace_stop"() : () -> ()
    %285 = vector.shape_cast %284 : vector<2x8x8xf32> to vector<16x8xf32>
    %286 = arith.truncf %285 : vector<16x8xf32> to vector<16x8xbf16>
    %287 = vector.extract_strided_slice %190 {offsets = [24, 0], sizes = [8, 32], strides = [1, 1]} : vector<32x32xbf16> to vector<8x32xbf16>
    %cst_95 = arith.constant dense<0.000000e+00> : vector<16x32xf32>
    %288 = tpu.matmul %286, %287, %cst_95 {dimension_numbers = #tpu.dot_dimension_numbers<[1], [0], [0], [1], [0, 0, 1, 1], [], []>} : vector<16x8xbf16>, vector<8x32xbf16>, vector<16x32xf32> -> vector<16x32xf32>
    %289 = arith.addf %264, %288 : vector<16x32xf32>
    %c0_96 = arith.constant 0 : index
    %c0_97 = arith.constant 0 : index
    %290 = vector.load %arg23[%c0_96, %c0_97] : memref<1x32xf32, #tpu.memory_space<vmem>>, vector<1x32xf32>
    %291 = vector.broadcast %290 : vector<1x32xf32> to vector<16x32xf32>
    %292 = arith.addf %289, %291 : vector<16x32xf32>
    %293 = arith.addf %182, %292 : vector<16x32xf32>
    %c0_98 = arith.constant 0 : index
    %c0_99 = arith.constant 0 : index
    %294 = vector.load %arg28[%c0_98, %c0_99] : memref<1x32xf32, #tpu.memory_space<vmem>>, vector<1x32xf32>
    %c0_100 = arith.constant 0 : index
    %c0_101 = arith.constant 0 : index
    %295 = vector.load %arg29[%c0_100, %c0_101] : memref<1x32xf32, #tpu.memory_space<vmem>>, vector<1x32xf32>
    %cst_102 = arith.constant dense<0.000000e+00> : vector<16xf32>
    %296 = vector.multi_reduction <add>, %293, %cst_102 [1] : vector<16x32xf32> to vector<16xf32>
    %297 = vector.shape_cast %296 : vector<16xf32> to vector<16x1xf32>
    %cst_103 = arith.constant 3.200000e+01 : f32
    %298 = vector.broadcast %cst_103 : f32 to vector<16x1xf32>
    %299 = arith.divf %297, %298 : vector<16x1xf32>
    %300 = vector.broadcast %299 : vector<16x1xf32> to vector<16x32xf32>
    %301 = arith.subf %293, %300 : vector<16x32xf32>
    %302 = arith.mulf %301, %301 : vector<16x32xf32>
    %cst_104 = arith.constant dense<0.000000e+00> : vector<16xf32>
    %303 = vector.multi_reduction <add>, %302, %cst_104 [1] : vector<16x32xf32> to vector<16xf32>
    %304 = vector.shape_cast %303 : vector<16xf32> to vector<16x1xf32>
    %cst_105 = arith.constant 3.200000e+01 : f32
    %305 = vector.broadcast %cst_105 : f32 to vector<16x1xf32>
    %306 = arith.divf %304, %305 : vector<16x1xf32>
    %cst_106 = arith.constant 9.99999974E-6 : f32
    %307 = vector.broadcast %cst_106 : f32 to vector<16x1xf32>
    %308 = arith.addf %306, %307 : vector<16x1xf32>
    %309 = math.rsqrt %308 : vector<16x1xf32>
    %310 = vector.broadcast %309 : vector<16x1xf32> to vector<16x32xf32>
    %311 = arith.mulf %301, %310 : vector<16x32xf32>
    %312 = vector.broadcast %294 : vector<1x32xf32> to vector<16x32xf32>
    %313 = arith.mulf %311, %312 : vector<16x32xf32>
    %314 = vector.broadcast %295 : vector<1x32xf32> to vector<16x32xf32>
    %315 = arith.addf %313, %314 : vector<16x32xf32>
    %316 = arith.truncf %315 : vector<16x32xf32> to vector<16x32xbf16>
    %c0_107 = arith.constant 0 : index
    %c0_108 = arith.constant 0 : index
    %317 = vector.load %arg24[%c0_107, %c0_108] : memref<32x64xbf16, #tpu.memory_space<vmem>>, vector<32x64xbf16>
    %cst_109 = arith.constant dense<0.000000e+00> : vector<16x64xf32>
    %318 = tpu.matmul %316, %317, %cst_109 {dimension_numbers = #tpu.dot_dimension_numbers<[1], [0], [0], [1], [0, 0, 1, 1], [], []>} : vector<16x32xbf16>, vector<32x64xbf16>, vector<16x64xf32> -> vector<16x64xf32>
    %c0_110 = arith.constant 0 : index
    %c0_111 = arith.constant 0 : index
    %319 = vector.load %arg25[%c0_110, %c0_111] : memref<1x64xf32, #tpu.memory_space<vmem>>, vector<1x64xf32>
    %320 = vector.broadcast %319 : vector<1x64xf32> to vector<16x64xf32>
    %321 = arith.addf %318, %320 : vector<16x64xf32>
    %cst_112 = arith.constant 0.000000e+00 : f32
    %322 = vector.broadcast %cst_112 : f32 to vector<16x64xf32>
    %323 = arith.maximumf %321, %322 : vector<16x64xf32>
    %324 = arith.truncf %323 : vector<16x64xf32> to vector<16x64xbf16>
    %c0_113 = arith.constant 0 : index
    %c0_114 = arith.constant 0 : index
    %325 = vector.load %arg26[%c0_113, %c0_114] : memref<64x32xbf16, #tpu.memory_space<vmem>>, vector<64x32xbf16>
    %cst_115 = arith.constant dense<0.000000e+00> : vector<16x32xf32>
    %326 = tpu.matmul %324, %325, %cst_115 {dimension_numbers = #tpu.dot_dimension_numbers<[1], [0], [0], [1], [0, 0, 1, 1], [], []>} : vector<16x64xbf16>, vector<64x32xbf16>, vector<16x32xf32> -> vector<16x32xf32>
    %c0_116 = arith.constant 0 : index
    %c0_117 = arith.constant 0 : index
    %327 = vector.load %arg27[%c0_116, %c0_117] : memref<1x32xf32, #tpu.memory_space<vmem>>, vector<1x32xf32>
    %328 = vector.broadcast %327 : vector<1x32xf32> to vector<16x32xf32>
    %329 = arith.addf %326, %328 : vector<16x32xf32>
    %330 = arith.addf %315, %329 : vector<16x32xf32>
    %c0_118 = arith.constant 0 : index
    %c0_119 = arith.constant 0 : index
    %331 = vector.load %arg30[%c0_118, %c0_119] : memref<1x32xf32, #tpu.memory_space<vmem>>, vector<1x32xf32>
    %c0_120 = arith.constant 0 : index
    %c0_121 = arith.constant 0 : index
    %332 = vector.load %arg31[%c0_120, %c0_121] : memref<1x32xf32, #tpu.memory_space<vmem>>, vector<1x32xf32>
    %cst_122 = arith.constant dense<0.000000e+00> : vector<16xf32>
    %333 = vector.multi_reduction <add>, %330, %cst_122 [1] : vector<16x32xf32> to vector<16xf32>
    %334 = vector.shape_cast %333 : vector<16xf32> to vector<16x1xf32>
    %cst_123 = arith.constant 3.200000e+01 : f32
    %335 = vector.broadcast %cst_123 : f32 to vector<16x1xf32>
    %336 = arith.divf %334, %335 : vector<16x1xf32>
    %337 = vector.broadcast %336 : vector<16x1xf32> to vector<16x32xf32>
    %338 = arith.subf %330, %337 : vector<16x32xf32>
    %339 = arith.mulf %338, %338 : vector<16x32xf32>
    %cst_124 = arith.constant dense<0.000000e+00> : vector<16xf32>
    %340 = vector.multi_reduction <add>, %339, %cst_124 [1] : vector<16x32xf32> to vector<16xf32>
    %341 = vector.shape_cast %340 : vector<16xf32> to vector<16x1xf32>
    %cst_125 = arith.constant 3.200000e+01 : f32
    %342 = vector.broadcast %cst_125 : f32 to vector<16x1xf32>
    %343 = arith.divf %341, %342 : vector<16x1xf32>
    %cst_126 = arith.constant 9.99999974E-6 : f32
    %344 = vector.broadcast %cst_126 : f32 to vector<16x1xf32>
    %345 = arith.addf %343, %344 : vector<16x1xf32>
    %346 = math.rsqrt %345 : vector<16x1xf32>
    %347 = vector.broadcast %346 : vector<16x1xf32> to vector<16x32xf32>
    %348 = arith.mulf %338, %347 : vector<16x32xf32>
    %349 = vector.broadcast %331 : vector<1x32xf32> to vector<16x32xf32>
    %350 = arith.mulf %348, %349 : vector<16x32xf32>
    %351 = vector.broadcast %332 : vector<1x32xf32> to vector<16x32xf32>
    %352 = arith.addf %350, %351 : vector<16x32xf32>
    %353 = arith.truncf %352 : vector<16x32xf32> to vector<16x32xbf16>
    %c0_127 = arith.constant 0 : index
    %c0_128 = arith.constant 0 : index
    %354 = vector.load %arg6[%c0_127, %c0_128] : memref<32x128xbf16, #tpu.memory_space<vmem>>, vector<32x128xbf16>
    %cst_129 = arith.constant dense<0.000000e+00> : vector<16x128xf32>
    %355 = tpu.matmul %353, %354, %cst_129 {dimension_numbers = #tpu.dot_dimension_numbers<[1], [0], [0], [1], [0, 0, 1, 1], [], []>} : vector<16x32xbf16>, vector<32x128xbf16>, vector<16x128xf32> -> vector<16x128xf32>
    %c0_130 = arith.constant 0 : index
    %c0_131 = arith.constant 0 : index
    %356 = vector.load %arg7[%c0_130, %c0_131] : memref<1x128xf32, #tpu.memory_space<vmem>>, vector<1x128xf32>
    %357 = vector.broadcast %356 : vector<1x128xf32> to vector<16x128xf32>
    %358 = arith.addf %355, %357 : vector<16x128xf32>
    %359 = arith.negf %358 : vector<16x128xf32>
    %360 = math.exp %359 : vector<16x128xf32>
    %cst_132 = arith.constant 1.000000e+00 : f32
    %361 = vector.broadcast %cst_132 : f32 to vector<16x128xf32>
    %362 = arith.addf %361, %360 : vector<16x128xf32>
    %363 = arith.divf %361, %362 : vector<16x128xf32>
    %364 = vector.shape_cast %363 : vector<16x128xf32> to vector<2x8x128xf32>
    %c0_133 = arith.constant 0 : index
    %c0_134 = arith.constant 0 : index
    %c0_135 = arith.constant 0 : index
    %365 = vector.load %arg32[%c0_133, %c0_134, %c0_135] : memref<2x8x128xf32, #tpu.memory_space<vmem>>, vector<2x8x128xf32>
    tpu.vector_store %arg32[%c0_133, %c0_134, %c0_135], %364 {strides = array<i32>} : memref<2x8x128xf32, #tpu.memory_space<vmem>>, vector<2x8x128xf32>,
    return
  }
  func.func @transform_0(%arg0: i32) -> (i32, i32, i32) {
    %c0_i32 = arith.constant 0 : i32
    %c0_i32_0 = arith.constant 0 : i32
    %c0_i32_1 = arith.constant 0 : i32
    return %arg0, %c0_i32, %c0_i32_0 : i32, i32, i32
  }
  func.func @transform_1(%arg0: i32) -> (i32, i32) {
    %c0_i32 = arith.constant 0 : i32
    %c0_i32_0 = arith.constant 0 : i32
    %c0_i32_1 = arith.constant 0 : i32
    return %c0_i32, %c0_i32_0 : i32, i32
  }
  func.func @transform_2(%arg0: i32) -> (i32, i32, i32) {
    %c0_i32 = arith.constant 0 : i32
    %c0_i32_0 = arith.constant 0 : i32
    %c0_i32_1 = arith.constant 0 : i32
    return %arg0, %c0_i32, %c0_i32_0 : i32, i32, i32
  }
  func.func @transform_3(%arg0: i32) -> (i32, i32) {
    %c0_i32 = arith.constant 0 : i32
    %c0_i32_0 = arith.constant 0 : i32
    %c0_i32_1 = arith.constant 0 : i32
    return %c0_i32, %c0_i32_0 : i32, i32
  }
  func.func @transform_4(%arg0: i32) -> (i32, i32) {
    %c0_i32 = arith.constant 0 : i32
    %c0_i32_0 = arith.constant 0 : i32
    %c0_i32_1 = arith.constant 0 : i32
    return %c0_i32, %c0_i32_0 : i32, i32
  }
  func.func @transform_5(%arg0: i32) -> (i32, i32) {
    %c0_i32 = arith.constant 0 : i32
    %c0_i32_0 = arith.constant 0 : i32
    %c0_i32_1 = arith.constant 0 : i32
    return %c0_i32, %c0_i32_0 : i32, i32
  }
  func.func @transform_6(%arg0: i32) -> (i32, i32) {
    %c0_i32 = arith.constant 0 : i32
    %c0_i32_0 = arith.constant 0 : i32
    %c0_i32_1 = arith.constant 0 : i32
    return %c0_i32, %c0_i32_0 : i32, i32
  }
  func.func @transform_7(%arg0: i32) -> (i32, i32) {
    %c0_i32 = arith.constant 0 : i32
    %c0_i32_0 = arith.constant 0 : i32
    %c0_i32_1 = arith.constant 0 : i32
    return %c0_i32, %c0_i32_0 : i32, i32
  }
  func.func @transform_8(%arg0: i32) -> (i32, i32) {
    %c0_i32 = arith.constant 0 : i32
    %c0_i32_0 = arith.constant 0 : i32
    %c0_i32_1 = arith.constant 0 : i32
    return %c0_i32, %c0_i32_0 : i32, i32
  }
  func.func @transform_9(%arg0: i32) -> (i32, i32) {
    %c0_i32 = arith.constant 0 : i32
    %c0_i32_0 = arith.constant 0 : i32
    %c0_i32_1 = arith.constant 0 : i32
    return %c0_i32, %c0_i32_0 : i32, i32
  }
  func.func @transform_10(%arg0: i32) -> (i32, i32) {
    %c0_i32 = arith.constant 0 : i32
    %c0_i32_0 = arith.constant 0 : i32
    %c0_i32_1 = arith.constant 0 : i32
    return %c0_i32, %c0_i32_0 : i32, i32
  }
  func.func @transform_11(%arg0: i32) -> (i32, i32) {
    %c0_i32 = arith.constant 0 : i32
    %c0_i32_0 = arith.constant 0 : i32
    %c0_i32_1 = arith.constant 0 : i32
    return %c0_i32, %c0_i32_0 : i32, i32
  }
  func.func @transform_12(%arg0: i32) -> (i32, i32) {
    %c0_i32 = arith.constant 0 : i32
    %c0_i32_0 = arith.constant 0 : i32
    %c0_i32_1 = arith.constant 0 : i32
    return %c0_i32, %c0_i32_0 : i32, i32
  }
  func.func @transform_13(%arg0: i32) -> (i32, i32) {
    %c0_i32 = arith.constant 0 : i32
    %c0_i32_0 = arith.constant 0 : i32
    %c0_i32_1 = arith.constant 0 : i32
    return %c0_i32, %c0_i32_0 : i32, i32
  }
  func.func @transform_14(%arg0: i32) -> (i32, i32) {
    %c0_i32 = arith.constant 0 : i32
    %c0_i32_0 = arith.constant 0 : i32
    %c0_i32_1 = arith.constant 0 : i32
    return %c0_i32, %c0_i32_0 : i32, i32
  }
  func.func @transform_15(%arg0: i32) -> (i32, i32) {
    %c0_i32 = arith.constant 0 : i32
    %c0_i32_0 = arith.constant 0 : i32
    %c0_i32_1 = arith.constant 0 : i32
    return %c0_i32, %c0_i32_0 : i32, i32
  }
  func.func @transform_16(%arg0: i32) -> (i32, i32) {
    %c0_i32 = arith.constant 0 : i32
    %c0_i32_0 = arith.constant 0 : i32
    %c0_i32_1 = arith.constant 0 : i32
    return %c0_i32, %c0_i32_0 : i32, i32
  }
  func.func @transform_17(%arg0: i32) -> (i32, i32) {
    %c0_i32 = arith.constant 0 : i32
    %c0_i32_0 = arith.constant 0 : i32
    %c0_i32_1 = arith.constant 0 : i32
    return %c0_i32, %c0_i32_0 : i32, i32
  }
  func.func @transform_18(%arg0: i32) -> (i32, i32) {
    %c0_i32 = arith.constant 0 : i32
    %c0_i32_0 = arith.constant 0 : i32
    %c0_i32_1 = arith.constant 0 : i32
    return %c0_i32, %c0_i32_0 : i32, i32
  }
  func.func @transform_19(%arg0: i32) -> (i32, i32) {
    %c0_i32 = arith.constant 0 : i32
    %c0_i32_0 = arith.constant 0 : i32
    %c0_i32_1 = arith.constant 0 : i32
    return %c0_i32, %c0_i32_0 : i32, i32
  }
  func.func @transform_20(%arg0: i32) -> (i32, i32) {
    %c0_i32 = arith.constant 0 : i32
    %c0_i32_0 = arith.constant 0 : i32
    %c0_i32_1 = arith.constant 0 : i32
    return %c0_i32, %c0_i32_0 : i32, i32
  }
  func.func @transform_21(%arg0: i32) -> (i32, i32) {
    %c0_i32 = arith.constant 0 : i32
    %c0_i32_0 = arith.constant 0 : i32
    %c0_i32_1 = arith.constant 0 : i32
    return %c0_i32, %c0_i32_0 : i32, i32
  }
  func.func @transform_22(%arg0: i32) -> (i32, i32) {
    %c0_i32 = arith.constant 0 : i32
    %c0_i32_0 = arith.constant 0 : i32
    %c0_i32_1 = arith.constant 0 : i32
    return %c0_i32, %c0_i32_0 : i32, i32
  }
  func.func @transform_23(%arg0: i32) -> (i32, i32) {
    %c0_i32 = arith.constant 0 : i32
    %c0_i32_0 = arith.constant 0 : i32
    %c0_i32_1 = arith.constant 0 : i32
    return %c0_i32, %c0_i32_0 : i32, i32
  }
  func.func @transform_24(%arg0: i32) -> (i32, i32) {
    %c0_i32 = arith.constant 0 : i32
    %c0_i32_0 = arith.constant 0 : i32
    %c0_i32_1 = arith.constant 0 : i32
    return %c0_i32, %c0_i32_0 : i32, i32
  }
  func.func @transform_25(%arg0: i32) -> (i32, i32) {
    %c0_i32 = arith.constant 0 : i32
    %c0_i32_0 = arith.constant 0 : i32
    %c0_i32_1 = arith.constant 0 : i32
    return %c0_i32, %c0_i32_0 : i32, i32
  }
  func.func @transform_26(%arg0: i32) -> (i32, i32) {
    %c0_i32 = arith.constant 0 : i32
    %c0_i32_0 = arith.constant 0 : i32
    %c0_i32_1 = arith.constant 0 : i32
    return %c0_i32, %c0_i32_0 : i32, i32
  }
  func.func @transform_27(%arg0: i32) -> (i32, i32) {
    %c0_i32 = arith.constant 0 : i32
    %c0_i32_0 = arith.constant 0 : i32
    %c0_i32_1 = arith.constant 0 : i32
    return %c0_i32, %c0_i32_0 : i32, i32
  }
  func.func @transform_28(%arg0: i32) -> (i32, i32) {
    %c0_i32 = arith.constant 0 : i32
    %c0_i32_0 = arith.constant 0 : i32
    %c0_i32_1 = arith.constant 0 : i32
    return %c0_i32, %c0_i32_0 : i32, i32
  }
  func.func @transform_29(%arg0: i32) -> (i32, i32) {
    %c0_i32 = arith.constant 0 : i32
    %c0_i32_0 = arith.constant 0 : i32
    %c0_i32_1 = arith.constant 0 : i32
    return %c0_i32, %c0_i32_0 : i32, i32
  }
  func.func @transform_30(%arg0: i32) -> (i32, i32) {
    %c0_i32 = arith.constant 0 : i32
    %c0_i32_0 = arith.constant 0 : i32
    %c0_i32_1 = arith.constant 0 : i32
    return %c0_i32, %c0_i32_0 : i32, i32
  }
  func.func @transform_31(%arg0: i32) -> (i32, i32, i32) {
    %c0_i32 = arith.constant 0 : i32
    %c0_i32_0 = arith.constant 0 : i32
    %c0_i32_1 = arith.constant 0 : i32
    return %arg0, %c0_i32, %c0_i32_0 : i32, i32, i32
  }
}

</mosaic_0001>

<llo_original>
// kernel: time_series_transformer.1
$region0: #{time_series_transformer.1}
  #allocation0 [shape = 'u32[]', space=smem, size = 0x4, offset = 0x4, fixed_abs, tag = 'smem constant byte address 0x4 - core index']
  #allocation1 [shape = 'u32[144,128]{1,0:T(1,128)}', space=vmem, size = 0x12000, scoped, tag = 'internal scratch']
  %s0 = inlined_call_operand.smem [shape: u32[32], index: -1, kind: input, shape index: {}]
  %s1 = sld [smem:[%s0]]
  %s2 = scalar_lea.smem %s0, 1
  %s3 = sld [smem:[%s2]]
  %s4 = scalar_lea.smem %s0, 2
  %s5 = sld [smem:[%s4]]
  %s6 = scalar_lea.smem %s0, 3
  %s7 = sld [smem:[%s6]]
  %s8 = scalar_lea.smem %s0, 4
  %s9 = sld [smem:[%s8]]
  %s10 = scalar_lea.smem %s0, 5
  %s11 = sld [smem:[%s10]]
  %s12 = scalar_lea.smem %s0, 6
  %s13 = sld [smem:[%s12]]
  %s14 = scalar_lea.smem %s0, 7
  %s15 = sld [smem:[%s14]]
  %s16 = scalar_lea.smem %s0, 8
  %s17 = sld [smem:[%s16]]
  %s18 = scalar_lea.smem %s0, 9
  %s19 = sld [smem:[%s18]]
  %s20 = scalar_lea.smem %s0, 10
  %s21 = sld [smem:[%s20]]
  %s22 = scalar_lea.smem %s0, 11
  %s23 = sld [smem:[%s22]]
  %s24 = scalar_lea.smem %s0, 12
  %s25 = sld [smem:[%s24]]
  %s26 = scalar_lea.smem %s0, 13
  %s27 = sld [smem:[%s26]]
  %s28 = scalar_lea.smem %s0, 14
  %s29 = sld [smem:[%s28]]
  %s30 = scalar_lea.smem %s0, 15
  %s31 = sld [smem:[%s30]]
  %s32 = scalar_lea.smem %s0, 16
  %s33 = sld [smem:[%s32]]
  %s34 = scalar_lea.smem %s0, 17
  %s35 = sld [smem:[%s34]]
  %s36 = scalar_lea.smem %s0, 18
  %s37 = sld [smem:[%s36]]
  %s38 = scalar_lea.smem %s0, 19
  %s39 = sld [smem:[%s38]]
  %s40 = scalar_lea.smem %s0, 20
  %s41 = sld [smem:[%s40]]
  %s42 = scalar_lea.smem %s0, 21
  %s43 = sld [smem:[%s42]]
  %s44 = scalar_lea.smem %s0, 22
  %s45 = sld [smem:[%s44]]
  %s46 = scalar_lea.smem %s0, 23
  %s47 = sld [smem:[%s46]]
  %s48 = scalar_lea.smem %s0, 24
  %s49 = sld [smem:[%s48]]
  %s50 = scalar_lea.smem %s0, 25
  %s51 = sld [smem:[%s50]]
  %s52 = scalar_lea.smem %s0, 26
  %s53 = sld [smem:[%s52]]
  %s54 = scalar_lea.smem %s0, 27
  %s55 = sld [smem:[%s54]]
  %s56 = scalar_lea.smem %s0, 28
  %s57 = sld [smem:[%s56]]
  %s58 = scalar_lea.smem %s0, 29
  %s59 = sld [smem:[%s58]]
  %s60 = scalar_lea.smem %s0, 30
  %s61 = sld [smem:[%s60]]
  %s62 = scalar_lea.smem %s0, 31
  %s63 = sld [smem:[%s62]]
  %s64 = sld [smem:[#allocation0]]
  $region169: #{time_series_transformer.1} parent=0
    _
  %s66 = ssub.s32 1, %s64
  %s67 = scalar_select 0, %s66, %s64
  $region1: #{time_series_transformer.1} parent=0
    #allocation2 [shape = 'u8[4096]{0}', space=vmem, size = 0x1000, scoped, tag = 'input window, operand 1, single buffered']
    #allocation3 [shape = 's32[2]{0}', space=sflag, size = 0x8, scoped, tag = 'scoped memory for time_series_transformer.1']
    #allocation4 [shape = 'u8[1024]{0}', space=vmem, size = 0x400, scoped, tag = 'input window, operand 4, single buffered']
    #allocation5 [shape = 's32[1]{0}', space=sflag, size = 0x4, scoped, tag = 'scoped memory for time_series_transformer.1']
    #allocation6 [shape = 'u8[512]{0}', space=vmem, size = 0x400, scoped, tag = 'input window, operand 8, single buffered']
    %68 = vsyncpa [#allocation3], 0
    %69 = vsyncpa [#allocation5], 0
    loop: start=0, step=1, limit=4
    $region2: #{time_series_transformer.1} parent=1 // loop_pre_header
      _
    $region3: #{time_series_transformer.1} parent=1 // loop_header
      %s71 = sphi 0, %s75
      %p72 = scmp.ge.s32.totalorder %s71, 4
      %s81 = sphi 0, %s83
      %s84 = sphi 0, %s81
      %s85 = sphi 0, %s84
      %s101 = sphi 0, %s85
      %s105 = sphi 0, %s105
      %s107 = sphi 0, %s105
      %s108 = sphi 0, %s107
      %s122 = sphi 0, %s108
      %s128 = sphi 0, %s130
      %s131 = sphi 0, %s128
      %s132 = sphi 0, %s131
      %s148 = sphi 0, %s132
      %s152 = sphi 0, %s152
      %s154 = sphi 0, %s152
      %s155 = sphi 0, %s154
      %s169 = sphi 0, %s155
      %s173 = sphi 0, %s173
      %s175 = sphi 0, %s173
      %s176 = sphi 0, %s175
      %s190 = sphi 0, %s176
      %s194 = sphi 0, %s194
      %s196 = sphi 0, %s194
      %s197 = sphi 0, %s196
      %s211 = sphi 0, %s197
      %s215 = sphi 0, %s215
      %s217 = sphi 0, %s215
      %s218 = sphi 0, %s217
      %s232 = sphi 0, %s218
      %s236 = sphi 0, %s236
      %s238 = sphi 0, %s236
      %s239 = sphi 0, %s238
      %s253 = sphi 0, %s239
      %s257 = sphi 0, %s257
      %s259 = sphi 0, %s257
      %s260 = sphi 0, %s259
      %s274 = sphi 0, %s260
      %s278 = sphi 0, %s278
      %s280 = sphi 0, %s278
      %s281 = sphi 0, %s280
      %s295 = sphi 0, %s281
      %s299 = sphi 0, %s299
      %s301 = sphi 0, %s299
      %s302 = sphi 0, %s301
      %s316 = sphi 0, %s302
      %s320 = sphi 0, %s320
      %s322 = sphi 0, %s320
      %s323 = sphi 0, %s322
      %s337 = sphi 0, %s323
      %s341 = sphi 0, %s341
      %s343 = sphi 0, %s341
      %s344 = sphi 0, %s343
      %s358 = sphi 0, %s344
      %s362 = sphi 0, %s362
      %s364 = sphi 0, %s362
      %s365 = sphi 0, %s364
      %s379 = sphi 0, %s365
      %s383 = sphi 0, %s383
      %s385 = sphi 0, %s383
      %s386 = sphi 0, %s385
      %s400 = sphi 0, %s386
      %s404 = sphi 0, %s404
      %s406 = sphi 0, %s404
      %s407 = sphi 0, %s406
      %s421 = sphi 0, %s407
      %s425 = sphi 0, %s425
      %s427 = sphi 0, %s425
      %s428 = sphi 0, %s427
      %s442 = sphi 0, %s428
      %s446 = sphi 0, %s446
      %s448 = sphi 0, %s446
      %s449 = sphi 0, %s448
      %s463 = sphi 0, %s449
      %s467 = sphi 0, %s467
      %s469 = sphi 0, %s467
      %s470 = sphi 0, %s469
      %s484 = sphi 0, %s470
      %s488 = sphi 0, %s488
      %s490 = sphi 0, %s488
      %s491 = sphi 0, %s490
      %s505 = sphi 0, %s491
      %s509 = sphi 0, %s509
      %s511 = sphi 0, %s509
      %s512 = sphi 0, %s511
      %s526 = sphi 0, %s512
      %s530 = sphi 0, %s530
      %s532 = sphi 0, %s530
      %s533 = sphi 0, %s532
      %s547 = sphi 0, %s533
      %s551 = sphi 0, %s551
      %s553 = sphi 0, %s551
      %s554 = sphi 0, %s553
      %s568 = sphi 0, %s554
      %s572 = sphi 0, %s572
      %s574 = sphi 0, %s572
      %s575 = sphi 0, %s574
      %s589 = sphi 0, %s575
      %s593 = sphi 0, %s593
      %s595 = sphi 0, %s593
      %s596 = sphi 0, %s595
      %s610 = sphi 0, %s596
      %s614 = sphi 0, %s614
      %s616 = sphi 0, %s614
      %s617 = sphi 0, %s616
      %s631 = sphi 0, %s617
      %s635 = sphi 0, %s635
      %s637 = sphi 0, %s635
      %s638 = sphi 0, %s637
      %s652 = sphi 0, %s638
      %s656 = sphi 0, %s656
      %s658 = sphi 0, %s656
      %s659 = sphi 0, %s658
      %s673 = sphi 0, %s659
      %s677 = sphi 0, %s677
      %s679 = sphi 0, %s677
      %s680 = sphi 0, %s679
      %s694 = sphi 0, %s680
      %s698 = sphi 0, %s698
      %s700 = sphi 0, %s698
      %s701 = sphi 0, %s700
      %s715 = sphi 0, %s701
      %s719 = sphi 0, %s719
      %s721 = sphi 0, %s719
      %s722 = sphi 0, %s721
      %s736 = sphi 0, %s722
      %s742 = sphi 0, %s744
      %s745 = sphi 0, %s742
      %s746 = sphi 0, %s745
      %s762 = sphi 0, %s746
    $region4: #{time_series_transformer.1} parent=1 // loop_header_branch
      %74 = sbr.rel (%p72) target = $region8
    $region5: #{time_series_transformer.1} parent=1 // loop_body
      %s76 = ssub.s32 %s71, 1
      %s77 = ssub.s32 %s71, 2
      %s78 = sadd.s32 %s71, 1
      %s79 = ssub.s32 %s71, %s78
      %p80 = scmp.eq.s32.totalorder %s79, 0
      %s82 = sadd.s32 %s81, 1
      %s83 = scalar_select %p80, %s81, %s82
      %p86 = pneg %p80
      %p87 = scmp.eq.s32.totalorder %s71, 1
      %p88 = por %p86, %p87
      %p89 = scmp.ne.s32.totalorder %s81, %s84
      %p90 = scmp.eq.s32.totalorder %s71, 0
      %p91 = por %p89, %p90
      %p92 = scmp.ne.s32.totalorder %s81, %s84
      %p93 = scmp.eq.s32.totalorder %s76, 1
      %p94 = por %p92, %p93
      %p95 = scmp.ne.s32.totalorder %s84, %s85
      %p96 = scmp.eq.s32.totalorder %s76, 0
      %p97 = por %p95, %p96
      %p98 = scmp.ne.s32.totalorder %s84, %s85
      %p99 = scmp.eq.s32.totalorder %s77, 1
      %p100 = por %p98, %p99
      %p102 = scmp.ne.s32.totalorder %s85, %s101
      %p103 = scmp.eq.s32.totalorder %s77, 0
      %p104 = por %p102, %p103
      %s106 = sadd.s32 %s105, 1
      %p109 = scmp.eq.s32.totalorder %s71, 1
      %p110 = scmp.ne.s32.totalorder %s105, %s107
      %p111 = scmp.eq.s32.totalorder %s71, 0
      %p112 = por %p110, %p111
      %p113 = scmp.ne.s32.totalorder %s105, %s107
      %p114 = scmp.eq.s32.totalorder %s76, 1
      %p115 = por %p113, %p114
      %p116 = scmp.ne.s32.totalorder %s107, %s108
      %p117 = scmp.eq.s32.totalorder %s76, 0
      %p118 = por %p116, %p117
      %p119 = scmp.ne.s32.totalorder %s107, %s108
      %p120 = scmp.eq.s32.totalorder %s77, 1
      %p121 = por %p119, %p120
      %p123 = scmp.ne.s32.totalorder %s108, %s122
      %p124 = scmp.eq.s32.totalorder %s77, 0
      %p125 = por %p123, %p124
      %s126 = ssub.s32 %s71, %s78
      %p127 = scmp.eq.s32.totalorder %s126, 0
      %s129 = sadd.s32 %s128, 1
      %s130 = scalar_select %p127, %s128, %s129
      %p133 = pneg %p127
      %p134 = scmp.eq.s32.totalorder %s71, 1
      %p135 = por %p133, %p134
      %p136 = scmp.ne.s32.totalorder %s128, %s131
      %p137 = scmp.eq.s32.totalorder %s71, 0
      %p138 = por %p136, %p137
      %p139 = scmp.ne.s32.totalorder %s128, %s131
      %p140 = scmp.eq.s32.totalorder %s76, 1
      %p141 = por %p139, %p140
      %p142 = scmp.ne.s32.totalorder %s131, %s132
      %p143 = scmp.eq.s32.totalorder %s76, 0
      %p144 = por %p142, %p143
      %p145 = scmp.ne.s32.totalorder %s131, %s132
      %p146 = scmp.eq.s32.totalorder %s77, 1
      %p147 = por %p145, %p146
      %p149 = scmp.ne.s32.totalorder %s132, %s148
      %p150 = scmp.eq.s32.totalorder %s77, 0
      %p151 = por %p149, %p150
      %s153 = sadd.s32 %s152, 1
      %p156 = scmp.eq.s32.totalorder %s71, 1
      %p157 = scmp.ne.s32.totalorder %s152, %s154
      %p158 = scmp.eq.s32.totalorder %s71, 0
      %p159 = por %p157, %p158
      %p160 = scmp.ne.s32.totalorder %s152, %s154
      %p161 = scmp.eq.s32.totalorder %s76, 1
      %p162 = por %p160, %p161
      %p163 = scmp.ne.s32.totalorder %s154, %s155
      %p164 = scmp.eq.s32.totalorder %s76, 0
      %p165 = por %p163, %p164
      %p166 = scmp.ne.s32.totalorder %s154, %s155
      %p167 = scmp.eq.s32.totalorder %s77, 1
      %p168 = por %p166, %p167
      %p170 = scmp.ne.s32.totalorder %s155, %s169
      %p171 = scmp.eq.s32.totalorder %s77, 0
      %p172 = por %p170, %p171
      %s174 = sadd.s32 %s173, 1
      %p177 = scmp.eq.s32.totalorder %s71, 1
      %p178 = scmp.ne.s32.totalorder %s173, %s175
      %p179 = scmp.eq.s32.totalorder %s71, 0
      %p180 = por %p178, %p179
      %p181 = scmp.ne.s32.totalorder %s173, %s175
      %p182 = scmp.eq.s32.totalorder %s76, 1
      %p183 = por %p181, %p182
      %p184 = scmp.ne.s32.totalorder %s175, %s176
      %p185 = scmp.eq.s32.totalorder %s76, 0
      %p186 = por %p184, %p185
      %p187 = scmp.ne.s32.totalorder %s175, %s176
      %p188 = scmp.eq.s32.totalorder %s77, 1
      %p189 = por %p187, %p188
      %p191 = scmp.ne.s32.totalorder %s176, %s190
      %p192 = scmp.eq.s32.totalorder %s77, 0
      %p193 = por %p191, %p192
      %s195 = sadd.s32 %s194, 1
      %p198 = scmp.eq.s32.totalorder %s71, 1
      %p199 = scmp.ne.s32.totalorder %s194, %s196
      %p200 = scmp.eq.s32.totalorder %s71, 0
      %p201 = por %p199, %p200
      %p202 = scmp.ne.s32.totalorder %s194, %s196
      %p203 = scmp.eq.s32.totalorder %s76, 1
      %p204 = por %p202, %p203
      %p205 = scmp.ne.s32.totalorder %s196, %s197
      %p206 = scmp.eq.s32.totalorder %s76, 0
      %p207 = por %p205, %p206
      %p208 = scmp.ne.s32.totalorder %s196, %s197
      %p209 = scmp.eq.s32.totalorder %s77, 1
      %p210 = por %p208, %p209
      %p212 = scmp.ne.s32.totalorder %s197, %s211
      %p213 = scmp.eq.s32.totalorder %s77, 0
      %p214 = por %p212, %p213
      %s216 = sadd.s32 %s215, 1
      %p219 = scmp.eq.s32.totalorder %s71, 1
      %p220 = scmp.ne.s32.totalorder %s215, %s217
      %p221 = scmp.eq.s32.totalorder %s71, 0
      %p222 = por %p220, %p221
      %p223 = scmp.ne.s32.totalorder %s215, %s217
      %p224 = scmp.eq.s32.totalorder %s76, 1
      %p225 = por %p223, %p224
      %p226 = scmp.ne.s32.totalorder %s217, %s218
      %p227 = scmp.eq.s32.totalorder %s76, 0
      %p228 = por %p226, %p227
      %p229 = scmp.ne.s32.totalorder %s217, %s218
      %p230 = scmp.eq.s32.totalorder %s77, 1
      %p231 = por %p229, %p230
      %p233 = scmp.ne.s32.totalorder %s218, %s232
      %p234 = scmp.eq.s32.totalorder %s77, 0
      %p235 = por %p233, %p234
      %s237 = sadd.s32 %s236, 1
      %p240 = scmp.eq.s32.totalorder %s71, 1
      %p241 = scmp.ne.s32.totalorder %s236, %s238
      %p242 = scmp.eq.s32.totalorder %s71, 0
      %p243 = por %p241, %p242
      %p244 = scmp.ne.s32.totalorder %s236, %s238
      %p245 = scmp.eq.s32.totalorder %s76, 1
      %p246 = por %p244, %p245
      %p247 = scmp.ne.s32.totalorder %s238, %s239
      %p248 = scmp.eq.s32.totalorder %s76, 0
      %p249 = por %p247, %p248
      %p250 = scmp.ne.s32.totalorder %s238, %s239
      %p251 = scmp.eq.s32.totalorder %s77, 1
      %p252 = por %p250, %p251
      %p254 = scmp.ne.s32.totalorder %s239, %s253
      %p255 = scmp.eq.s32.totalorder %s77, 0
      %p256 = por %p254, %p255
      %s258 = sadd.s32 %s257, 1
      %p261 = scmp.eq.s32.totalorder %s71, 1
      %p262 = scmp.ne.s32.totalorder %s257, %s259
      %p263 = scmp.eq.s32.totalorder %s71, 0
      %p264 = por %p262, %p263
      %p265 = scmp.ne.s32.totalorder %s257, %s259
      %p266 = scmp.eq.s32.totalorder %s76, 1
      %p267 = por %p265, %p266
      %p268 = scmp.ne.s32.totalorder %s259, %s260
      %p269 = scmp.eq.s32.totalorder %s76, 0
      %p270 = por %p268, %p269
      %p271 = scmp.ne.s32.totalorder %s259, %s260
      %p272 = scmp.eq.s32.totalorder %s77, 1
      %p273 = por %p271, %p272
      %p275 = scmp.ne.s32.totalorder %s260, %s274
      %p276 = scmp.eq.s32.totalorder %s77, 0
      %p277 = por %p275, %p276
      %s279 = sadd.s32 %s278, 1
      %p282 = scmp.eq.s32.totalorder %s71, 1
      %p283 = scmp.ne.s32.totalorder %s278, %s280
      %p284 = scmp.eq.s32.totalorder %s71, 0
      %p285 = por %p283, %p284
      %p286 = scmp.ne.s32.totalorder %s278, %s280
      %p287 = scmp.eq.s32.totalorder %s76, 1
      %p288 = por %p286, %p287
      %p289 = scmp.ne.s32.totalorder %s280, %s281
      %p290 = scmp.eq.s32.totalorder %s76, 0
      %p291 = por %p289, %p290
      %p292 = scmp.ne.s32.totalorder %s280, %s281
      %p293 = scmp.eq.s32.totalorder %s77, 1
      %p294 = por %p292, %p293
      %p296 = scmp.ne.s32.totalorder %s281, %s295
      %p297 = scmp.eq.s32.totalorder %s77, 0
      %p298 = por %p296, %p297
      %s300 = sadd.s32 %s299, 1
      %p303 = scmp.eq.s32.totalorder %s71, 1
      %p304 = scmp.ne.s32.totalorder %s299, %s301
      %p305 = scmp.eq.s32.totalorder %s71, 0
      %p306 = por %p304, %p305
      %p307 = scmp.ne.s32.totalorder %s299, %s301
      %p308 = scmp.eq.s32.totalorder %s76, 1
      %p309 = por %p307, %p308
      %p310 = scmp.ne.s32.totalorder %s301, %s302
      %p311 = scmp.eq.s32.totalorder %s76, 0
      %p312 = por %p310, %p311
      %p313 = scmp.ne.s32.totalorder %s301, %s302
      %p314 = scmp.eq.s32.totalorder %s77, 1
      %p315 = por %p313, %p314
      %p317 = scmp.ne.s32.totalorder %s302, %s316
      %p318 = scmp.eq.s32.totalorder %s77, 0
      %p319 = por %p317, %p318
      %s321 = sadd.s32 %s320, 1
      %p324 = scmp.eq.s32.totalorder %s71, 1
      %p325 = scmp.ne.s32.totalorder %s320, %s322
      %p326 = scmp.eq.s32.totalorder %s71, 0
      %p327 = por %p325, %p326
      %p328 = scmp.ne.s32.totalorder %s320, %s322
      %p329 = scmp.eq.s32.totalorder %s76, 1
      %p330 = por %p328, %p329
      %p331 = scmp.ne.s32.totalorder %s322, %s323
      %p332 = scmp.eq.s32.totalorder %s76, 0
      %p333 = por %p331, %p332
      %p334 = scmp.ne.s32.totalorder %s322, %s323
      %p335 = scmp.eq.s32.totalorder %s77, 1
      %p336 = por %p334, %p335
      %p338 = scmp.ne.s32.totalorder %s323, %s337
      %p339 = scmp.eq.s32.totalorder %s77, 0
      %p340 = por %p338, %p339
      %s342 = sadd.s32 %s341, 1
      %p345 = scmp.eq.s32.totalorder %s71, 1
      %p346 = scmp.ne.s32.totalorder %s341, %s343
      %p347 = scmp.eq.s32.totalorder %s71, 0
      %p348 = por %p346, %p347
      %p349 = scmp.ne.s32.totalorder %s341, %s343
      %p350 = scmp.eq.s32.totalorder %s76, 1
      %p351 = por %p349, %p350
      %p352 = scmp.ne.s32.totalorder %s343, %s344
      %p353 = scmp.eq.s32.totalorder %s76, 0
      %p354 = por %p352, %p353
      %p355 = scmp.ne.s32.totalorder %s343, %s344
      %p356 = scmp.eq.s32.totalorder %s77, 1
      %p357 = por %p355, %p356
      %p359 = scmp.ne.s32.totalorder %s344, %s358
      %p360 = scmp.eq.s32.totalorder %s77, 0
      %p361 = por %p359, %p360
      %s363 = sadd.s32 %s362, 1
      %p366 = scmp.eq.s32.totalorder %s71, 1
      %p367 = scmp.ne.s32.totalorder %s362, %s364
      %p368 = scmp.eq.s32.totalorder %s71, 0
      %p369 = por %p367, %p368
      %p370 = scmp.ne.s32.totalorder %s362, %s364
      %p371 = scmp.eq.s32.totalorder %s76, 1
      %p372 = por %p370, %p371
      %p373 = scmp.ne.s32.totalorder %s364, %s365
      %p374 = scmp.eq.s32.totalorder %s76, 0
      %p375 = por %p373, %p374
      %p376 = scmp.ne.s32.totalorder %s364, %s365
      %p377 = scmp.eq.s32.totalorder %s77, 1
      %p378 = por %p376, %p377
      %p380 = scmp.ne.s32.totalorder %s365, %s379
      %p381 = scmp.eq.s32.totalorder %s77, 0
      %p382 = por %p380, %p381
      %s384 = sadd.s32 %s383, 1
      %p387 = scmp.eq.s32.totalorder %s71, 1
      %p388 = scmp.ne.s32.totalorder %s383, %s385
      %p389 = scmp.eq.s32.totalorder %s71, 0
      %p390 = por %p388, %p389
      %p391 = scmp.ne.s32.totalorder %s383, %s385
      %p392 = scmp.eq.s32.totalorder %s76, 1
      %p393 = por %p391, %p392
      %p394 = scmp.ne.s32.totalorder %s385, %s386
      %p395 = scmp.eq.s32.totalorder %s76, 0
      %p396 = por %p394, %p395
      %p397 = scmp.ne.s32.totalorder %s385, %s386
      %p398 = scmp.eq.s32.totalorder %s77, 1
      %p399 = por %p397, %p398
      %p401 = scmp.ne.s32.totalorder %s386, %s400
      %p402 = scmp.eq.s32.totalorder %s77, 0
      %p403 = por %p401, %p402
      %s405 = sadd.s32 %s404, 1
      %p408 = scmp.eq.s32.totalorder %s71, 1
      %p409 = scmp.ne.s32.totalorder %s404, %s406
      %p410 = scmp.eq.s32.totalorder %s71, 0
      %p411 = por %p409, %p410
      %p412 = scmp.ne.s32.totalorder %s404, %s406
      %p413 = scmp.eq.s32.totalorder %s76, 1
      %p414 = por %p412, %p413
      %p415 = scmp.ne.s32.totalorder %s406, %s407
      %p416 = scmp.eq.s32.totalorder %s76, 0
      %p417 = por %p415, %p416
      %p418 = scmp.ne.s32.totalorder %s406, %s407
      %p419 = scmp.eq.s32.totalorder %s77, 1
      %p420 = por %p418, %p419
      %p422 = scmp.ne.s32.totalorder %s407, %s421
      %p423 = scmp.eq.s32.totalorder %s77, 0
      %p424 = por %p422, %p423
      %s426 = sadd.s32 %s425, 1
      %p429 = scmp.eq.s32.totalorder %s71, 1
      %p430 = scmp.ne.s32.totalorder %s425, %s427
      %p431 = scmp.eq.s32.totalorder %s71, 0
      %p432 = por %p430, %p431
      %p433 = scmp.ne.s32.totalorder %s425, %s427
      %p434 = scmp.eq.s32.totalorder %s76, 1
      %p435 = por %p433, %p434
      %p436 = scmp.ne.s32.totalorder %s427, %s428
      %p437 = scmp.eq.s32.totalorder %s76, 0
      %p438 = por %p436, %p437
      %p439 = scmp.ne.s32.totalorder %s427, %s428
      %p440 = scmp.eq.s32.totalorder %s77, 1
      %p441 = por %p439, %p440
      %p443 = scmp.ne.s32.totalorder %s428, %s442
      %p444 = scmp.eq.s32.totalorder %s77, 0
      %p445 = por %p443, %p444
      %s447 = sadd.s32 %s446, 1
      %p450 = scmp.eq.s32.totalorder %s71, 1
      %p451 = scmp.ne.s32.totalorder %s446, %s448
      %p452 = scmp.eq.s32.totalorder %s71, 0
      %p453 = por %p451, %p452
      %p454 = scmp.ne.s32.totalorder %s446, %s448
      %p455 = scmp.eq.s32.totalorder %s76, 1
      %p456 = por %p454, %p455
      %p457 = scmp.ne.s32.totalorder %s448, %s449
      %p458 = scmp.eq.s32.totalorder %s76, 0
      %p459 = por %p457, %p458
      %p460 = scmp.ne.s32.totalorder %s448, %s449
      %p461 = scmp.eq.s32.totalorder %s77, 1
      %p462 = por %p460, %p461
      %p464 = scmp.ne.s32.totalorder %s449, %s463
      %p465 = scmp.eq.s32.totalorder %s77, 0
      %p466 = por %p464, %p465
      %s468 = sadd.s32 %s467, 1
      %p471 = scmp.eq.s32.totalorder %s71, 1
      %p472 = scmp.ne.s32.totalorder %s467, %s469
      %p473 = scmp.eq.s32.totalorder %s71, 0
      %p474 = por %p472, %p473
      %p475 = scmp.ne.s32.totalorder %s467, %s469
      %p476 = scmp.eq.s32.totalorder %s76, 1
      %p477 = por %p475, %p476
      %p478 = scmp.ne.s32.totalorder %s469, %s470
      %p479 = scmp.eq.s32.totalorder %s76, 0
      %p480 = por %p478, %p479
      %p481 = scmp.ne.s32.totalorder %s469, %s470
      %p482 = scmp.eq.s32.totalorder %s77, 1
      %p483 = por %p481, %p482
      %p485 = scmp.ne.s32.totalorder %s470, %s484
      %p486 = scmp.eq.s32.totalorder %s77, 0
      %p487 = por %p485, %p486
      %s489 = sadd.s32 %s488, 1
      %p492 = scmp.eq.s32.totalorder %s71, 1
      %p493 = scmp.ne.s32.totalorder %s488, %s490
      %p494 = scmp.eq.s32.totalorder %s71, 0
      %p495 = por %p493, %p494
      %p496 = scmp.ne.s32.totalorder %s488, %s490
      %p497 = scmp.eq.s32.totalorder %s76, 1
      %p498 = por %p496, %p497
      %p499 = scmp.ne.s32.totalorder %s490, %s491
      %p500 = scmp.eq.s32.totalorder %s76, 0
      %p501 = por %p499, %p500
      %p502 = scmp.ne.s32.totalorder %s490, %s491
      %p503 = scmp.eq.s32.totalorder %s77, 1
      %p504 = por %p502, %p503
      %p506 = scmp.ne.s32.totalorder %s491, %s505
      %p507 = scmp.eq.s32.totalorder %s77, 0
      %p508 = por %p506, %p507
      %s510 = sadd.s32 %s509, 1
      %p513 = scmp.eq.s32.totalorder %s71, 1
      %p514 = scmp.ne.s32.totalorder %s509, %s511
      %p515 = scmp.eq.s32.totalorder %s71, 0
      %p516 = por %p514, %p515
      %p517 = scmp.ne.s32.totalorder %s509, %s511
      %p518 = scmp.eq.s32.totalorder %s76, 1
      %p519 = por %p517, %p518
      %p520 = scmp.ne.s32.totalorder %s511, %s512
      %p521 = scmp.eq.s32.totalorder %s76, 0
      %p522 = por %p520, %p521
      %p523 = scmp.ne.s32.totalorder %s511, %s512
      %p524 = scmp.eq.s32.totalorder %s77, 1
      %p525 = por %p523, %p524
      %p527 = scmp.ne.s32.totalorder %s512, %s526
      %p528 = scmp.eq.s32.totalorder %s77, 0
      %p529 = por %p527, %p528
      %s531 = sadd.s32 %s530, 1
      %p534 = scmp.eq.s32.totalorder %s71, 1
      %p535 = scmp.ne.s32.totalorder %s530, %s532
      %p536 = scmp.eq.s32.totalorder %s71, 0
      %p537 = por %p535, %p536
      %p538 = scmp.ne.s32.totalorder %s530, %s532
      %p539 = scmp.eq.s32.totalorder %s76, 1
      %p540 = por %p538, %p539
      %p541 = scmp.ne.s32.totalorder %s532, %s533
      %p542 = scmp.eq.s32.totalorder %s76, 0
      %p543 = por %p541, %p542
      %p544 = scmp.ne.s32.totalorder %s532, %s533
      %p545 = scmp.eq.s32.totalorder %s77, 1
      %p546 = por %p544, %p545
      %p548 = scmp.ne.s32.totalorder %s533, %s547
      %p549 = scmp.eq.s32.totalorder %s77, 0
      %p550 = por %p548, %p549
      %s552 = sadd.s32 %s551, 1
      %p555 = scmp.eq.s32.totalorder %s71, 1
      %p556 = scmp.ne.s32.totalorder %s551, %s553
      %p557 = scmp.eq.s32.totalorder %s71, 0
      %p558 = por %p556, %p557
      %p559 = scmp.ne.s32.totalorder %s551, %s553
      %p560 = scmp.eq.s32.totalorder %s76, 1
      %p561 = por %p559, %p560
      %p562 = scmp.ne.s32.totalorder %s553, %s554
      %p563 = scmp.eq.s32.totalorder %s76, 0
      %p564 = por %p562, %p563
      %p565 = scmp.ne.s32.totalorder %s553, %s554
      %p566 = scmp.eq.s32.totalorder %s77, 1
      %p567 = por %p565, %p566
      %p569 = scmp.ne.s32.totalorder %s554, %s568
      %p570 = scmp.eq.s32.totalorder %s77, 0
      %p571 = por %p569, %p570
      %s573 = sadd.s32 %s572, 1
      %p576 = scmp.eq.s32.totalorder %s71, 1
      %p577 = scmp.ne.s32.totalorder %s572, %s574
      %p578 = scmp.eq.s32.totalorder %s71, 0
      %p579 = por %p577, %p578
      %p580 = scmp.ne.s32.totalorder %s572, %s574
      %p581 = scmp.eq.s32.totalorder %s76, 1
      %p582 = por %p580, %p581
      %p583 = scmp.ne.s32.totalorder %s574, %s575
      %p584 = scmp.eq.s32.totalorder %s76, 0
      %p585 = por %p583, %p584
      %p586 = scmp.ne.s32.totalorder %s574, %s575
      %p587 = scmp.eq.s32.totalorder %s77, 1
      %p588 = por %p586, %p587
      %p590 = scmp.ne.s32.totalorder %s575, %s589
      %p591 = scmp.eq.s32.totalorder %s77, 0
      %p592 = por %p590, %p591
      %s594 = sadd.s32 %s593, 1
      %p597 = scmp.eq.s32.totalorder %s71, 1
      %p598 = scmp.ne.s32.totalorder %s593, %s595
      %p599 = scmp.eq.s32.totalorder %s71, 0
      %p600 = por %p598, %p599
      %p601 = scmp.ne.s32.totalorder %s593, %s595
      %p602 = scmp.eq.s32.totalorder %s76, 1
      %p603 = por %p601, %p602
      %p604 = scmp.ne.s32.totalorder %s595, %s596
      %p605 = scmp.eq.s32.totalorder %s76, 0
      %p606 = por %p604, %p605
      %p607 = scmp.ne.s32.totalorder %s595, %s596
      %p608 = scmp.eq.s32.totalorder %s77, 1
      %p609 = por %p607, %p608
      %p611 = scmp.ne.s32.totalorder %s596, %s610
      %p612 = scmp.eq.s32.totalorder %s77, 0
      %p613 = por %p611, %p612
      %s615 = sadd.s32 %s614, 1
      %p618 = scmp.eq.s32.totalorder %s71, 1
      %p619 = scmp.ne.s32.totalorder %s614, %s616
      %p620 = scmp.eq.s32.totalorder %s71, 0
      %p621 = por %p619, %p620
      %p622 = scmp.ne.s32.totalorder %s614, %s616
      %p623 = scmp.eq.s32.totalorder %s76, 1
      %p624 = por %p622, %p623
      %p625 = scmp.ne.s32.totalorder %s616, %s617
      %p626 = scmp.eq.s32.totalorder %s76, 0
      %p627 = por %p625, %p626
      %p628 = scmp.ne.s32.totalorder %s616, %s617
      %p629 = scmp.eq.s32.totalorder %s77, 1
      %p630 = por %p628, %p629
      %p632 = scmp.ne.s32.totalorder %s617, %s631
      %p633 = scmp.eq.s32.totalorder %s77, 0
      %p634 = por %p632, %p633
      %s636 = sadd.s32 %s635, 1
      %p639 = scmp.eq.s32.totalorder %s71, 1
      %p640 = scmp.ne.s32.totalorder %s635, %s637
      %p641 = scmp.eq.s32.totalorder %s71, 0
      %p642 = por %p640, %p641
      %p643 = scmp.ne.s32.totalorder %s635, %s637
      %p644 = scmp.eq.s32.totalorder %s76, 1
      %p645 = por %p643, %p644
      %p646 = scmp.ne.s32.totalorder %s637, %s638
      %p647 = scmp.eq.s32.totalorder %s76, 0
      %p648 = por %p646, %p647
      %p649 = scmp.ne.s32.totalorder %s637, %s638
      %p650 = scmp.eq.s32.totalorder %s77, 1
      %p651 = por %p649, %p650
      %p653 = scmp.ne.s32.totalorder %s638, %s652
      %p654 = scmp.eq.s32.totalorder %s77, 0
      %p655 = por %p653, %p654
      %s657 = sadd.s32 %s656, 1
      %p660 = scmp.eq.s32.totalorder %s71, 1
      %p661 = scmp.ne.s32.totalorder %s656, %s658
      %p662 = scmp.eq.s32.totalorder %s71, 0
      %p663 = por %p661, %p662
      %p664 = scmp.ne.s32.totalorder %s656, %s658
      %p665 = scmp.eq.s32.totalorder %s76, 1
      %p666 = por %p664, %p665
      %p667 = scmp.ne.s32.totalorder %s658, %s659
      %p668 = scmp.eq.s32.totalorder %s76, 0
      %p669 = por %p667, %p668
      %p670 = scmp.ne.s32.totalorder %s658, %s659
      %p671 = scmp.eq.s32.totalorder %s77, 1
      %p672 = por %p670, %p671
      %p674 = scmp.ne.s32.totalorder %s659, %s673
      %p675 = scmp.eq.s32.totalorder %s77, 0
      %p676 = por %p674, %p675
      %s678 = sadd.s32 %s677, 1
      %p681 = scmp.eq.s32.totalorder %s71, 1
      %p682 = scmp.ne.s32.totalorder %s677, %s679
      %p683 = scmp.eq.s32.totalorder %s71, 0
      %p684 = por %p682, %p683
      %p685 = scmp.ne.s32.totalorder %s677, %s679
      %p686 = scmp.eq.s32.totalorder %s76, 1
      %p687 = por %p685, %p686
      %p688 = scmp.ne.s32.totalorder %s679, %s680
      %p689 = scmp.eq.s32.totalorder %s76, 0
      %p690 = por %p688, %p689
      %p691 = scmp.ne.s32.totalorder %s679, %s680
      %p692 = scmp.eq.s32.totalorder %s77, 1
      %p693 = por %p691, %p692
      %p695 = scmp.ne.s32.totalorder %s680, %s694
      %p696 = scmp.eq.s32.totalorder %s77, 0
      %p697 = por %p695, %p696
      %s699 = sadd.s32 %s698, 1
      %p702 = scmp.eq.s32.totalorder %s71, 1
      %p703 = scmp.ne.s32.totalorder %s698, %s700
      %p704 = scmp.eq.s32.totalorder %s71, 0
      %p705 = por %p703, %p704
      %p706 = scmp.ne.s32.totalorder %s698, %s700
      %p707 = scmp.eq.s32.totalorder %s76, 1
      %p708 = por %p706, %p707
      %p709 = scmp.ne.s32.totalorder %s700, %s701
      %p710 = scmp.eq.s32.totalorder %s76, 0
      %p711 = por %p709, %p710
      %p712 = scmp.ne.s32.totalorder %s700, %s701
      %p713 = scmp.eq.s32.totalorder %s77, 1
      %p714 = por %p712, %p713
      %p716 = scmp.ne.s32.totalorder %s701, %s715
      %p717 = scmp.eq.s32.totalorder %s77, 0
      %p718 = por %p716, %p717
      %s720 = sadd.s32 %s719, 1
      %p723 = scmp.eq.s32.totalorder %s71, 1
      %p724 = scmp.ne.s32.totalorder %s719, %s721
      %p725 = scmp.eq.s32.totalorder %s71, 0
      %p726 = por %p724, %p725
      %p727 = scmp.ne.s32.totalorder %s719, %s721
      %p728 = scmp.eq.s32.totalorder %s76, 1
      %p729 = por %p727, %p728
      %p730 = scmp.ne.s32.totalorder %s721, %s722
      %p731 = scmp.eq.s32.totalorder %s76, 0
      %p732 = por %p730, %p731
      %p733 = scmp.ne.s32.totalorder %s721, %s722
      %p734 = scmp.eq.s32.totalorder %s77, 1
      %p735 = por %p733, %p734
      %p737 = scmp.ne.s32.totalorder %s722, %s736
      %p738 = scmp.eq.s32.totalorder %s77, 0
      %p739 = por %p737, %p738
      %s740 = ssub.s32 %s71, %s78
      %p741 = scmp.eq.s32.totalorder %s740, 0
      %s743 = sadd.s32 %s742, 1
      %s744 = scalar_select %p741, %s742, %s743
      %p747 = pneg %p741
      %p748 = scmp.eq.s32.totalorder %s71, 1
      %p749 = por %p747, %p748
      %p750 = scmp.ne.s32.totalorder %s742, %s745
      %p751 = scmp.eq.s32.totalorder %s71, 0
      %p752 = por %p750, %p751
      %p753 = scmp.ne.s32.totalorder %s742, %s745
      %p754 = scmp.eq.s32.totalorder %s76, 1
      %p755 = por %p753, %p754
      %p756 = scmp.ne.s32.totalorder %s745, %s746
      %p757 = scmp.eq.s32.totalorder %s76, 0
      %p758 = por %p756, %p757
      %p759 = scmp.ne.s32.totalorder %s745, %s746
      %p760 = scmp.eq.s32.totalorder %s77, 1
      %p761 = por %p759, %p760
      %p763 = scmp.ne.s32.totalorder %s746, %s762
      %p764 = scmp.eq.s32.totalorder %s77, 0
      %p765 = por %p763, %p764
      %p766 = scmp.le.s32.totalorder 1, %s71
      %p767 = scmp.lt.s32.totalorder %s71, 3
      %p768 = pnand %p766, %p767
      %p769 = pneg %p768
      // Predicated region
      $region9: #{time_series_transformer.1} parent=5 // pred_check
        _
      $region10: #{time_series_transformer.1} parent=5 // pred_check_branch
        %771 = sbr.rel (%p768) target = $region12
      $region11: #{time_series_transformer.1} parent=5 // pred_region
        %s772 = ssub.s32 %s71, 1
        // Predicated region
        $region13: #{time_series_transformer.1} parent=11 // pred_check
          %p773 = pneg %p118
        $region14: #{time_series_transformer.1} parent=11 // pred_check_branch
          %775 = sbr.rel (%p773) target = $region16
        $region15: #{time_series_transformer.1} parent=11 // pred_region
          %s777 = ssub.s32 128, 128
          %778 = vsyncadd [#allocation3], %s777
          %s780 = sshll.u32 [#allocation2], 4
          %s781 = int_to_ptr.vmem [resolvable:$true] %s780
          %783 = dma.hbm_to_vmem [thread:$0]  %s3, 128, %s781, [#allocation3]
        $region16: #{time_series_transformer.1} parent=11 // pred_fallthru
          _
        // Predicated region
        $region17: #{time_series_transformer.1} parent=11 // pred_check
          %p784 = pneg %p165
        $region18: #{time_series_transformer.1} parent=11 // pred_check_branch
          %786 = sbr.rel (%p784) target = $region20
        $region19: #{time_series_transformer.1} parent=11 // pred_region
          _
        $region20: #{time_series_transformer.1} parent=11 // pred_fallthru
          _
        // Predicated region
        $region21: #{time_series_transformer.1} parent=11 // pred_check
          %p787 = pneg %p186
        $region22: #{time_series_transformer.1} parent=11 // pred_check_branch
          %789 = sbr.rel (%p787) target = $region24
        $region23: #{time_series_transformer.1} parent=11 // pred_region
          %s791 = ssub.s32 32, 32
          %792 = vsyncadd [#allocation5], %s791
          %s794 = sshll.u32 [#allocation4], 4
          %s795 = int_to_ptr.vmem [resolvable:$true] %s794
          %797 = dma.hbm_to_vmem [thread:$0]  %s9, 32, %s795, [#allocation5]
        $region24: #{time_series_transformer.1} parent=11 // pred_fallthru
          _
        // Predicated region
        $region25: #{time_series_transformer.1} parent=11 // pred_check
          %p798 = pneg %p207
        $region26: #{time_series_transformer.1} parent=11 // pred_check_branch
          %800 = sbr.rel (%p798) target = $region28
        $region27: #{time_series_transformer.1} parent=11 // pred_region
          _
        $region28: #{time_series_transformer.1} parent=11 // pred_fallthru
          _
        // Predicated region
        $region29: #{time_series_transformer.1} parent=11 // pred_check
          %p801 = pneg %p228
        $region30: #{time_series_transformer.1} parent=11 // pred_check_branch
          %803 = sbr.rel (%p801) target = $region32
        $region31: #{time_series_transformer.1} parent=11 // pred_region
          _
        $region32: #{time_series_transformer.1} parent=11 // pred_fallthru
          _
        // Predicated region
        $region33: #{time_series_transformer.1} parent=11 // pred_check
          %p804 = pneg %p249
        $region34: #{time_series_transformer.1} parent=11 // pred_check_branch
          %806 = sbr.rel (%p804) target = $region36
        $region35: #{time_series_transformer.1} parent=11 // pred_region
          _
        $region36: #{time_series_transformer.1} parent=11 // pred_fallthru
          _
        // Predicated region
        $region37: #{time_series_transformer.1} parent=11 // pred_check
          %p807 = pneg %p270
        $region38: #{time_series_transformer.1} parent=11 // pred_check_branch
          %809 = sbr.rel (%p807) target = $region40
        $region39: #{time_series_transformer.1} parent=11 // pred_region
          %s811 = ssub.s32 16, 16
          %812 = vsyncadd [#allocation5], %s811
          %s814 = sshll.u32 [#allocation6], 4
          %s815 = int_to_ptr.vmem [resolvable:$true] %s814
          %817 = dma.hbm_to_vmem [thread:$0]  %s17, 16, %s815, [#allocation5]
        $region40: #{time_series_transformer.1} parent=11 // pred_fallthru
          _
        // Predicated region
        $region41: #{time_series_transformer.1} parent=11 // pred_check
          %p818 = pneg %p291
        $region42: #{time_series_transformer.1} parent=11 // pred_check_branch
          %820 = sbr.rel (%p818) target = $region44
        $region43: #{time_series_transformer.1} parent=11 // pred_region
          _
        $region44: #{time_series_transformer.1} parent=11 // pred_fallthru
          _
        // Predicated region
        $region45: #{time_series_transformer.1} parent=11 // pred_check
          %p821 = pneg %p312
        $region46: #{time_series_transformer.1} parent=11 // pred_check_branch
          %823 = sbr.rel (%p821) target = $region48
        $region47: #{time_series_transformer.1} parent=11 // pred_region
          _
        $region48: #{time_series_transformer.1} parent=11 // pred_fallthru
          _
        // Predicated region
        $region49: #{time_series_transformer.1} parent=11 // pred_check
          %p824 = pneg %p333
        $region50: #{time_series_transformer.1} parent=11 // pred_check_branch
          %826 = sbr.rel (%p824) target = $region52
        $region51: #{time_series_transformer.1} parent=11 // pred_region
          _
        $region52: #{time_series_transformer.1} parent=11 // pred_fallthru
          _
        // Predicated region
        $region53: #{time_series_transformer.1} parent=11 // pred_check
          %p827 = pneg %p354
        $region54: #{time_series_transformer.1} parent=11 // pred_check_branch
          %829 = sbr.rel (%p827) target = $region56
        $region55: #{time_series_transformer.1} parent=11 // pred_region
          _
        $region56: #{time_series_transformer.1} parent=11 // pred_fallthru
          _
        // Predicated region
        $region57: #{time_series_transformer.1} parent=11 // pred_check
          %p830 = pneg %p375
        $region58: #{time_series_transformer.1} parent=11 // pred_check_branch
          %832 = sbr.rel (%p830) target = $region60
        $region59: #{time_series_transformer.1} parent=11 // pred_region
          _
        $region60: #{time_series_transformer.1} parent=11 // pred_fallthru
          _
        // Predicated region
        $region61: #{time_series_transformer.1} parent=11 // pred_check
          %p833 = pneg %p396
        $region62: #{time_series_transformer.1} parent=11 // pred_check_branch
          %835 = sbr.rel (%p833) target = $region64
        $region63: #{time_series_transformer.1} parent=11 // pred_region
          _
        $region64: #{time_series_transformer.1} parent=11 // pred_fallthru
          _
        // Predicated region
        $region65: #{time_series_transformer.1} parent=11 // pred_check
          %p836 = pneg %p417
        $region66: #{time_series_transformer.1} parent=11 // pred_check_branch
          %838 = sbr.rel (%p836) target = $region68
        $region67: #{time_series_transformer.1} parent=11 // pred_region
          _
        $region68: #{time_series_transformer.1} parent=11 // pred_fallthru
          _
        // Predicated region
        $region69: #{time_series_transformer.1} parent=11 // pred_check
          %p839 = pneg %p438
        $region70: #{time_series_transformer.1} parent=11 // pred_check_branch
          %841 = sbr.rel (%p839) target = $region72
        $region71: #{time_series_transformer.1} parent=11 // pred_region
          _
        $region72: #{time_series_transformer.1} parent=11 // pred_fallthru
          _
        // Predicated region
        $region73: #{time_series_transformer.1} parent=11 // pred_check
          %p842 = pneg %p459
        $region74: #{time_series_transformer.1} parent=11 // pred_check_branch
          %844 = sbr.rel (%p842) target = $region76
        $region75: #{time_series_transformer.1} parent=11 // pred_region
          _
        $region76: #{time_series_transformer.1} parent=11 // pred_fallthru
          _
        // Predicated region
        $region77: #{time_series_transformer.1} parent=11 // pred_check
          %p845 = pneg %p480
        $region78: #{time_series_transformer.1} parent=11 // pred_check_branch
          %847 = sbr.rel (%p845) target = $region80
        $region79: #{time_series_transformer.1} parent=11 // pred_region
          _
        $region80: #{time_series_transformer.1} parent=11 // pred_fallthru
          _
        // Predicated region
        $region81: #{time_series_transformer.1} parent=11 // pred_check
          %p848 = pneg %p501
        $region82: #{time_series_transformer.1} parent=11 // pred_check_branch
          %850 = sbr.rel (%p848) target = $region84
        $region83: #{time_series_transformer.1} parent=11 // pred_region
          _
        $region84: #{time_series_transformer.1} parent=11 // pred_fallthru
          _
        // Predicated region
        $region85: #{time_series_transformer.1} parent=11 // pred_check
          %p851 = pneg %p522
        $region86: #{time_series_transformer.1} parent=11 // pred_check_branch
          %853 = sbr.rel (%p851) target = $region88
        $region87: #{time_series_transformer.1} parent=11 // pred_region
          _
        $region88: #{time_series_transformer.1} parent=11 // pred_fallthru
          _
        // Predicated region
        $region89: #{time_series_transformer.1} parent=11 // pred_check
          %p854 = pneg %p543
        $region90: #{time_series_transformer.1} parent=11 // pred_check_branch
          %856 = sbr.rel (%p854) target = $region92
        $region91: #{time_series_transformer.1} parent=11 // pred_region
          _
        $region92: #{time_series_transformer.1} parent=11 // pred_fallthru
          _
        // Predicated region
        $region93: #{time_series_transformer.1} parent=11 // pred_check
          %p857 = pneg %p564
        $region94: #{time_series_transformer.1} parent=11 // pred_check_branch
          %859 = sbr.rel (%p857) target = $region96
        $region95: #{time_series_transformer.1} parent=11 // pred_region
          _
        $region96: #{time_series_transformer.1} parent=11 // pred_fallthru
          _
        // Predicated region
        $region97: #{time_series_transformer.1} parent=11 // pred_check
          %p860 = pneg %p585
        $region98: #{time_series_transformer.1} parent=11 // pred_check_branch
          %862 = sbr.rel (%p860) target = $region100
        $region99: #{time_series_transformer.1} parent=11 // pred_region
          _
        $region100: #{time_series_transformer.1} parent=11 // pred_fallthru
          _
        // Predicated region
        $region101: #{time_series_transformer.1} parent=11 // pred_check
          %p863 = pneg %p606
        $region102: #{time_series_transformer.1} parent=11 // pred_check_branch
          %865 = sbr.rel (%p863) target = $region104
        $region103: #{time_series_transformer.1} parent=11 // pred_region
          _
        $region104: #{time_series_transformer.1} parent=11 // pred_fallthru
          _
        // Predicated region
        $region105: #{time_series_transformer.1} parent=11 // pred_check
          %p866 = pneg %p627
        $region106: #{time_series_transformer.1} parent=11 // pred_check_branch
          %868 = sbr.rel (%p866) target = $region108
        $region107: #{time_series_transformer.1} parent=11 // pred_region
          _
        $region108: #{time_series_transformer.1} parent=11 // pred_fallthru
          _
        // Predicated region
        $region109: #{time_series_transformer.1} parent=11 // pred_check
          %p869 = pneg %p648
        $region110: #{time_series_transformer.1} parent=11 // pred_check_branch
          %871 = sbr.rel (%p869) target = $region112
        $region111: #{time_series_transformer.1} parent=11 // pred_region
          _
        $region112: #{time_series_transformer.1} parent=11 // pred_fallthru
          _
        // Predicated region
        $region113: #{time_series_transformer.1} parent=11 // pred_check
          %p872 = pneg %p669
        $region114: #{time_series_transformer.1} parent=11 // pred_check_branch
          %874 = sbr.rel (%p872) target = $region116
        $region115: #{time_series_transformer.1} parent=11 // pred_region
          _
        $region116: #{time_series_transformer.1} parent=11 // pred_fallthru
          _
        // Predicated region
        $region117: #{time_series_transformer.1} parent=11 // pred_check
          %p875 = pneg %p690
        $region118: #{time_series_transformer.1} parent=11 // pred_check_branch
          %877 = sbr.rel (%p875) target = $region120
        $region119: #{time_series_transformer.1} parent=11 // pred_region
          _
        $region120: #{time_series_transformer.1} parent=11 // pred_fallthru
          _
        // Predicated region
        $region121: #{time_series_transformer.1} parent=11 // pred_check
          %p878 = pneg %p711
        $region122: #{time_series_transformer.1} parent=11 // pred_check_branch
          %880 = sbr.rel (%p878) target = $region124
        $region123: #{time_series_transformer.1} parent=11 // pred_region
          _
        $region124: #{time_series_transformer.1} parent=11 // pred_fallthru
          _
        // Predicated region
        $region125: #{time_series_transformer.1} parent=11 // pred_check
          %p881 = pneg %p732
        $region126: #{time_series_transformer.1} parent=11 // pred_check_branch
          %883 = sbr.rel (%p881) target = $region128
        $region127: #{time_series_transformer.1} parent=11 // pred_region
          _
        $region128: #{time_series_transformer.1} parent=11 // pred_fallthru
          _
      $region12: #{time_series_transformer.1} parent=5 // pred_fallthru
        _
      %p884 = scmp.lt.s32.totalorder %s71, 2
      // Predicated region
      $region129: #{time_series_transformer.1} parent=5 // pred_check
        %p885 = pneg %p884
      $region130: #{time_series_transformer.1} parent=5 // pred_check_branch
        %887 = sbr.rel (%p885) target = $region132
      $region131: #{time_series_transformer.1} parent=5 // pred_region
        // Predicated region
        $region133: #{time_series_transformer.1} parent=131 // pred_check
          %p888 = pneg %p91
        $region134: #{time_series_transformer.1} parent=131 // pred_check_branch
          %890 = sbr.rel (%p888) target = $region136
        $region135: #{time_series_transformer.1} parent=131 // pred_region
          %s891 = smul.u32 2, %s71
          %p892 = scmp.lt.s32.totalorder %s891, 3
          %s893 = scalar_select %p892, %s891, 3
          %s894 = smul.addr %s893, 8
          %s895 = scalar_lea.vmem %s1, %s894
          %s896 = smul.u32 2, %s71
        $region136: #{time_series_transformer.1} parent=131 // pred_fallthru
          _
        // Predicated region
        $region137: #{time_series_transformer.1} parent=131 // pred_check
          %p897 = pneg %p138
        $region138: #{time_series_transformer.1} parent=131 // pred_check_branch
          %899 = sbr.rel (%p897) target = $region140
        $region139: #{time_series_transformer.1} parent=131 // pred_region
          %s900 = smul.u32 2, %s71
          %p901 = scmp.lt.s32.totalorder %s900, 3
          %s902 = scalar_select %p901, %s900, 3
          %s903 = scalar_lea.vmem %s5, %s902
          %s904 = smul.u32 2, %s71
        $region140: #{time_series_transformer.1} parent=131 // pred_fallthru
          _
      $region132: #{time_series_transformer.1} parent=5 // pred_fallthru
        _
      %p905 = scmp.le.s32.totalorder 1, %s71
      %p906 = scmp.lt.s32.totalorder %s71, 3
      %p907 = pnand %p905, %p906
      %p908 = pneg %p907
      // Predicated region
      $region141: #{time_series_transformer.1} parent=5 // pred_check
        _
      $region142: #{time_series_transformer.1} parent=5 // pred_check_branch
        %910 = sbr.rel (%p907) target = $region144
      $region143: #{time_series_transformer.1} parent=5 // pred_region
        %s911 = ssub.s32 %s71, 1
        // Predicated region
        $region145: #{time_series_transformer.1} parent=143 // pred_check
          %p912 = pneg %p118
        $region146: #{time_series_transformer.1} parent=143 // pred_check_branch
          %914 = sbr.rel (%p912) target = $region148
        $region147: #{time_series_transformer.1} parent=143 // pred_region
          %915 = dma.done [#allocation3], 128
        $region148: #{time_series_transformer.1} parent=143 // pred_fallthru
          _
        // Predicated region
        $region149: #{time_series_transformer.1} parent=143 // pred_check
          %p916 = pneg %p186
        $region150: #{time_series_transformer.1} parent=143 // pred_check_branch
          %918 = sbr.rel (%p916) target = $region152
        $region151: #{time_series_transformer.1} parent=143 // pred_region
          %919 = dma.done [#allocation5], 32
        $region152: #{time_series_transformer.1} parent=143 // pred_fallthru
          _
        // Predicated region
        $region153: #{time_series_transformer.1} parent=143 // pred_check
          %p920 = pneg %p270
        $region154: #{time_series_transformer.1} parent=143 // pred_check_branch
          %922 = sbr.rel (%p920) target = $region156
        $region155: #{time_series_transformer.1} parent=143 // pred_region
          %923 = dma.done [#allocation5], 16
        $region156: #{time_series_transformer.1} parent=143 // pred_fallthru
          _
        %s924 = smul.u32 2, %s76
        %p925 = scmp.lt.s32.totalorder %s924, 3
        %s926 = scalar_select %p925, %s924, 3
        %s927 = smul.addr %s926, 8
        %s928 = scalar_lea.vmem %s1, %s927
        %p929 = pneg %p97
        %p930 = pneg %p94
        %p931 = pneg %p118
        %p932 = pneg %p115
        %s933 = smul.u32 2, %s76
        %p934 = scmp.lt.s32.totalorder %s933, 3
        %s935 = scalar_select %p934, %s933, 3
        %s936 = scalar_lea.vmem %s5, %s935
        %p937 = pneg %p144
        %p938 = pneg %p141
        %p939 = pneg %p165
        %p940 = pneg %p162
        %p941 = pneg %p186
        %p942 = pneg %p183
        %p943 = pneg %p207
        %p944 = pneg %p204
        %p945 = pneg %p228
        %p946 = pneg %p225
        %p947 = pneg %p249
        %p948 = pneg %p246
        %p949 = pneg %p270
        %p950 = pneg %p267
        %p951 = pneg %p291
        %p952 = pneg %p288
        %p953 = pneg %p312
        %p954 = pneg %p309
        %p955 = pneg %p333
        %p956 = pneg %p330
        %p957 = pneg %p354
        %p958 = pneg %p351
        %p959 = pneg %p375
        %p960 = pneg %p372
        %p961 = pneg %p396
        %p962 = pneg %p393
        %p963 = pneg %p417
        %p964 = pneg %p414
        %p965 = pneg %p438
        %p966 = pneg %p435
        %p967 = pneg %p459
        %p968 = pneg %p456
        %p969 = pneg %p480
        %p970 = pneg %p477
        %p971 = pneg %p501
        %p972 = pneg %p498
        %p973 = pneg %p522
        %p974 = pneg %p519
        %p975 = pneg %p543
        %p976 = pneg %p540
        %p977 = pneg %p564
        %p978 = pneg %p561
        %p979 = pneg %p585
        %p980 = pneg %p582
        %p981 = pneg %p606
        %p982 = pneg %p603
        %p983 = pneg %p627
        %p984 = pneg %p624
        %p985 = pneg %p648
        %p986 = pneg %p645
        %p987 = pneg %p669
        %p988 = pneg %p666
        %p989 = pneg %p690
        %p990 = pneg %p687
        %p991 = pneg %p711
        %p992 = pneg %p708
        %p993 = pneg %p732
        %p994 = pneg %p729
        %p995 = pneg %p758
        %p996 = pneg %p755
        %s997 = smul.u32 2, %s76
        %p998 = scmp.lt.s32.totalorder %s997, 3
        %s999 = scalar_select %p998, %s997, 3
        %s1000 = smul.addr %s999, 8
        %s1001 = scalar_lea.vmem %s63, %s1000
        %s1002 = smul.u32 2, %s76
        %p1003 = scmp.lt.s32.totalorder %s1002, 3
        %s1004 = scalar_select %p1003, %s1002, 3
        %s1005 = smul.addr %s1004, 8
        %s1006 = scalar_lea.vmem %s1, %s1005
        %s1007 = smul.u32 2, %s76
        %s1008 = smul.u32 2, %s76
        %p1009 = scmp.lt.s32.totalorder %s1008, 3
        %s1010 = scalar_select %p1009, %s1008, 3
        %s1011 = scalar_lea.vmem %s5, %s1010
        %s1012 = smul.u32 2, %s76
        %s1013 = smul.u32 2, %s76
        %p1014 = scmp.lt.s32.totalorder %s1013, 3
        %s1015 = scalar_select %p1014, %s1013, 3
        %s1016 = smul.addr %s1015, 8
        %s1017 = scalar_lea.vmem %s63, %s1016
        %s1018 = smul.u32 2, %s76
        %v1020 = vld [vmem:[#allocation2] sm:$0xff]
        %v1021 = vld [vmem:[%s1011] sm:$0x1]
        %v1022 = vld [vmem:[%s1011 + $0x1] sm:$0x1]
        %v1025 = vlaneseq
        %v1026 = vshrl.u32 %v1025, 7
        %v1027 = vsub.s32 0, %v1026
        %v1028 = vrot.slane %v1021, %v1027
        %v1029 = vlaneseq
        %v1030 = vshrl.u32 %v1029, 7
        %v1031 = vsub.s32 0, %v1030
        %v1032 = vrot.slane %v1022, %v1031
        %v1035 = vadd.f32 %v1020, %v1028
        %v1036 = vadd.f32 %v1020, %v1032
        %v1037 = vld [vmem:[%s1006] sm:$0xff]
        %v1038 = vld [vmem:[%s1006 + $0x8] sm:$0xff]
        %v1039 = vpack.c.bf16 %v1038, %v1037
        %v1040 = vld [vmem:[#allocation4] sm:$0x3]
        %v1041 = vld [vmem:[%s7] sm:$0xff]
        %v1042 = vld [vmem:[%s7 + $0x8] sm:$0xff]
        %vm1043 = vcmask 31744
        %v1045 = vsel %vm1043, %v1039, 0
        %vm1047 = vcmask 1041408
        %v1049 = vsel %vm1047, %v1040, 0
        %1051 = vmatprep.subr.bf16.mxu0 0
        %1052 = vmatpush1.bf16.msra.mxu0 0
        %1053 = vmatprep.subr.bf16.mxu0 0
        %1054 = vmatpush1.bf16.msra.mxu0 0
        %1055 = vmatprep.subr.bf16.mxu0 0
        %1056 = vmatpush1.bf16.msra.mxu0 0
        %1057 = vmatprep.subr.bf16.mxu0 0
        %1058 = vmatpush1.bf16.msra.mxu0 0
        %1059 = vmatprep.subr.bf16.mxu0 0
        %1060 = vmatpush1.bf16.msra.mxu0 0
        %1061 = vmatprep.subr.bf16.mxu0 0
        %1062 = vmatpush1.bf16.msra.mxu0 0
        %1063 = vmatprep.subr.bf16.mxu0 0
        %1064 = vmatpush1.bf16.msra.mxu0 0
        %1065 = vmatprep.subr.bf16.mxu0 0
        %1066 = vmatpush1.bf16.msra.mxu0 %v1049
        %1067 = vmatprep.subr.bf16.mxu0 0
        %1068 = vmatpush2.bf16.msra.mxu0 0
        %1069 = vmatprep.subr.bf16.mxu0 0
        %1070 = vmatpush2.bf16.msra.mxu0 0
        %1071 = vmatprep.subr.bf16.mxu0 0
        %1072 = vmatpush2.bf16.msra.mxu0 0
        %1073 = vmatprep.subr.bf16.mxu0 0
        %1074 = vmatpush2.bf16.msra.mxu0 0
        %1075 = vmatprep.subr.bf16.mxu0 0
        %1076 = vmatpush2.bf16.msra.mxu0 0
        %1077 = vmatprep.subr.bf16.mxu0 0
        %1078 = vmatpush2.bf16.msra.mxu0 0
        %1079 = vmatprep.subr.bf16.mxu0 0
        %1080 = vmatpush2.bf16.msra.mxu0 0
        %1081 = vmatprep.subr.bf16.mxu0 0
        %1082 = vmatpush2.bf16.msra.mxu0 0
        %1083 = vmatprep.mubr.bf16.mxu0 0
        %1084 = vmatmul.mubr.bf16.gmra.mxu0 %v1045
        %v1085 = vpop.f32.mrf.mxu0
        %v1086 = vadd.f32 %v1041, %v1085
        %v1087 = vpop.f32.mrf.mxu0
        %v1088 = vpop.f32.mrf.mxu0
        %v1089 = vadd.f32 %v1042, %v1088
        %v1090 = vpop.f32.mrf.mxu0
        %1091 = vdwg.mxu0
        %v1092 = vpack.c.bf16 %v1089, %v1086
        %v1093 = vld [vmem:[%s15] sm:$0xf]
        %v1094 = vld [vmem:[%s15 + $0x4] sm:$0xf]
        %v1095 = vld [vmem:[%s15 + $0x8] sm:$0xf]
        %v1096 = vld [vmem:[%s15 + $0xc] sm:$0xf]
        %v1097 = vld [vmem:[#allocation6] sm:$0x1]
        %v1099 = vlaneseq
        %v1100 = vshrl.u32 %v1099, 7
        %v1101 = vsub.s32 0, %v1100
        %v1102 = vrot.slane %v1097, %v1101
        %v1108 = vunpack.c.l.b16 %v1093
        %v1109 = vunpack.c.l.b16 %v1094
        %v1110 = vunpack.c.l.b16 %v1095
        %v1111 = vunpack.c.l.b16 %v1096
        %v1112 = vpack.c.b16 %v1109, %v1108
        %v1113 = vpack.c.b16 %v1111, %v1110
        %vm1116 = vcmask 261120
        %v1118 = vsel %vm1116, %v1092, 0
        %1120 = vmatprep.subr.bf16.mxu0 0
        %1121 = vmatpush1.bf16.msra.mxu0 0
        %1122 = vmatprep.subr.bf16.mxu0 0
        %1123 = vmatpush1.bf16.msra.mxu0 0
        %1124 = vmatprep.subr.bf16.mxu0 0
        %1125 = vmatpush1.bf16.msra.mxu0 0
        %1126 = vmatprep.subr.bf16.mxu0 0
        %1127 = vmatpush1.bf16.msra.mxu0 0
        %1128 = vmatprep.subr.bf16.mxu0 0
        %1129 = vmatpush1.bf16.msra.mxu0 0
        %1130 = vmatprep.subr.bf16.mxu0 0
        %1131 = vmatpush1.bf16.msra.mxu0 0
        %1132 = vmatprep.subr.bf16.mxu0 0
        %1133 = vmatpush1.bf16.msra.mxu0 %v1113
        %1134 = vmatprep.subr.bf16.mxu0 0
        %1135 = vmatpush1.bf16.msra.mxu0 %v1112
        %1136 = vmatprep.subr.bf16.mxu0 0
        %1137 = vmatpush2.bf16.msra.mxu0 0
        %1138 = vmatprep.subr.bf16.mxu0 0
        %1139 = vmatpush2.bf16.msra.mxu0 0
        %1140 = vmatprep.subr.bf16.mxu0 0
        %1141 = vmatpush2.bf16.msra.mxu0 0
        %1142 = vmatprep.subr.bf16.mxu0 0
        %1143 = vmatpush2.bf16.msra.mxu0 0
        %1144 = vmatprep.subr.bf16.mxu0 0
        %1145 = vmatpush2.bf16.msra.mxu0 0
        %1146 = vmatprep.subr.bf16.mxu0 0
        %1147 = vmatpush2.bf16.msra.mxu0 0
        %1148 = vmatprep.subr.bf16.mxu0 0
        %1149 = vmatpush2.bf16.msra.mxu0 0
        %1150 = vmatprep.subr.bf16.mxu0 0
        %1151 = vmatpush2.bf16.msra.mxu0 0
        %1152 = vmatprep.mubr.bf16.mxu0 0
        %1153 = vmatmul.mubr.bf16.gmra.mxu0 %v1118
        %v1154 = vpop.f32.mrf.mxu0
        %v1155 = vadd.f32 %v1102, %v1154
        %v1156 = vpop.f32.mrf.mxu0
        %v1157 = vpop.f32.mrf.mxu0
        %v1158 = vadd.f32 %v1102, %v1157
        %v1159 = vpop.f32.mrf.mxu0
        %1160 = vdwg.mxu0
        %v1161 = vpack.c.bf16 %v1158, %v1155
        %v1162 = vld [vmem:[%s19] sm:$0xf]
        %v1163 = vld [vmem:[%s19 + $0x4] sm:$0xf]
        %v1164 = vld [vmem:[%s19 + $0x8] sm:$0xf]
        %v1165 = vld [vmem:[%s19 + $0xc] sm:$0xf]
        %v1167 = vunpack.c.l.b16 %v1161
        %v1168 = vunpack.c.h.b16 %v1161
        %v1169 = vpack.c.b16 %v1167, %v1167
        %v1170 = vpack.c.b16 %v1168, %v1168
        %1171 = vrot.lane.b32.xlu0 %v1169, 96
        %v1172 = vpop.permute.xlu0 %1171
        %vm1173 = vcmask 64512
        %v1175 = vsel %vm1173, %v1169, 0
        %v1178 = vsel %vm1173, %v1172, 0
        %1180 = vmatprep.subr.bf16.mxu0 0
        %1181 = vmatpush1.bf16.xpose.msra.mxu0 0
        %1182 = vmatprep.subr.bf16.mxu0 0
        %1183 = vmatpush1.bf16.xpose.msra.mxu0 0
        %1184 = vmatprep.subr.bf16.mxu0 0
        %1185 = vmatpush1.bf16.xpose.msra.mxu0 0
        %1186 = vmatprep.subr.bf16.mxu0 0
        %1187 = vmatpush1.bf16.xpose.msra.mxu0 0
        %1188 = vmatprep.subr.bf16.mxu0 0
        %1189 = vmatpush1.bf16.xpose.msra.mxu0 0
        %1190 = vmatprep.subr.bf16.mxu0 0
        %1191 = vmatpush1.bf16.xpose.msra.mxu0 0
        %1192 = vmatprep.subr.bf16.mxu0 0
        %1193 = vmatpush1.bf16.xpose.msra.mxu0 0
        %1194 = vmatprep.subr.bf16.mxu0 0
        %1195 = vmatpush1.bf16.xpose.msra.mxu0 %v1178
        %1196 = vmatprep.subr.bf16.mxu0 0
        %1197 = vmatpush2.bf16.xpose.msra.mxu0 0
        %1198 = vmatprep.subr.bf16.mxu0 0
        %1199 = vmatpush2.bf16.xpose.msra.mxu0 0
        %1200 = vmatprep.subr.bf16.mxu0 0
        %1201 = vmatpush2.bf16.xpose.msra.mxu0 0
        %1202 = vmatprep.subr.bf16.mxu0 0
        %1203 = vmatpush2.bf16.xpose.msra.mxu0 0
        %1204 = vmatprep.subr.bf16.mxu0 0
        %1205 = vmatpush2.bf16.xpose.msra.mxu0 0
        %1206 = vmatprep.subr.bf16.mxu0 0
        %1207 = vmatpush2.bf16.xpose.msra.mxu0 0
        %1208 = vmatprep.subr.bf16.mxu0 0
        %1209 = vmatpush2.bf16.xpose.msra.mxu0 0
        %1210 = vmatprep.subr.bf16.mxu0 0
        %1211 = vmatpush2.bf16.xpose.msra.mxu0 0
        %1212 = vmatprep.mubr.bf16.mxu0 0
        %1213 = vmatmul.mubr.bf16.gmra.mxu0 %v1175
        %v1214 = vpop.f32.mrf.mxu0
        %v1215 = vadd.f32 %v1035, %v1214
        %v1216 = vpop.f32.mrf.mxu0
        %v1217 = vpop.f32.mrf.mxu0
        %v1218 = vpop.f32.mrf.mxu0
        %1219 = vdwg.mxu0
        %1220 = vrot.lane.b32.xlu0 %v1170, 96
        %v1221 = vpop.permute.xlu0 %1220
        %v1223 = vsel %vm1173, %v1170, 0
        %v1226 = vsel %vm1173, %v1221, 0
        %1228 = vmatprep.subr.bf16.mxu0 0
        %1229 = vmatpush1.bf16.xpose.msra.mxu0 0
        %1230 = vmatprep.subr.bf16.mxu0 0
        %1231 = vmatpush1.bf16.xpose.msra.mxu0 0
        %1232 = vmatprep.subr.bf16.mxu0 0
        %1233 = vmatpush1.bf16.xpose.msra.mxu0 0
        %1234 = vmatprep.subr.bf16.mxu0 0
        %1235 = vmatpush1.bf16.xpose.msra.mxu0 0
        %1236 = vmatprep.subr.bf16.mxu0 0
        %1237 = vmatpush1.bf16.xpose.msra.mxu0 0
        %1238 = vmatprep.subr.bf16.mxu0 0
        %1239 = vmatpush1.bf16.xpose.msra.mxu0 0
        %1240 = vmatprep.subr.bf16.mxu0 0
        %1241 = vmatpush1.bf16.xpose.msra.mxu0 0
        %1242 = vmatprep.subr.bf16.mxu0 0
        %1243 = vmatpush1.bf16.xpose.msra.mxu0 %v1226
        %1244 = vmatprep.subr.bf16.mxu0 0
        %1245 = vmatpush2.bf16.xpose.msra.mxu0 0
        %1246 = vmatprep.subr.bf16.mxu0 0
        %1247 = vmatpush2.bf16.xpose.msra.mxu0 0
        %1248 = vmatprep.subr.bf16.mxu0 0
        %1249 = vmatpush2.bf16.xpose.msra.mxu0 0
        %1250 = vmatprep.subr.bf16.mxu0 0
        %1251 = vmatpush2.bf16.xpose.msra.mxu0 0
        %1252 = vmatprep.subr.bf16.mxu0 0
        %1253 = vmatpush2.bf16.xpose.msra.mxu0 0
        %1254 = vmatprep.subr.bf16.mxu0 0
        %1255 = vmatpush2.bf16.xpose.msra.mxu0 0
        %1256 = vmatprep.subr.bf16.mxu0 0
        %1257 = vmatpush2.bf16.xpose.msra.mxu0 0
        %1258 = vmatprep.subr.bf16.mxu0 0
        %1259 = vmatpush2.bf16.xpose.msra.mxu0 0
        %1260 = vmatprep.mubr.bf16.mxu0 0
        %1261 = vmatmul.mubr.bf16.gmra.mxu0 %v1223
        %v1262 = vpop.f32.mrf.mxu0
        %v1263 = vadd.f32 %v1036, %v1262
        %v1264 = vpop.f32.mrf.mxu0
        %v1265 = vpop.f32.mrf.mxu0
        %v1266 = vpop.f32.mrf.mxu0
        %1267 = vdwg.mxu0
        %v1268 = vsel %vm1173, %v1215, -inf
        %1269 = vmax.xlane.f32.xlu0 %v1268
        %v1270 = vpop.xlane.xlu0 %1269
        %v1271 = vsel %vm1173, %v1263, -inf
        %1272 = vmax.xlane.f32.xlu0 %v1271
        %v1273 = vpop.xlane.xlu0 %1272
        %v1274 = vsub.f32 %v1215, %v1270
        %v1275 = vsub.f32 %v1263, %v1273
        %v1276 = vmul.f32 %v1274, 1.442695
        %v1277 = vpow.pop %v1276
        %v1278 = vmul.f32 %v1275, 1.442695
        %v1279 = vpow.pop %v1278
        %v1280 = vsel %vm1173, %v1277, 0.0
        %1281 = vadd.xlane.f32.xlu0 %v1280
        %v1282 = vpop.xlane.xlu0 %1281
        %v1283 = vsel %vm1173, %v1279, 0.0
        %1284 = vadd.xlane.f32.xlu0 %v1283
        %v1285 = vpop.xlane.xlu0 %1284
        %v1286 = vrcp.pop %v1282
        %v1287 = vrcp.pop %v1285
        %v1288 = vmul.f32 %v1277, %v1286
        %v1289 = vmul.f32 %v1279, %v1287
        %v1290 = vpack.c.bf16 %v1288, %v1288
        %v1291 = vpack.c.bf16 %v1289, %v1289
        %1292 = vrot.lane.b32.xlu0 %v1169, 64
        %v1293 = vpop.permute.xlu0 %1292
        %v1295 = vsel %vm1173, %v1290, 0
        %vm1297 = vcmask 1043456
        %v1299 = vsel %vm1297, %v1293, 0
        %1301 = vmatprep.subr.bf16.mxu0 0
        %1302 = vmatpush1.bf16.msra.mxu0 0
        %1303 = vmatprep.subr.bf16.mxu0 0
        %1304 = vmatpush1.bf16.msra.mxu0 0
        %1305 = vmatprep.subr.bf16.mxu0 0
        %1306 = vmatpush1.bf16.msra.mxu0 0
        %1307 = vmatprep.subr.bf16.mxu0 0
        %1308 = vmatpush1.bf16.msra.mxu0 0
        %1309 = vmatprep.subr.bf16.mxu0 0
        %1310 = vmatpush1.bf16.msra.mxu0 0
        %1311 = vmatprep.subr.bf16.mxu0 0
        %1312 = vmatpush1.bf16.msra.mxu0 0
        %1313 = vmatprep.subr.bf16.mxu0 0
        %1314 = vmatpush1.bf16.msra.mxu0 0
        %1315 = vmatprep.subr.bf16.mxu0 0
        %1316 = vmatpush1.bf16.msra.mxu0 %v1299
        %1317 = vmatprep.subr.bf16.mxu0 0
        %1318 = vmatpush2.bf16.msra.mxu0 0
        %1319 = vmatprep.subr.bf16.mxu0 0
        %1320 = vmatpush2.bf16.msra.mxu0 0
        %1321 = vmatprep.subr.bf16.mxu0 0
        %1322 = vmatpush2.bf16.msra.mxu0 0
        %1323 = vmatprep.subr.bf16.mxu0 0
        %1324 = vmatpush2.bf16.msra.mxu0 0
        %1325 = vmatprep.subr.bf16.mxu0 0
        %1326 = vmatpush2.bf16.msra.mxu0 0
        %1327 = vmatprep.subr.bf16.mxu0 0
        %1328 = vmatpush2.bf16.msra.mxu0 0
        %1329 = vmatprep.subr.bf16.mxu0 0
        %1330 = vmatpush2.bf16.msra.mxu0 0
        %1331 = vmatprep.subr.bf16.mxu0 0
        %1332 = vmatpush2.bf16.msra.mxu0 0
        %1333 = vmatprep.mubr.bf16.mxu0 0
        %1334 = vmatmul.mubr.bf16.gmra.mxu0 %v1295
        %v1335 = vpop.f32.mrf.mxu0
        %v1336 = vadd.f32 0.0, %v1335
        %v1337 = vpop.f32.mrf.mxu0
        %v1338 = vpop.f32.mrf.mxu0
        %v1339 = vpop.f32.mrf.mxu0
        %1340 = vdwg.mxu0
        %1341 = vrot.lane.b32.xlu0 %v1170, 64
        %v1342 = vpop.permute.xlu0 %1341
        %v1344 = vsel %vm1173, %v1291, 0
        %v1347 = vsel %vm1297, %v1342, 0
        %1349 = vmatprep.subr.bf16.mxu0 0
        %1350 = vmatpush1.bf16.msra.mxu0 0
        %1351 = vmatprep.subr.bf16.mxu0 0
        %1352 = vmatpush1.bf16.msra.mxu0 0
        %1353 = vmatprep.subr.bf16.mxu0 0
        %1354 = vmatpush1.bf16.msra.mxu0 0
        %1355 = vmatprep.subr.bf16.mxu0 0
        %1356 = vmatpush1.bf16.msra.mxu0 0
        %1357 = vmatprep.subr.bf16.mxu0 0
        %1358 = vmatpush1.bf16.msra.mxu0 0
        %1359 = vmatprep.subr.bf16.mxu0 0
        %1360 = vmatpush1.bf16.msra.mxu0 0
        %1361 = vmatprep.subr.bf16.mxu0 0
        %1362 = vmatpush1.bf16.msra.mxu0 0
        %1363 = vmatprep.subr.bf16.mxu0 0
        %1364 = vmatpush1.bf16.msra.mxu0 %v1347
        %1365 = vmatprep.subr.bf16.mxu0 0
        %1366 = vmatpush2.bf16.msra.mxu0 0
        %1367 = vmatprep.subr.bf16.mxu0 0
        %1368 = vmatpush2.bf16.msra.mxu0 0
        %1369 = vmatprep.subr.bf16.mxu0 0
        %1370 = vmatpush2.bf16.msra.mxu0 0
        %1371 = vmatprep.subr.bf16.mxu0 0
        %1372 = vmatpush2.bf16.msra.mxu0 0
        %1373 = vmatprep.subr.bf16.mxu0 0
        %1374 = vmatpush2.bf16.msra.mxu0 0
        %1375 = vmatprep.subr.bf16.mxu0 0
        %1376 = vmatpush2.bf16.msra.mxu0 0
        %1377 = vmatprep.subr.bf16.mxu0 0
        %1378 = vmatpush2.bf16.msra.mxu0 0
        %1379 = vmatprep.subr.bf16.mxu0 0
        %1380 = vmatpush2.bf16.msra.mxu0 0
        %1381 = vmatprep.mubr.bf16.mxu0 0
        %1382 = vmatmul.mubr.bf16.gmra.mxu0 %v1344
        %v1383 = vpop.f32.mrf.mxu0
        %v1384 = vadd.f32 0.0, %v1383
        %v1385 = vpop.f32.mrf.mxu0
        %v1386 = vpop.f32.mrf.mxu0
        %v1387 = vpop.f32.mrf.mxu0
        %1388 = vdwg.mxu0
        %v1389 = vpack.c.bf16 %v1384, %v1336
        %1390 = vrot.lane.b32.xlu0 %v1169, 120
        %v1391 = vpop.permute.xlu0 %1390
        %1392 = vrot.lane.b32.xlu0 %v1169, 88
        %v1393 = vpop.permute.xlu0 %1392
        %v1395 = vsel %vm1173, %v1391, 0
        %v1398 = vsel %vm1173, %v1393, 0
        %1400 = vmatprep.subr.bf16.mxu0 0
        %1401 = vmatpush1.bf16.xpose.msra.mxu0 0
        %1402 = vmatprep.subr.bf16.mxu0 0
        %1403 = vmatpush1.bf16.xpose.msra.mxu0 0
        %1404 = vmatprep.subr.bf16.mxu0 0
        %1405 = vmatpush1.bf16.xpose.msra.mxu0 0
        %1406 = vmatprep.subr.bf16.mxu0 0
        %1407 = vmatpush1.bf16.xpose.msra.mxu0 0
        %1408 = vmatprep.subr.bf16.mxu0 0
        %1409 = vmatpush1.bf16.xpose.msra.mxu0 0
        %1410 = vmatprep.subr.bf16.mxu0 0
        %1411 = vmatpush1.bf16.xpose.msra.mxu0 0
        %1412 = vmatprep.subr.bf16.mxu0 0
        %1413 = vmatpush1.bf16.xpose.msra.mxu0 0
        %1414 = vmatprep.subr.bf16.mxu0 0
        %1415 = vmatpush1.bf16.xpose.msra.mxu0 %v1398
        %1416 = vmatprep.subr.bf16.mxu0 0
        %1417 = vmatpush2.bf16.xpose.msra.mxu0 0
        %1418 = vmatprep.subr.bf16.mxu0 0
        %1419 = vmatpush2.bf16.xpose.msra.mxu0 0
        %1420 = vmatprep.subr.bf16.mxu0 0
        %1421 = vmatpush2.bf16.xpose.msra.mxu0 0
        %1422 = vmatprep.subr.bf16.mxu0 0
        %1423 = vmatpush2.bf16.xpose.msra.mxu0 0
        %1424 = vmatprep.subr.bf16.mxu0 0
        %1425 = vmatpush2.bf16.xpose.msra.mxu0 0
        %1426 = vmatprep.subr.bf16.mxu0 0
        %1427 = vmatpush2.bf16.xpose.msra.mxu0 0
        %1428 = vmatprep.subr.bf16.mxu0 0
        %1429 = vmatpush2.bf16.xpose.msra.mxu0 0
        %1430 = vmatprep.subr.bf16.mxu0 0
        %1431 = vmatpush2.bf16.xpose.msra.mxu0 0
        %1432 = vmatprep.mubr.bf16.mxu0 0
        %1433 = vmatmul.mubr.bf16.gmra.mxu0 %v1395
        %v1434 = vpop.f32.mrf.mxu0
        %v1435 = vadd.f32 %v1035, %v1434
        %v1436 = vpop.f32.mrf.mxu0
        %v1437 = vpop.f32.mrf.mxu0
        %v1438 = vpop.f32.mrf.mxu0
        %1439 = vdwg.mxu0
        %1440 = vrot.lane.b32.xlu0 %v1170, 120
        %v1441 = vpop.permute.xlu0 %1440
        %1442 = vrot.lane.b32.xlu0 %v1170, 88
        %v1443 = vpop.permute.xlu0 %1442
        %v1445 = vsel %vm1173, %v1441, 0
        %v1448 = vsel %vm1173, %v1443, 0
        %1450 = vmatprep.subr.bf16.mxu0 0
        %1451 = vmatpush1.bf16.xpose.msra.mxu0 0
        %1452 = vmatprep.subr.bf16.mxu0 0
        %1453 = vmatpush1.bf16.xpose.msra.mxu0 0
        %1454 = vmatprep.subr.bf16.mxu0 0
        %1455 = vmatpush1.bf16.xpose.msra.mxu0 0
        %1456 = vmatprep.subr.bf16.mxu0 0
        %1457 = vmatpush1.bf16.xpose.msra.mxu0 0
        %1458 = vmatprep.subr.bf16.mxu0 0
        %1459 = vmatpush1.bf16.xpose.msra.mxu0 0
        %1460 = vmatprep.subr.bf16.mxu0 0
        %1461 = vmatpush1.bf16.xpose.msra.mxu0 0
        %1462 = vmatprep.subr.bf16.mxu0 0
        %1463 = vmatpush1.bf16.xpose.msra.mxu0 0
        %1464 = vmatprep.subr.bf16.mxu0 0
        %1465 = vmatpush1.bf16.xpose.msra.mxu0 %v1448
        %1466 = vmatprep.subr.bf16.mxu0 0
        %1467 = vmatpush2.bf16.xpose.msra.mxu0 0
        %1468 = vmatprep.subr.bf16.mxu0 0
        %1469 = vmatpush2.bf16.xpose.msra.mxu0 0
        %1470 = vmatprep.subr.bf16.mxu0 0
        %1471 = vmatpush2.bf16.xpose.msra.mxu0 0
        %1472 = vmatprep.subr.bf16.mxu0 0
        %1473 = vmatpush2.bf16.xpose.msra.mxu0 0
        %1474 = vmatprep.subr.bf16.mxu0 0
        %1475 = vmatpush2.bf16.xpose.msra.mxu0 0
        %1476 = vmatprep.subr.bf16.mxu0 0
        %1477 = vmatpush2.bf16.xpose.msra.mxu0 0
        %1478 = vmatprep.subr.bf16.mxu0 0
        %1479 = vmatpush2.bf16.xpose.msra.mxu0 0
        %1480 = vmatprep.subr.bf16.mxu0 0
        %1481 = vmatpush2.bf16.xpose.msra.mxu0 0
        %1482 = vmatprep.mubr.bf16.mxu0 0
        %1483 = vmatmul.mubr.bf16.gmra.mxu0 %v1445
        %v1484 = vpop.f32.mrf.mxu0
        %v1485 = vadd.f32 %v1036, %v1484
        %v1486 = vpop.f32.mrf.mxu0
        %v1487 = vpop.f32.mrf.mxu0
        %v1488 = vpop.f32.mrf.mxu0
        %1489 = vdwg.mxu0
        %v1490 = vsel %vm1173, %v1435, -inf
        %1491 = vmax.xlane.f32.xlu0 %v1490
        %v1492 = vpop.xlane.xlu0 %1491
        %v1493 = vsel %vm1173, %v1485, -inf
        %1494 = vmax.xlane.f32.xlu0 %v1493
        %v1495 = vpop.xlane.xlu0 %1494
        %v1496 = vsub.f32 %v1435, %v1492
        %v1497 = vsub.f32 %v1485, %v1495
        %v1498 = vmul.f32 %v1496, 1.442695
        %v1499 = vpow.pop %v1498
        %v1500 = vmul.f32 %v1497, 1.442695
        %v1501 = vpow.pop %v1500
        %v1502 = vsel %vm1173, %v1499, 0.0
        %1503 = vadd.xlane.f32.xlu0 %v1502
        %v1504 = vpop.xlane.xlu0 %1503
        %v1505 = vsel %vm1173, %v1501, 0.0
        %1506 = vadd.xlane.f32.xlu0 %v1505
        %v1507 = vpop.xlane.xlu0 %1506
        %v1508 = vrcp.pop %v1504
        %v1509 = vrcp.pop %v1507
        %v1510 = vmul.f32 %v1499, %v1508
        %v1511 = vmul.f32 %v1501, %v1509
        %v1512 = vpack.c.bf16 %v1510, %v1510
        %v1513 = vpack.c.bf16 %v1511, %v1511
        %1514 = vrot.lane.b32.xlu0 %v1169, 56
        %v1515 = vpop.permute.xlu0 %1514
        %v1517 = vsel %vm1173, %v1512, 0
        %v1520 = vsel %vm1297, %v1515, 0
        %1522 = vmatprep.subr.bf16.mxu0 0
        %1523 = vmatpush1.bf16.msra.mxu0 0
        %1524 = vmatprep.subr.bf16.mxu0 0
        %1525 = vmatpush1.bf16.msra.mxu0 0
        %1526 = vmatprep.subr.bf16.mxu0 0
        %1527 = vmatpush1.bf16.msra.mxu0 0
        %1528 = vmatprep.subr.bf16.mxu0 0
        %1529 = vmatpush1.bf16.msra.mxu0 0
        %1530 = vmatprep.subr.bf16.mxu0 0
        %1531 = vmatpush1.bf16.msra.mxu0 0
        %1532 = vmatprep.subr.bf16.mxu0 0
        %1533 = vmatpush1.bf16.msra.mxu0 0
        %1534 = vmatprep.subr.bf16.mxu0 0
        %1535 = vmatpush1.bf16.msra.mxu0 0
        %1536 = vmatprep.subr.bf16.mxu0 0
        %1537 = vmatpush1.bf16.msra.mxu0 %v1520
        %1538 = vmatprep.subr.bf16.mxu0 0
        %1539 = vmatpush2.bf16.msra.mxu0 0
        %1540 = vmatprep.subr.bf16.mxu0 0
        %1541 = vmatpush2.bf16.msra.mxu0 0
        %1542 = vmatprep.subr.bf16.mxu0 0
        %1543 = vmatpush2.bf16.msra.mxu0 0
        %1544 = vmatprep.subr.bf16.mxu0 0
        %1545 = vmatpush2.bf16.msra.mxu0 0
        %1546 = vmatprep.subr.bf16.mxu0 0
        %1547 = vmatpush2.bf16.msra.mxu0 0
        %1548 = vmatprep.subr.bf16.mxu0 0
        %1549 = vmatpush2.bf16.msra.mxu0 0
        %1550 = vmatprep.subr.bf16.mxu0 0
        %1551 = vmatpush2.bf16.msra.mxu0 0
        %1552 = vmatprep.subr.bf16.mxu0 0
        %1553 = vmatpush2.bf16.msra.mxu0 0
        %1554 = vmatprep.mubr.bf16.mxu0 0
        %1555 = vmatmul.mubr.bf16.gmra.mxu0 %v1517
        %v1556 = vpop.f32.mrf.mxu0
        %v1557 = vadd.f32 0.0, %v1556
        %v1558 = vpop.f32.mrf.mxu0
        %v1559 = vpop.f32.mrf.mxu0
        %v1560 = vpop.f32.mrf.mxu0
        %1561 = vdwg.mxu0
        %1562 = vrot.lane.b32.xlu0 %v1170, 56
        %v1563 = vpop.permute.xlu0 %1562
        %v1565 = vsel %vm1173, %v1513, 0
        %v1568 = vsel %vm1297, %v1563, 0
        %1570 = vmatprep.subr.bf16.mxu0 0
        %1571 = vmatpush1.bf16.msra.mxu0 0
        %1572 = vmatprep.subr.bf16.mxu0 0
        %1573 = vmatpush1.bf16.msra.mxu0 0
        %1574 = vmatprep.subr.bf16.mxu0 0
        %1575 = vmatpush1.bf16.msra.mxu0 0
        %1576 = vmatprep.subr.bf16.mxu0 0
        %1577 = vmatpush1.bf16.msra.mxu0 0
        %1578 = vmatprep.subr.bf16.mxu0 0
        %1579 = vmatpush1.bf16.msra.mxu0 0
        %1580 = vmatprep.subr.bf16.mxu0 0
        %1581 = vmatpush1.bf16.msra.mxu0 0
        %1582 = vmatprep.subr.bf16.mxu0 0
        %1583 = vmatpush1.bf16.msra.mxu0 0
        %1584 = vmatprep.subr.bf16.mxu0 0
        %1585 = vmatpush1.bf16.msra.mxu0 %v1568
        %1586 = vmatprep.subr.bf16.mxu0 0
        %1587 = vmatpush2.bf16.msra.mxu0 0
        %1588 = vmatprep.subr.bf16.mxu0 0
        %1589 = vmatpush2.bf16.msra.mxu0 0
        %1590 = vmatprep.subr.bf16.mxu0 0
        %1591 = vmatpush2.bf16.msra.mxu0 0
        %1592 = vmatprep.subr.bf16.mxu0 0
        %1593 = vmatpush2.bf16.msra.mxu0 0
        %1594 = vmatprep.subr.bf16.mxu0 0
        %1595 = vmatpush2.bf16.msra.mxu0 0
        %1596 = vmatprep.subr.bf16.mxu0 0
        %1597 = vmatpush2.bf16.msra.mxu0 0
        %1598 = vmatprep.subr.bf16.mxu0 0
        %1599 = vmatpush2.bf16.msra.mxu0 0
        %1600 = vmatprep.subr.bf16.mxu0 0
        %1601 = vmatpush2.bf16.msra.mxu0 0
        %1602 = vmatprep.mubr.bf16.mxu0 0
        %1603 = vmatmul.mubr.bf16.gmra.mxu0 %v1565
        %v1604 = vpop.f32.mrf.mxu0
        %v1605 = vadd.f32 0.0, %v1604
        %v1606 = vpop.f32.mrf.mxu0
        %v1607 = vpop.f32.mrf.mxu0
        %v1608 = vpop.f32.mrf.mxu0
        %1609 = vdwg.mxu0
        %v1610 = vpack.c.bf16 %v1605, %v1557
        %v1612 = vsel %vm1173, %v1610, 0
        %v1615 = vsel %vm1297, %v1163, 0
        %1617 = vmatprep.subr.bf16.mxu0 0
        %1618 = vmatpush1.bf16.msra.mxu0 0
        %1619 = vmatprep.subr.bf16.mxu0 0
        %1620 = vmatpush1.bf16.msra.mxu0 0
        %1621 = vmatprep.subr.bf16.mxu0 0
        %1622 = vmatpush1.bf16.msra.mxu0 0
        %1623 = vmatprep.subr.bf16.mxu0 0
        %1624 = vmatpush1.bf16.msra.mxu0 0
        %1625 = vmatprep.subr.bf16.mxu0 0
        %1626 = vmatpush1.bf16.msra.mxu0 0
        %1627 = vmatprep.subr.bf16.mxu0 0
        %1628 = vmatpush1.bf16.msra.mxu0 0
        %1629 = vmatprep.subr.bf16.mxu0 0
        %1630 = vmatpush1.bf16.msra.mxu0 0
        %1631 = vmatprep.subr.bf16.mxu0 0
        %1632 = vmatpush1.bf16.msra.mxu0 %v1615
        %1633 = vmatprep.subr.bf16.mxu0 0
        %1634 = vmatpush2.bf16.msra.mxu0 0
        %1635 = vmatprep.subr.bf16.mxu0 0
        %1636 = vmatpush2.bf16.msra.mxu0 0
        %1637 = vmatprep.subr.bf16.mxu0 0
        %1638 = vmatpush2.bf16.msra.mxu0 0
        %1639 = vmatprep.subr.bf16.mxu0 0
        %1640 = vmatpush2.bf16.msra.mxu0 0
        %1641 = vmatprep.subr.bf16.mxu0 0
        %1642 = vmatpush2.bf16.msra.mxu0 0
        %1643 = vmatprep.subr.bf16.mxu0 0
        %1644 = vmatpush2.bf16.msra.mxu0 0
        %1645 = vmatprep.subr.bf16.mxu0 0
        %1646 = vmatpush2.bf16.msra.mxu0 0
        %1647 = vmatprep.subr.bf16.mxu0 0
        %1648 = vmatpush2.bf16.msra.mxu0 0
        %1649 = vmatprep.mubr.bf16.mxu0 0
        %1650 = vmatmul.mubr.bf16.gmra.mxu0 %v1612
        %v1651 = vpop.f32.mrf.mxu0
        %v1652 = vadd.f32 0.0, %v1651
        %v1653 = vpop.f32.mrf.mxu0
        %v1654 = vpop.f32.mrf.mxu0
        %v1655 = vadd.f32 0.0, %v1654
        %v1656 = vpop.f32.mrf.mxu0
        %1657 = vdwg.mxu0
        %v1659 = vsel %vm1173, %v1389, 0
        %v1662 = vsel %vm1297, %v1162, 0
        %1664 = vmatprep.subr.bf16.mxu0 0
        %1665 = vmatpush1.bf16.msra.mxu0 0
        %1666 = vmatprep.subr.bf16.mxu0 0
        %1667 = vmatpush1.bf16.msra.mxu0 0
        %1668 = vmatprep.subr.bf16.mxu0 0
        %1669 = vmatpush1.bf16.msra.mxu0 0
        %1670 = vmatprep.subr.bf16.mxu0 0
        %1671 = vmatpush1.bf16.msra.mxu0 0
        %1672 = vmatprep.subr.bf16.mxu0 0
        %1673 = vmatpush1.bf16.msra.mxu0 0
        %1674 = vmatprep.subr.bf16.mxu0 0
        %1675 = vmatpush1.bf16.msra.mxu0 0
        %1676 = vmatprep.subr.bf16.mxu0 0
        %1677 = vmatpush1.bf16.msra.mxu0 0
        %1678 = vmatprep.subr.bf16.mxu0 0
        %1679 = vmatpush1.bf16.msra.mxu0 %v1662
        %1680 = vmatprep.subr.bf16.mxu0 0
        %1681 = vmatpush2.bf16.msra.mxu0 0
        %1682 = vmatprep.subr.bf16.mxu0 0
        %1683 = vmatpush2.bf16.msra.mxu0 0
        %1684 = vmatprep.subr.bf16.mxu0 0
        %1685 = vmatpush2.bf16.msra.mxu0 0
        %1686 = vmatprep.subr.bf16.mxu0 0
        %1687 = vmatpush2.bf16.msra.mxu0 0
        %1688 = vmatprep.subr.bf16.mxu0 0
        %1689 = vmatpush2.bf16.msra.mxu0 0
        %1690 = vmatprep.subr.bf16.mxu0 0
        %1691 = vmatpush2.bf16.msra.mxu0 0
        %1692 = vmatprep.subr.bf16.mxu0 0
        %1693 = vmatpush2.bf16.msra.mxu0 0
        %1694 = vmatprep.subr.bf16.mxu0 0
        %1695 = vmatpush2.bf16.msra.mxu0 0
        %1696 = vmatprep.mubr.bf16.mxu0 0
        %1697 = vmatmul.mubr.bf16.gmra.mxu0 %v1659
        %v1698 = vpop.f32.mrf.mxu0
        %v1699 = vadd.f32 %v1652, %v1698
        %v1700 = vpop.f32.mrf.mxu0
        %v1701 = vpop.f32.mrf.mxu0
        %v1702 = vadd.f32 %v1655, %v1701
        %v1703 = vpop.f32.mrf.mxu0
        %1704 = vdwg.mxu0
        %1705 = vrot.lane.b32.xlu0 %v1169, 112
        %v1706 = vpop.permute.xlu0 %1705
        %1707 = vrot.lane.b32.xlu0 %v1169, 80
        %v1708 = vpop.permute.xlu0 %1707
        %v1710 = vsel %vm1173, %v1706, 0
        %v1713 = vsel %vm1173, %v1708, 0
        %1715 = vmatprep.subr.bf16.mxu0 0
        %1716 = vmatpush1.bf16.xpose.msra.mxu0 0
        %1717 = vmatprep.subr.bf16.mxu0 0
        %1718 = vmatpush1.bf16.xpose.msra.mxu0 0
        %1719 = vmatprep.subr.bf16.mxu0 0
        %1720 = vmatpush1.bf16.xpose.msra.mxu0 0
        %1721 = vmatprep.subr.bf16.mxu0 0
        %1722 = vmatpush1.bf16.xpose.msra.mxu0 0
        %1723 = vmatprep.subr.bf16.mxu0 0
        %1724 = vmatpush1.bf16.xpose.msra.mxu0 0
        %1725 = vmatprep.subr.bf16.mxu0 0
        %1726 = vmatpush1.bf16.xpose.msra.mxu0 0
        %1727 = vmatprep.subr.bf16.mxu0 0
        %1728 = vmatpush1.bf16.xpose.msra.mxu0 0
        %1729 = vmatprep.subr.bf16.mxu0 0
        %1730 = vmatpush1.bf16.xpose.msra.mxu0 %v1713
        %1731 = vmatprep.subr.bf16.mxu0 0
        %1732 = vmatpush2.bf16.xpose.msra.mxu0 0
        %1733 = vmatprep.subr.bf16.mxu0 0
        %1734 = vmatpush2.bf16.xpose.msra.mxu0 0
        %1735 = vmatprep.subr.bf16.mxu0 0
        %1736 = vmatpush2.bf16.xpose.msra.mxu0 0
        %1737 = vmatprep.subr.bf16.mxu0 0
        %1738 = vmatpush2.bf16.xpose.msra.mxu0 0
        %1739 = vmatprep.subr.bf16.mxu0 0
        %1740 = vmatpush2.bf16.xpose.msra.mxu0 0
        %1741 = vmatprep.subr.bf16.mxu0 0
        %1742 = vmatpush2.bf16.xpose.msra.mxu0 0
        %1743 = vmatprep.subr.bf16.mxu0 0
        %1744 = vmatpush2.bf16.xpose.msra.mxu0 0
        %1745 = vmatprep.subr.bf16.mxu0 0
        %1746 = vmatpush2.bf16.xpose.msra.mxu0 0
        %1747 = vmatprep.mubr.bf16.mxu0 0
        %1748 = vmatmul.mubr.bf16.gmra.mxu0 %v1710
        %v1749 = vpop.f32.mrf.mxu0
        %v1750 = vadd.f32 %v1035, %v1749
        %v1751 = vpop.f32.mrf.mxu0
        %v1752 = vpop.f32.mrf.mxu0
        %v1753 = vpop.f32.mrf.mxu0
        %1754 = vdwg.mxu0
        %1755 = vrot.lane.b32.xlu0 %v1170, 112
        %v1756 = vpop.permute.xlu0 %1755
        %1757 = vrot.lane.b32.xlu0 %v1170, 80
        %v1758 = vpop.permute.xlu0 %1757
        %v1760 = vsel %vm1173, %v1756, 0
        %v1763 = vsel %vm1173, %v1758, 0
        %1765 = vmatprep.subr.bf16.mxu0 0
        %1766 = vmatpush1.bf16.xpose.msra.mxu0 0
        %1767 = vmatprep.subr.bf16.mxu0 0
        %1768 = vmatpush1.bf16.xpose.msra.mxu0 0
        %1769 = vmatprep.subr.bf16.mxu0 0
        %1770 = vmatpush1.bf16.xpose.msra.mxu0 0
        %1771 = vmatprep.subr.bf16.mxu0 0
        %1772 = vmatpush1.bf16.xpose.msra.mxu0 0
        %1773 = vmatprep.subr.bf16.mxu0 0
        %1774 = vmatpush1.bf16.xpose.msra.mxu0 0
        %1775 = vmatprep.subr.bf16.mxu0 0
        %1776 = vmatpush1.bf16.xpose.msra.mxu0 0
        %1777 = vmatprep.subr.bf16.mxu0 0
        %1778 = vmatpush1.bf16.xpose.msra.mxu0 0
        %1779 = vmatprep.subr.bf16.mxu0 0
        %1780 = vmatpush1.bf16.xpose.msra.mxu0 %v1763
        %1781 = vmatprep.subr.bf16.mxu0 0
        %1782 = vmatpush2.bf16.xpose.msra.mxu0 0
        %1783 = vmatprep.subr.bf16.mxu0 0
        %1784 = vmatpush2.bf16.xpose.msra.mxu0 0
        %1785 = vmatprep.subr.bf16.mxu0 0
        %1786 = vmatpush2.bf16.xpose.msra.mxu0 0
        %1787 = vmatprep.subr.bf16.mxu0 0
        %1788 = vmatpush2.bf16.xpose.msra.mxu0 0
        %1789 = vmatprep.subr.bf16.mxu0 0
        %1790 = vmatpush2.bf16.xpose.msra.mxu0 0
        %1791 = vmatprep.subr.bf16.mxu0 0
        %1792 = vmatpush2.bf16.xpose.msra.mxu0 0
        %1793 = vmatprep.subr.bf16.mxu0 0
        %1794 = vmatpush2.bf16.xpose.msra.mxu0 0
        %1795 = vmatprep.subr.bf16.mxu0 0
        %1796 = vmatpush2.bf16.xpose.msra.mxu0 0
        %1797 = vmatprep.mubr.bf16.mxu0 0
        %1798 = vmatmul.mubr.bf16.gmra.mxu0 %v1760
        %v1799 = vpop.f32.mrf.mxu0
        %v1800 = vadd.f32 %v1036, %v1799
        %v1801 = vpop.f32.mrf.mxu0
        %v1802 = vpop.f32.mrf.mxu0
        %v1803 = vpop.f32.mrf.mxu0
        %1804 = vdwg.mxu0
        %v1805 = vsel %vm1173, %v1750, -inf
        %1806 = vmax.xlane.f32.xlu0 %v1805
        %v1807 = vpop.xlane.xlu0 %1806
        %v1808 = vsel %vm1173, %v1800, -inf
        %1809 = vmax.xlane.f32.xlu0 %v1808
        %v1810 = vpop.xlane.xlu0 %1809
        %v1811 = vsub.f32 %v1750, %v1807
        %v1812 = vsub.f32 %v1800, %v1810
        %v1813 = vmul.f32 %v1811, 1.442695
        %v1814 = vpow.pop %v1813
        %v1815 = vmul.f32 %v1812, 1.442695
        %v1816 = vpow.pop %v1815
        %v1817 = vsel %vm1173, %v1814, 0.0
        %1818 = vadd.xlane.f32.xlu0 %v1817
        %v1819 = vpop.xlane.xlu0 %1818
        %v1820 = vsel %vm1173, %v1816, 0.0
        %1821 = vadd.xlane.f32.xlu0 %v1820
        %v1822 = vpop.xlane.xlu0 %1821
        %v1823 = vrcp.pop %v1819
        %v1824 = vrcp.pop %v1822
        %v1825 = vmul.f32 %v1814, %v1823
        %v1826 = vmul.f32 %v1816, %v1824
        %v1827 = vpack.c.bf16 %v1825, %v1825
        %v1828 = vpack.c.bf16 %v1826, %v1826
        %1829 = vrot.lane.b32.xlu0 %v1169, 48
        %v1830 = vpop.permute.xlu0 %1829
        %v1832 = vsel %vm1173, %v1827, 0
        %v1835 = vsel %vm1297, %v1830, 0
        %1837 = vmatprep.subr.bf16.mxu0 0
        %1838 = vmatpush1.bf16.msra.mxu0 0
        %1839 = vmatprep.subr.bf16.mxu0 0
        %1840 = vmatpush1.bf16.msra.mxu0 0
        %1841 = vmatprep.subr.bf16.mxu0 0
        %1842 = vmatpush1.bf16.msra.mxu0 0
        %1843 = vmatprep.subr.bf16.mxu0 0
        %1844 = vmatpush1.bf16.msra.mxu0 0
        %1845 = vmatprep.subr.bf16.mxu0 0
        %1846 = vmatpush1.bf16.msra.mxu0 0
        %1847 = vmatprep.subr.bf16.mxu0 0
        %1848 = vmatpush1.bf16.msra.mxu0 0
        %1849 = vmatprep.subr.bf16.mxu0 0
        %1850 = vmatpush1.bf16.msra.mxu0 0
        %1851 = vmatprep.subr.bf16.mxu0 0
        %1852 = vmatpush1.bf16.msra.mxu0 %v1835
        %1853 = vmatprep.subr.bf16.mxu0 0
        %1854 = vmatpush2.bf16.msra.mxu0 0
        %1855 = vmatprep.subr.bf16.mxu0 0
        %1856 = vmatpush2.bf16.msra.mxu0 0
        %1857 = vmatprep.subr.bf16.mxu0 0
        %1858 = vmatpush2.bf16.msra.mxu0 0
        %1859 = vmatprep.subr.bf16.mxu0 0
        %1860 = vmatpush2.bf16.msra.mxu0 0
        %1861 = vmatprep.subr.bf16.mxu0 0
        %1862 = vmatpush2.bf16.msra.mxu0 0
        %1863 = vmatprep.subr.bf16.mxu0 0
        %1864 = vmatpush2.bf16.msra.mxu0 0
        %1865 = vmatprep.subr.bf16.mxu0 0
        %1866 = vmatpush2.bf16.msra.mxu0 0
        %1867 = vmatprep.subr.bf16.mxu0 0
        %1868 = vmatpush2.bf16.msra.mxu0 0
        %1869 = vmatprep.mubr.bf16.mxu0 0
        %1870 = vmatmul.mubr.bf16.gmra.mxu0 %v1832
        %v1871 = vpop.f32.mrf.mxu0
        %v1872 = vadd.f32 0.0, %v1871
        %v1873 = vpop.f32.mrf.mxu0
        %v1874 = vpop.f32.mrf.mxu0
        %v1875 = vpop.f32.mrf.mxu0
        %1876 = vdwg.mxu0
        %1877 = vrot.lane.b32.xlu0 %v1170, 48
        %v1878 = vpop.permute.xlu0 %1877
        %v1880 = vsel %vm1173, %v1828, 0
        %v1883 = vsel %vm1297, %v1878, 0
        %1885 = vmatprep.subr.bf16.mxu0 0
        %1886 = vmatpush1.bf16.msra.mxu0 0
        %1887 = vmatprep.subr.bf16.mxu0 0
        %1888 = vmatpush1.bf16.msra.mxu0 0
        %1889 = vmatprep.subr.bf16.mxu0 0
        %1890 = vmatpush1.bf16.msra.mxu0 0
        %1891 = vmatprep.subr.bf16.mxu0 0
        %1892 = vmatpush1.bf16.msra.mxu0 0
        %1893 = vmatprep.subr.bf16.mxu0 0
        %1894 = vmatpush1.bf16.msra.mxu0 0
        %1895 = vmatprep.subr.bf16.mxu0 0
        %1896 = vmatpush1.bf16.msra.mxu0 0
        %1897 = vmatprep.subr.bf16.mxu0 0
        %1898 = vmatpush1.bf16.msra.mxu0 0
        %1899 = vmatprep.subr.bf16.mxu0 0
        %1900 = vmatpush1.bf16.msra.mxu0 %v1883
        %1901 = vmatprep.subr.bf16.mxu0 0
        %1902 = vmatpush2.bf16.msra.mxu0 0
        %1903 = vmatprep.subr.bf16.mxu0 0
        %1904 = vmatpush2.bf16.msra.mxu0 0
        %1905 = vmatprep.subr.bf16.mxu0 0
        %1906 = vmatpush2.bf16.msra.mxu0 0
        %1907 = vmatprep.subr.bf16.mxu0 0
        %1908 = vmatpush2.bf16.msra.mxu0 0
        %1909 = vmatprep.subr.bf16.mxu0 0
        %1910 = vmatpush2.bf16.msra.mxu0 0
        %1911 = vmatprep.subr.bf16.mxu0 0
        %1912 = vmatpush2.bf16.msra.mxu0 0
        %1913 = vmatprep.subr.bf16.mxu0 0
        %1914 = vmatpush2.bf16.msra.mxu0 0
        %1915 = vmatprep.subr.bf16.mxu0 0
        %1916 = vmatpush2.bf16.msra.mxu0 0
        %1917 = vmatprep.mubr.bf16.mxu0 0
        %1918 = vmatmul.mubr.bf16.gmra.mxu0 %v1880
        %v1919 = vpop.f32.mrf.mxu0
        %v1920 = vadd.f32 0.0, %v1919
        %v1921 = vpop.f32.mrf.mxu0
        %v1922 = vpop.f32.mrf.mxu0
        %v1923 = vpop.f32.mrf.mxu0
        %1924 = vdwg.mxu0
        %v1925 = vpack.c.bf16 %v1920, %v1872
        %v1927 = vsel %vm1173, %v1925, 0
        %v1930 = vsel %vm1297, %v1164, 0
        %1932 = vmatprep.subr.bf16.mxu0 0
        %1933 = vmatpush1.bf16.msra.mxu0 0
        %1934 = vmatprep.subr.bf16.mxu0 0
        %1935 = vmatpush1.bf16.msra.mxu0 0
        %1936 = vmatprep.subr.bf16.mxu0 0
        %1937 = vmatpush1.bf16.msra.mxu0 0
        %1938 = vmatprep.subr.bf16.mxu0 0
        %1939 = vmatpush1.bf16.msra.mxu0 0
        %1940 = vmatprep.subr.bf16.mxu0 0
        %1941 = vmatpush1.bf16.msra.mxu0 0
        %1942 = vmatprep.subr.bf16.mxu0 0
        %1943 = vmatpush1.bf16.msra.mxu0 0
        %1944 = vmatprep.subr.bf16.mxu0 0
        %1945 = vmatpush1.bf16.msra.mxu0 0
        %1946 = vmatprep.subr.bf16.mxu0 0
        %1947 = vmatpush1.bf16.msra.mxu0 %v1930
        %1948 = vmatprep.subr.bf16.mxu0 0
        %1949 = vmatpush2.bf16.msra.mxu0 0
        %1950 = vmatprep.subr.bf16.mxu0 0
        %1951 = vmatpush2.bf16.msra.mxu0 0
        %1952 = vmatprep.subr.bf16.mxu0 0
        %1953 = vmatpush2.bf16.msra.mxu0 0
        %1954 = vmatprep.subr.bf16.mxu0 0
        %1955 = vmatpush2.bf16.msra.mxu0 0
        %1956 = vmatprep.subr.bf16.mxu0 0
        %1957 = vmatpush2.bf16.msra.mxu0 0
        %1958 = vmatprep.subr.bf16.mxu0 0
        %1959 = vmatpush2.bf16.msra.mxu0 0
        %1960 = vmatprep.subr.bf16.mxu0 0
        %1961 = vmatpush2.bf16.msra.mxu0 0
        %1962 = vmatprep.subr.bf16.mxu0 0
        %1963 = vmatpush2.bf16.msra.mxu0 0
        %1964 = vmatprep.mubr.bf16.mxu0 0
        %1965 = vmatmul.mubr.bf16.gmra.mxu0 %v1927
        %v1966 = vpop.f32.mrf.mxu0
        %v1967 = vadd.f32 0.0, %v1966
        %v1968 = vpop.f32.mrf.mxu0
        %v1969 = vpop.f32.mrf.mxu0
        %v1970 = vadd.f32 0.0, %v1969
        %v1971 = vpop.f32.mrf.mxu0
        %1972 = vdwg.mxu0
        %v1973 = vadd.f32 %v1699, %v1967
        %v1974 = vadd.f32 %v1702, %v1970
        %1975 = vrot.lane.b32.xlu0 %v1169, 104
        %v1976 = vpop.permute.xlu0 %1975
        %1977 = vrot.lane.b32.xlu0 %v1169, 72
        %v1978 = vpop.permute.xlu0 %1977
        %v1980 = vsel %vm1173, %v1976, 0
        %v1983 = vsel %vm1173, %v1978, 0
        %1985 = vmatprep.subr.bf16.mxu0 0
        %1986 = vmatpush1.bf16.xpose.msra.mxu0 0
        %1987 = vmatprep.subr.bf16.mxu0 0
        %1988 = vmatpush1.bf16.xpose.msra.mxu0 0
        %1989 = vmatprep.subr.bf16.mxu0 0
        %1990 = vmatpush1.bf16.xpose.msra.mxu0 0
        %1991 = vmatprep.subr.bf16.mxu0 0
        %1992 = vmatpush1.bf16.xpose.msra.mxu0 0
        %1993 = vmatprep.subr.bf16.mxu0 0
        %1994 = vmatpush1.bf16.xpose.msra.mxu0 0
        %1995 = vmatprep.subr.bf16.mxu0 0
        %1996 = vmatpush1.bf16.xpose.msra.mxu0 0
        %1997 = vmatprep.subr.bf16.mxu0 0
        %1998 = vmatpush1.bf16.xpose.msra.mxu0 0
        %1999 = vmatprep.subr.bf16.mxu0 0
        %2000 = vmatpush1.bf16.xpose.msra.mxu0 %v1983
        %2001 = vmatprep.subr.bf16.mxu0 0
        %2002 = vmatpush2.bf16.xpose.msra.mxu0 0
        %2003 = vmatprep.subr.bf16.mxu0 0
        %2004 = vmatpush2.bf16.xpose.msra.mxu0 0
        %2005 = vmatprep.subr.bf16.mxu0 0
        %2006 = vmatpush2.bf16.xpose.msra.mxu0 0
        %2007 = vmatprep.subr.bf16.mxu0 0
        %2008 = vmatpush2.bf16.xpose.msra.mxu0 0
        %2009 = vmatprep.subr.bf16.mxu0 0
        %2010 = vmatpush2.bf16.xpose.msra.mxu0 0
        %2011 = vmatprep.subr.bf16.mxu0 0
        %2012 = vmatpush2.bf16.xpose.msra.mxu0 0
        %2013 = vmatprep.subr.bf16.mxu0 0
        %2014 = vmatpush2.bf16.xpose.msra.mxu0 0
        %2015 = vmatprep.subr.bf16.mxu0 0
        %2016 = vmatpush2.bf16.xpose.msra.mxu0 0
        %2017 = vmatprep.mubr.bf16.mxu0 0
        %2018 = vmatmul.mubr.bf16.gmra.mxu0 %v1980
        %v2019 = vpop.f32.mrf.mxu0
        %v2020 = vadd.f32 %v1035, %v2019
        %v2021 = vpop.f32.mrf.mxu0
        %v2022 = vpop.f32.mrf.mxu0
        %v2023 = vpop.f32.mrf.mxu0
        %2024 = vdwg.mxu0
        %2025 = vrot.lane.b32.xlu0 %v1170, 104
        %v2026 = vpop.permute.xlu0 %2025
        %2027 = vrot.lane.b32.xlu0 %v1170, 72
        %v2028 = vpop.permute.xlu0 %2027
        %v2030 = vsel %vm1173, %v2026, 0
        %v2033 = vsel %vm1173, %v2028, 0
        %2035 = vmatprep.subr.bf16.mxu0 0
        %2036 = vmatpush1.bf16.xpose.msra.mxu0 0
        %2037 = vmatprep.subr.bf16.mxu0 0
        %2038 = vmatpush1.bf16.xpose.msra.mxu0 0
        %2039 = vmatprep.subr.bf16.mxu0 0
        %2040 = vmatpush1.bf16.xpose.msra.mxu0 0
        %2041 = vmatprep.subr.bf16.mxu0 0
        %2042 = vmatpush1.bf16.xpose.msra.mxu0 0
        %2043 = vmatprep.subr.bf16.mxu0 0
        %2044 = vmatpush1.bf16.xpose.msra.mxu0 0
        %2045 = vmatprep.subr.bf16.mxu0 0
        %2046 = vmatpush1.bf16.xpose.msra.mxu0 0
        %2047 = vmatprep.subr.bf16.mxu0 0
        %2048 = vmatpush1.bf16.xpose.msra.mxu0 0
        %2049 = vmatprep.subr.bf16.mxu0 0
        %2050 = vmatpush1.bf16.xpose.msra.mxu0 %v2033
        %2051 = vmatprep.subr.bf16.mxu0 0
        %2052 = vmatpush2.bf16.xpose.msra.mxu0 0
        %2053 = vmatprep.subr.bf16.mxu0 0
        %2054 = vmatpush2.bf16.xpose.msra.mxu0 0
        %2055 = vmatprep.subr.bf16.mxu0 0
        %2056 = vmatpush2.bf16.xpose.msra.mxu0 0
        %2057 = vmatprep.subr.bf16.mxu0 0
        %2058 = vmatpush2.bf16.xpose.msra.mxu0 0
        %2059 = vmatprep.subr.bf16.mxu0 0
        %2060 = vmatpush2.bf16.xpose.msra.mxu0 0
        %2061 = vmatprep.subr.bf16.mxu0 0
        %2062 = vmatpush2.bf16.xpose.msra.mxu0 0
        %2063 = vmatprep.subr.bf16.mxu0 0
        %2064 = vmatpush2.bf16.xpose.msra.mxu0 0
        %2065 = vmatprep.subr.bf16.mxu0 0
        %2066 = vmatpush2.bf16.xpose.msra.mxu0 0
        %2067 = vmatprep.mubr.bf16.mxu0 0
        %2068 = vmatmul.mubr.bf16.gmra.mxu0 %v2030
        %v2069 = vpop.f32.mrf.mxu0
        %v2070 = vadd.f32 %v1036, %v2069
        %v2071 = vpop.f32.mrf.mxu0
        %v2072 = vpop.f32.mrf.mxu0
        %v2073 = vpop.f32.mrf.mxu0
        %2074 = vdwg.mxu0
        %v2075 = vsel %vm1173, %v2020, -inf
        %2076 = vmax.xlane.f32.xlu0 %v2075
        %v2077 = vpop.xlane.xlu0 %2076
        %v2078 = vsel %vm1173, %v2070, -inf
        %2079 = vmax.xlane.f32.xlu0 %v2078
        %v2080 = vpop.xlane.xlu0 %2079
        %v2081 = vsub.f32 %v2020, %v2077
        %v2082 = vsub.f32 %v2070, %v2080
        %v2083 = vmul.f32 %v2081, 1.442695
        %v2084 = vpow.pop %v2083
        %v2085 = vmul.f32 %v2082, 1.442695
        %v2086 = vpow.pop %v2085
        %v2087 = vsel %vm1173, %v2084, 0.0
        %2088 = vadd.xlane.f32.xlu0 %v2087
        %v2089 = vpop.xlane.xlu0 %2088
        %v2090 = vsel %vm1173, %v2086, 0.0
        %2091 = vadd.xlane.f32.xlu0 %v2090
        %v2092 = vpop.xlane.xlu0 %2091
        %v2093 = vrcp.pop %v2089
        %v2094 = vrcp.pop %v2092
        %v2095 = vmul.f32 %v2084, %v2093
        %v2096 = vmul.f32 %v2086, %v2094
        %v2097 = vpack.c.bf16 %v2095, %v2095
        %v2098 = vpack.c.bf16 %v2096, %v2096
        %2099 = vrot.lane.b32.xlu0 %v1169, 40
        %v2100 = vpop.permute.xlu0 %2099
        %v2102 = vsel %vm1173, %v2097, 0
        %v2105 = vsel %vm1297, %v2100, 0
        %2107 = vmatprep.subr.bf16.mxu0 0
        %2108 = vmatpush1.bf16.msra.mxu0 0
        %2109 = vmatprep.subr.bf16.mxu0 0
        %2110 = vmatpush1.bf16.msra.mxu0 0
        %2111 = vmatprep.subr.bf16.mxu0 0
        %2112 = vmatpush1.bf16.msra.mxu0 0
        %2113 = vmatprep.subr.bf16.mxu0 0
        %2114 = vmatpush1.bf16.msra.mxu0 0
        %2115 = vmatprep.subr.bf16.mxu0 0
        %2116 = vmatpush1.bf16.msra.mxu0 0
        %2117 = vmatprep.subr.bf16.mxu0 0
        %2118 = vmatpush1.bf16.msra.mxu0 0
        %2119 = vmatprep.subr.bf16.mxu0 0
        %2120 = vmatpush1.bf16.msra.mxu0 0
        %2121 = vmatprep.subr.bf16.mxu0 0
        %2122 = vmatpush1.bf16.msra.mxu0 %v2105
        %2123 = vmatprep.subr.bf16.mxu0 0
        %2124 = vmatpush2.bf16.msra.mxu0 0
        %2125 = vmatprep.subr.bf16.mxu0 0
        %2126 = vmatpush2.bf16.msra.mxu0 0
        %2127 = vmatprep.subr.bf16.mxu0 0
        %2128 = vmatpush2.bf16.msra.mxu0 0
        %2129 = vmatprep.subr.bf16.mxu0 0
        %2130 = vmatpush2.bf16.msra.mxu0 0
        %2131 = vmatprep.subr.bf16.mxu0 0
        %2132 = vmatpush2.bf16.msra.mxu0 0
        %2133 = vmatprep.subr.bf16.mxu0 0
        %2134 = vmatpush2.bf16.msra.mxu0 0
        %2135 = vmatprep.subr.bf16.mxu0 0
        %2136 = vmatpush2.bf16.msra.mxu0 0
        %2137 = vmatprep.subr.bf16.mxu0 0
        %2138 = vmatpush2.bf16.msra.mxu0 0
        %2139 = vmatprep.mubr.bf16.mxu0 0
        %2140 = vmatmul.mubr.bf16.gmra.mxu0 %v2102
        %v2141 = vpop.f32.mrf.mxu0
        %v2142 = vadd.f32 0.0, %v2141
        %v2143 = vpop.f32.mrf.mxu0
        %v2144 = vpop.f32.mrf.mxu0
        %v2145 = vpop.f32.mrf.mxu0
        %2146 = vdwg.mxu0
        %2147 = vrot.lane.b32.xlu0 %v1170, 40
        %v2148 = vpop.permute.xlu0 %2147
        %v2150 = vsel %vm1173, %v2098, 0
        %v2153 = vsel %vm1297, %v2148, 0
        %2155 = vmatprep.subr.bf16.mxu0 0
        %2156 = vmatpush1.bf16.msra.mxu0 0
        %2157 = vmatprep.subr.bf16.mxu0 0
        %2158 = vmatpush1.bf16.msra.mxu0 0
        %2159 = vmatprep.subr.bf16.mxu0 0
        %2160 = vmatpush1.bf16.msra.mxu0 0
        %2161 = vmatprep.subr.bf16.mxu0 0
        %2162 = vmatpush1.bf16.msra.mxu0 0
        %2163 = vmatprep.subr.bf16.mxu0 0
        %2164 = vmatpush1.bf16.msra.mxu0 0
        %2165 = vmatprep.subr.bf16.mxu0 0
        %2166 = vmatpush1.bf16.msra.mxu0 0
        %2167 = vmatprep.subr.bf16.mxu0 0
        %2168 = vmatpush1.bf16.msra.mxu0 0
        %2169 = vmatprep.subr.bf16.mxu0 0
        %2170 = vmatpush1.bf16.msra.mxu0 %v2153
        %2171 = vmatprep.subr.bf16.mxu0 0
        %2172 = vmatpush2.bf16.msra.mxu0 0
        %2173 = vmatprep.subr.bf16.mxu0 0
        %2174 = vmatpush2.bf16.msra.mxu0 0
        %2175 = vmatprep.subr.bf16.mxu0 0
        %2176 = vmatpush2.bf16.msra.mxu0 0
        %2177 = vmatprep.subr.bf16.mxu0 0
        %2178 = vmatpush2.bf16.msra.mxu0 0
        %2179 = vmatprep.subr.bf16.mxu0 0
        %2180 = vmatpush2.bf16.msra.mxu0 0
        %2181 = vmatprep.subr.bf16.mxu0 0
        %2182 = vmatpush2.bf16.msra.mxu0 0
        %2183 = vmatprep.subr.bf16.mxu0 0
        %2184 = vmatpush2.bf16.msra.mxu0 0
        %2185 = vmatprep.subr.bf16.mxu0 0
        %2186 = vmatpush2.bf16.msra.mxu0 0
        %2187 = vmatprep.mubr.bf16.mxu0 0
        %2188 = vmatmul.mubr.bf16.gmra.mxu0 %v2150
        %v2189 = vpop.f32.mrf.mxu0
        %v2190 = vadd.f32 0.0, %v2189
        %v2191 = vpop.f32.mrf.mxu0
        %v2192 = vpop.f32.mrf.mxu0
        %v2193 = vpop.f32.mrf.mxu0
        %2194 = vdwg.mxu0
        %v2195 = vpack.c.bf16 %v2190, %v2142
        %v2197 = vsel %vm1173, %v2195, 0
        %v2200 = vsel %vm1297, %v1165, 0
        %2202 = vmatprep.subr.bf16.mxu0 0
        %2203 = vmatpush1.bf16.msra.mxu0 0
        %2204 = vmatprep.subr.bf16.mxu0 0
        %2205 = vmatpush1.bf16.msra.mxu0 0
        %2206 = vmatprep.subr.bf16.mxu0 0
        %2207 = vmatpush1.bf16.msra.mxu0 0
        %2208 = vmatprep.subr.bf16.mxu0 0
        %2209 = vmatpush1.bf16.msra.mxu0 0
        %2210 = vmatprep.subr.bf16.mxu0 0
        %2211 = vmatpush1.bf16.msra.mxu0 0
        %2212 = vmatprep.subr.bf16.mxu0 0
        %2213 = vmatpush1.bf16.msra.mxu0 0
        %2214 = vmatprep.subr.bf16.mxu0 0
        %2215 = vmatpush1.bf16.msra.mxu0 0
        %2216 = vmatprep.subr.bf16.mxu0 0
        %2217 = vmatpush1.bf16.msra.mxu0 %v2200
        %2218 = vmatprep.subr.bf16.mxu0 0
        %2219 = vmatpush2.bf16.msra.mxu0 0
        %2220 = vmatprep.subr.bf16.mxu0 0
        %2221 = vmatpush2.bf16.msra.mxu0 0
        %2222 = vmatprep.subr.bf16.mxu0 0
        %2223 = vmatpush2.bf16.msra.mxu0 0
        %2224 = vmatprep.subr.bf16.mxu0 0
        %2225 = vmatpush2.bf16.msra.mxu0 0
        %2226 = vmatprep.subr.bf16.mxu0 0
        %2227 = vmatpush2.bf16.msra.mxu0 0
        %2228 = vmatprep.subr.bf16.mxu0 0
        %2229 = vmatpush2.bf16.msra.mxu0 0
        %2230 = vmatprep.subr.bf16.mxu0 0
        %2231 = vmatpush2.bf16.msra.mxu0 0
        %2232 = vmatprep.subr.bf16.mxu0 0
        %2233 = vmatpush2.bf16.msra.mxu0 0
        %2234 = vmatprep.mubr.bf16.mxu0 0
        %2235 = vmatmul.mubr.bf16.gmra.mxu0 %v2197
        %v2236 = vpop.f32.mrf.mxu0
        %v2237 = vadd.f32 0.0, %v2236
        %v2238 = vpop.f32.mrf.mxu0
        %v2239 = vpop.f32.mrf.mxu0
        %v2240 = vadd.f32 0.0, %v2239
        %v2241 = vpop.f32.mrf.mxu0
        %2242 = vdwg.mxu0
        %v2243 = vadd.f32 %v1973, %v2237
        %v2244 = vadd.f32 %v1974, %v2240
        %v2245 = vld [vmem:[%s21] sm:$0x1]
        %v2247 = vlaneseq
        %v2248 = vshrl.u32 %v2247, 7
        %v2249 = vsub.s32 0, %v2248
        %v2250 = vrot.slane %v2245, %v2249
        %v2252 = vadd.f32 %v2243, %v2250
        %v2253 = vadd.f32 %v2244, %v2250
        %v2254 = vadd.f32 %v1086, %v2252
        %v2255 = vadd.f32 %v1089, %v2253
        %v2256 = vld [vmem:[%s31] sm:$0x1]
        %v2257 = vld [vmem:[%s33] sm:$0x1]
        %v2258 = vsel %vm1116, %v2254, 0.0
        %2259 = vadd.xlane.f32.xlu0 %v2258
        %v2260 = vpop.xlane.xlu0 %2259
        %v2261 = vsel %vm1116, %v2255, 0.0
        %2262 = vadd.xlane.f32.xlu0 %v2261
        %v2263 = vpop.xlane.xlu0 %2262
        %v2264 = vrcp.pop 32.0
        %v2265 = vmul.f32 %v2260, %v2264
        %v2266 = vmul.f32 %v2263, %v2264
        %v2267 = vsub.f32 %v2254, %v2265
        %v2268 = vsub.f32 %v2255, %v2266
        %v2269 = vmul.f32 %v2267, %v2267
        %v2270 = vmul.f32 %v2268, %v2268
        %v2271 = vsel %vm1116, %v2269, 0.0
        %2272 = vadd.xlane.f32.xlu0 %v2271
        %v2273 = vpop.xlane.xlu0 %2272
        %v2274 = vsel %vm1116, %v2270, 0.0
        %2275 = vadd.xlane.f32.xlu0 %v2274
        %v2276 = vpop.xlane.xlu0 %2275
        %v2277 = vmul.f32 %v2273, %v2264
        %v2278 = vmul.f32 %v2276, %v2264
        %v2279 = vadd.f32 %v2277, 1e-05
        %v2280 = vadd.f32 %v2278, 1e-05
        %v2281 = vrsqrt.pop %v2279
        %v2282 = vrsqrt.pop %v2280
        %v2283 = vmul.f32 %v2267, %v2281
        %v2284 = vmul.f32 %v2268, %v2282
        %v2286 = vlaneseq
        %v2287 = vshrl.u32 %v2286, 7
        %v2288 = vsub.s32 0, %v2287
        %v2289 = vrot.slane %v2256, %v2288
        %v2291 = vmul.f32 %v2283, %v2289
        %v2292 = vmul.f32 %v2284, %v2289
        %v2294 = vlaneseq
        %v2295 = vshrl.u32 %v2294, 7
        %v2296 = vsub.s32 0, %v2295
        %v2297 = vrot.slane %v2257, %v2296
        %v2299 = vadd.f32 %v2291, %v2297
        %v2300 = vadd.f32 %v2292, %v2297
        %v2301 = vpack.c.bf16 %v2300, %v2299
        %v2302 = vld [vmem:[%s23] sm:$0xf]
        %v2303 = vld [vmem:[%s23 + $0x4] sm:$0xf]
        %v2304 = vld [vmem:[%s23 + $0x8] sm:$0xf]
        %v2305 = vld [vmem:[%s23 + $0xc] sm:$0xf]
        %v2306 = vld [vmem:[%s25] sm:$0x1]
        %v2308 = vlaneseq
        %v2309 = vshrl.u32 %v2308, 7
        %v2310 = vsub.s32 0, %v2309
        %v2311 = vrot.slane %v2306, %v2310
        %v2317 = vunpack.c.l.b16 %v2302
        %v2318 = vunpack.c.l.b16 %v2303
        %v2319 = vunpack.c.l.b16 %v2304
        %v2320 = vunpack.c.l.b16 %v2305
        %v2321 = vpack.c.b16 %v2318, %v2317
        %v2322 = vpack.c.b16 %v2320, %v2319
        %v2326 = vsel %vm1116, %v2301, 0
        %2328 = vmatprep.subr.bf16.mxu0 0
        %2329 = vmatpush1.bf16.msra.mxu0 0
        %2330 = vmatprep.subr.bf16.mxu0 0
        %2331 = vmatpush1.bf16.msra.mxu0 0
        %2332 = vmatprep.subr.bf16.mxu0 0
        %2333 = vmatpush1.bf16.msra.mxu0 0
        %2334 = vmatprep.subr.bf16.mxu0 0
        %2335 = vmatpush1.bf16.msra.mxu0 0
        %2336 = vmatprep.subr.bf16.mxu0 0
        %2337 = vmatpush1.bf16.msra.mxu0 0
        %2338 = vmatprep.subr.bf16.mxu0 0
        %2339 = vmatpush1.bf16.msra.mxu0 0
        %2340 = vmatprep.subr.bf16.mxu0 0
        %2341 = vmatpush1.bf16.msra.mxu0 %v2322
        %2342 = vmatprep.subr.bf16.mxu0 0
        %2343 = vmatpush1.bf16.msra.mxu0 %v2321
        %2344 = vmatprep.subr.bf16.mxu0 0
        %2345 = vmatpush2.bf16.msra.mxu0 0
        %2346 = vmatprep.subr.bf16.mxu0 0
        %2347 = vmatpush2.bf16.msra.mxu0 0
        %2348 = vmatprep.subr.bf16.mxu0 0
        %2349 = vmatpush2.bf16.msra.mxu0 0
        %2350 = vmatprep.subr.bf16.mxu0 0
        %2351 = vmatpush2.bf16.msra.mxu0 0
        %2352 = vmatprep.subr.bf16.mxu0 0
        %2353 = vmatpush2.bf16.msra.mxu0 0
        %2354 = vmatprep.subr.bf16.mxu0 0
        %2355 = vmatpush2.bf16.msra.mxu0 0
        %2356 = vmatprep.subr.bf16.mxu0 0
        %2357 = vmatpush2.bf16.msra.mxu0 0
        %2358 = vmatprep.subr.bf16.mxu0 0
        %2359 = vmatpush2.bf16.msra.mxu0 0
        %2360 = vmatprep.mubr.bf16.mxu0 0
        %2361 = vmatmul.mubr.bf16.gmra.mxu0 %v2326
        %v2362 = vpop.f32.mrf.mxu0
        %v2363 = vadd.f32 %v2311, %v2362
        %v2364 = vpop.f32.mrf.mxu0
        %v2365 = vpop.f32.mrf.mxu0
        %v2366 = vadd.f32 %v2311, %v2365
        %v2367 = vpop.f32.mrf.mxu0
        %2368 = vdwg.mxu0
        %v2369 = vmax.f32 %v2363, 0.0
        %v2370 = vmax.f32 %v2366, 0.0
        %v2371 = vpack.c.bf16 %v2370, %v2369
        %v2372 = vld [vmem:[%s27] sm:$0xf]
        %v2373 = vld [vmem:[%s27 + $0x4] sm:$0xf]
        %v2374 = vld [vmem:[%s27 + $0x8] sm:$0xf]
        %v2375 = vld [vmem:[%s27 + $0xc] sm:$0xf]
        %v2376 = vld [vmem:[%s27 + $0x10] sm:$0xf]
        %v2377 = vld [vmem:[%s27 + $0x14] sm:$0xf]
        %v2378 = vld [vmem:[%s27 + $0x18] sm:$0xf]
        %v2379 = vld [vmem:[%s27 + $0x1c] sm:$0xf]
        %v2380 = vld [vmem:[%s29] sm:$0x1]
        %v2382 = vlaneseq
        %v2383 = vshrl.u32 %v2382, 7
        %v2384 = vsub.s32 0, %v2383
        %v2385 = vrot.slane %v2380, %v2384
        %v2395 = vunpack.c.l.b16 %v2372
        %v2396 = vunpack.c.l.b16 %v2373
        %v2397 = vunpack.c.l.b16 %v2374
        %v2398 = vunpack.c.l.b16 %v2375
        %v2399 = vunpack.c.l.b16 %v2376
        %v2400 = vunpack.c.l.b16 %v2377
        %v2401 = vunpack.c.l.b16 %v2378
        %v2402 = vunpack.c.l.b16 %v2379
        %v2403 = vpack.c.b16 %v2396, %v2395
        %v2404 = vpack.c.b16 %v2398, %v2397
        %v2405 = vpack.c.b16 %v2400, %v2399
        %v2406 = vpack.c.b16 %v2402, %v2401
        %vm2411 = vcmask 523264
        %v2413 = vsel %vm2411, %v2371, 0
        %2415 = vmatprep.subr.bf16.mxu0 0
        %2416 = vmatpush1.bf16.msra.mxu0 0
        %2417 = vmatprep.subr.bf16.mxu0 0
        %2418 = vmatpush1.bf16.msra.mxu0 0
        %2419 = vmatprep.subr.bf16.mxu0 0
        %2420 = vmatpush1.bf16.msra.mxu0 0
        %2421 = vmatprep.subr.bf16.mxu0 0
        %2422 = vmatpush1.bf16.msra.mxu0 0
        %2423 = vmatprep.subr.bf16.mxu0 0
        %2424 = vmatpush1.bf16.msra.mxu0 %v2406
        %2425 = vmatprep.subr.bf16.mxu0 0
        %2426 = vmatpush1.bf16.msra.mxu0 %v2405
        %2427 = vmatprep.subr.bf16.mxu0 0
        %2428 = vmatpush1.bf16.msra.mxu0 %v2404
        %2429 = vmatprep.subr.bf16.mxu0 0
        %2430 = vmatpush1.bf16.msra.mxu0 %v2403
        %2431 = vmatprep.subr.bf16.mxu0 0
        %2432 = vmatpush2.bf16.msra.mxu0 0
        %2433 = vmatprep.subr.bf16.mxu0 0
        %2434 = vmatpush2.bf16.msra.mxu0 0
        %2435 = vmatprep.subr.bf16.mxu0 0
        %2436 = vmatpush2.bf16.msra.mxu0 0
        %2437 = vmatprep.subr.bf16.mxu0 0
        %2438 = vmatpush2.bf16.msra.mxu0 0
        %2439 = vmatprep.subr.bf16.mxu0 0
        %2440 = vmatpush2.bf16.msra.mxu0 0
        %2441 = vmatprep.subr.bf16.mxu0 0
        %2442 = vmatpush2.bf16.msra.mxu0 0
        %2443 = vmatprep.subr.bf16.mxu0 0
        %2444 = vmatpush2.bf16.msra.mxu0 0
        %2445 = vmatprep.subr.bf16.mxu0 0
        %2446 = vmatpush2.bf16.msra.mxu0 0
        %2447 = vmatprep.mubr.bf16.mxu0 0
        %2448 = vmatmul.mubr.bf16.gmra.mxu0 %v2413
        %v2449 = vpop.f32.mrf.mxu0
        %v2450 = vadd.f32 %v2385, %v2449
        %v2451 = vpop.f32.mrf.mxu0
        %v2452 = vpop.f32.mrf.mxu0
        %v2453 = vadd.f32 %v2385, %v2452
        %v2454 = vpop.f32.mrf.mxu0
        %2455 = vdwg.mxu0
        %v2456 = vadd.f32 %v2299, %v2450
        %v2457 = vadd.f32 %v2300, %v2453
        %v2458 = vld [vmem:[%s35] sm:$0x1]
        %v2459 = vld [vmem:[%s37] sm:$0x1]
        %v2460 = vsel %vm1116, %v2456, 0.0
        %2461 = vadd.xlane.f32.xlu0 %v2460
        %v2462 = vpop.xlane.xlu0 %2461
        %v2463 = vsel %vm1116, %v2457, 0.0
        %2464 = vadd.xlane.f32.xlu0 %v2463
        %v2465 = vpop.xlane.xlu0 %2464
        %v2466 = vmul.f32 %v2462, %v2264
        %v2467 = vmul.f32 %v2465, %v2264
        %v2468 = vsub.f32 %v2456, %v2466
        %v2469 = vsub.f32 %v2457, %v2467
        %v2470 = vmul.f32 %v2468, %v2468
        %v2471 = vmul.f32 %v2469, %v2469
        %v2472 = vsel %vm1116, %v2470, 0.0
        %2473 = vadd.xlane.f32.xlu0 %v2472
        %v2474 = vpop.xlane.xlu0 %2473
        %v2475 = vsel %vm1116, %v2471, 0.0
        %2476 = vadd.xlane.f32.xlu0 %v2475
        %v2477 = vpop.xlane.xlu0 %2476
        %v2478 = vmul.f32 %v2474, %v2264
        %v2479 = vmul.f32 %v2477, %v2264
        %v2480 = vadd.f32 %v2478, 1e-05
        %v2481 = vadd.f32 %v2479, 1e-05
        %v2482 = vrsqrt.pop %v2480
        %v2483 = vrsqrt.pop %v2481
        %v2484 = vmul.f32 %v2468, %v2482
        %v2485 = vmul.f32 %v2469, %v2483
        %v2487 = vlaneseq
        %v2488 = vshrl.u32 %v2487, 7
        %v2489 = vsub.s32 0, %v2488
        %v2490 = vrot.slane %v2458, %v2489
        %v2492 = vmul.f32 %v2484, %v2490
        %v2493 = vmul.f32 %v2485, %v2490
        %v2495 = vlaneseq
        %v2496 = vshrl.u32 %v2495, 7
        %v2497 = vsub.s32 0, %v2496
        %v2498 = vrot.slane %v2459, %v2497
        %v2500 = vadd.f32 %v2492, %v2498
        %v2501 = vadd.f32 %v2493, %v2498
        %v2502 = vpack.c.bf16 %v2501, %v2500
        %v2503 = vld [vmem:[%s39] sm:$0xf]
        %v2504 = vld [vmem:[%s39 + $0x4] sm:$0xf]
        %v2505 = vld [vmem:[%s39 + $0x8] sm:$0xf]
        %v2506 = vld [vmem:[%s39 + $0xc] sm:$0xf]
        %v2507 = vld [vmem:[%s41] sm:$0x1]
        %v2509 = vlaneseq
        %v2510 = vshrl.u32 %v2509, 7
        %v2511 = vsub.s32 0, %v2510
        %v2512 = vrot.slane %v2507, %v2511
        %v2518 = vunpack.c.l.b16 %v2503
        %v2519 = vunpack.c.l.b16 %v2504
        %v2520 = vunpack.c.l.b16 %v2505
        %v2521 = vunpack.c.l.b16 %v2506
        %v2522 = vpack.c.b16 %v2519, %v2518
        %v2523 = vpack.c.b16 %v2521, %v2520
        %v2527 = vsel %vm1116, %v2502, 0
        %2529 = vmatprep.subr.bf16.mxu0 0
        %2530 = vmatpush1.bf16.msra.mxu0 0
        %2531 = vmatprep.subr.bf16.mxu0 0
        %2532 = vmatpush1.bf16.msra.mxu0 0
        %2533 = vmatprep.subr.bf16.mxu0 0
        %2534 = vmatpush1.bf16.msra.mxu0 0
        %2535 = vmatprep.subr.bf16.mxu0 0
        %2536 = vmatpush1.bf16.msra.mxu0 0
        %2537 = vmatprep.subr.bf16.mxu0 0
        %2538 = vmatpush1.bf16.msra.mxu0 0
        %2539 = vmatprep.subr.bf16.mxu0 0
        %2540 = vmatpush1.bf16.msra.mxu0 0
        %2541 = vmatprep.subr.bf16.mxu0 0
        %2542 = vmatpush1.bf16.msra.mxu0 %v2523
        %2543 = vmatprep.subr.bf16.mxu0 0
        %2544 = vmatpush1.bf16.msra.mxu0 %v2522
        %2545 = vmatprep.subr.bf16.mxu0 0
        %2546 = vmatpush2.bf16.msra.mxu0 0
        %2547 = vmatprep.subr.bf16.mxu0 0
        %2548 = vmatpush2.bf16.msra.mxu0 0
        %2549 = vmatprep.subr.bf16.mxu0 0
        %2550 = vmatpush2.bf16.msra.mxu0 0
        %2551 = vmatprep.subr.bf16.mxu0 0
        %2552 = vmatpush2.bf16.msra.mxu0 0
        %2553 = vmatprep.subr.bf16.mxu0 0
        %2554 = vmatpush2.bf16.msra.mxu0 0
        %2555 = vmatprep.subr.bf16.mxu0 0
        %2556 = vmatpush2.bf16.msra.mxu0 0
        %2557 = vmatprep.subr.bf16.mxu0 0
        %2558 = vmatpush2.bf16.msra.mxu0 0
        %2559 = vmatprep.subr.bf16.mxu0 0
        %2560 = vmatpush2.bf16.msra.mxu0 0
        %2561 = vmatprep.mubr.bf16.mxu0 0
        %2562 = vmatmul.mubr.bf16.gmra.mxu0 %v2527
        %v2563 = vpop.f32.mrf.mxu0
        %v2564 = vadd.f32 %v2512, %v2563
        %v2565 = vpop.f32.mrf.mxu0
        %v2566 = vpop.f32.mrf.mxu0
        %v2567 = vadd.f32 %v2512, %v2566
        %v2568 = vpop.f32.mrf.mxu0
        %2569 = vdwg.mxu0
        %v2570 = vpack.c.bf16 %v2567, %v2564
        %v2571 = vld [vmem:[%s43] sm:$0xf]
        %v2572 = vld [vmem:[%s43 + $0x4] sm:$0xf]
        %v2573 = vld [vmem:[%s43 + $0x8] sm:$0xf]
        %v2574 = vld [vmem:[%s43 + $0xc] sm:$0xf]
        %v2576 = vunpack.c.l.b16 %v2570
        %v2577 = vunpack.c.h.b16 %v2570
        %v2578 = vpack.c.b16 %v2576, %v2576
        %v2579 = vpack.c.b16 %v2577, %v2577
        %2580 = vrot.lane.b32.xlu0 %v2578, 96
        %v2581 = vpop.permute.xlu0 %2580
        %v2583 = vsel %vm1173, %v2578, 0
        %v2586 = vsel %vm1173, %v2581, 0
        %2588 = vmatprep.subr.bf16.mxu0 0
        %2589 = vmatpush1.bf16.xpose.msra.mxu0 0
        %2590 = vmatprep.subr.bf16.mxu0 0
        %2591 = vmatpush1.bf16.xpose.msra.mxu0 0
        %2592 = vmatprep.subr.bf16.mxu0 0
        %2593 = vmatpush1.bf16.xpose.msra.mxu0 0
        %2594 = vmatprep.subr.bf16.mxu0 0
        %2595 = vmatpush1.bf16.xpose.msra.mxu0 0
        %2596 = vmatprep.subr.bf16.mxu0 0
        %2597 = vmatpush1.bf16.xpose.msra.mxu0 0
        %2598 = vmatprep.subr.bf16.mxu0 0
        %2599 = vmatpush1.bf16.xpose.msra.mxu0 0
        %2600 = vmatprep.subr.bf16.mxu0 0
        %2601 = vmatpush1.bf16.xpose.msra.mxu0 0
        %2602 = vmatprep.subr.bf16.mxu0 0
        %2603 = vmatpush1.bf16.xpose.msra.mxu0 %v2586
        %2604 = vmatprep.subr.bf16.mxu0 0
        %2605 = vmatpush2.bf16.xpose.msra.mxu0 0
        %2606 = vmatprep.subr.bf16.mxu0 0
        %2607 = vmatpush2.bf16.xpose.msra.mxu0 0
        %2608 = vmatprep.subr.bf16.mxu0 0
        %2609 = vmatpush2.bf16.xpose.msra.mxu0 0
        %2610 = vmatprep.subr.bf16.mxu0 0
        %2611 = vmatpush2.bf16.xpose.msra.mxu0 0
        %2612 = vmatprep.subr.bf16.mxu0 0
        %2613 = vmatpush2.bf16.xpose.msra.mxu0 0
        %2614 = vmatprep.subr.bf16.mxu0 0
        %2615 = vmatpush2.bf16.xpose.msra.mxu0 0
        %2616 = vmatprep.subr.bf16.mxu0 0
        %2617 = vmatpush2.bf16.xpose.msra.mxu0 0
        %2618 = vmatprep.subr.bf16.mxu0 0
        %2619 = vmatpush2.bf16.xpose.msra.mxu0 0
        %2620 = vmatprep.mubr.bf16.mxu0 0
        %2621 = vmatmul.mubr.bf16.gmra.mxu0 %v2583
        %v2622 = vpop.f32.mrf.mxu0
        %v2623 = vadd.f32 %v1035, %v2622
        %v2624 = vpop.f32.mrf.mxu0
        %v2625 = vpop.f32.mrf.mxu0
        %v2626 = vpop.f32.mrf.mxu0
        %2627 = vdwg.mxu0
        %2628 = vrot.lane.b32.xlu0 %v2579, 96
        %v2629 = vpop.permute.xlu0 %2628
        %v2631 = vsel %vm1173, %v2579, 0
        %v2634 = vsel %vm1173, %v2629, 0
        %2636 = vmatprep.subr.bf16.mxu0 0
        %2637 = vmatpush1.bf16.xpose.msra.mxu0 0
        %2638 = vmatprep.subr.bf16.mxu0 0
        %2639 = vmatpush1.bf16.xpose.msra.mxu0 0
        %2640 = vmatprep.subr.bf16.mxu0 0
        %2641 = vmatpush1.bf16.xpose.msra.mxu0 0
        %2642 = vmatprep.subr.bf16.mxu0 0
        %2643 = vmatpush1.bf16.xpose.msra.mxu0 0
        %2644 = vmatprep.subr.bf16.mxu0 0
        %2645 = vmatpush1.bf16.xpose.msra.mxu0 0
        %2646 = vmatprep.subr.bf16.mxu0 0
        %2647 = vmatpush1.bf16.xpose.msra.mxu0 0
        %2648 = vmatprep.subr.bf16.mxu0 0
        %2649 = vmatpush1.bf16.xpose.msra.mxu0 0
        %2650 = vmatprep.subr.bf16.mxu0 0
        %2651 = vmatpush1.bf16.xpose.msra.mxu0 %v2634
        %2652 = vmatprep.subr.bf16.mxu0 0
        %2653 = vmatpush2.bf16.xpose.msra.mxu0 0
        %2654 = vmatprep.subr.bf16.mxu0 0
        %2655 = vmatpush2.bf16.xpose.msra.mxu0 0
        %2656 = vmatprep.subr.bf16.mxu0 0
        %2657 = vmatpush2.bf16.xpose.msra.mxu0 0
        %2658 = vmatprep.subr.bf16.mxu0 0
        %2659 = vmatpush2.bf16.xpose.msra.mxu0 0
        %2660 = vmatprep.subr.bf16.mxu0 0
        %2661 = vmatpush2.bf16.xpose.msra.mxu0 0
        %2662 = vmatprep.subr.bf16.mxu0 0
        %2663 = vmatpush2.bf16.xpose.msra.mxu0 0
        %2664 = vmatprep.subr.bf16.mxu0 0
        %2665 = vmatpush2.bf16.xpose.msra.mxu0 0
        %2666 = vmatprep.subr.bf16.mxu0 0
        %2667 = vmatpush2.bf16.xpose.msra.mxu0 0
        %2668 = vmatprep.mubr.bf16.mxu0 0
        %2669 = vmatmul.mubr.bf16.gmra.mxu0 %v2631
        %v2670 = vpop.f32.mrf.mxu0
        %v2671 = vadd.f32 %v1036, %v2670
        %v2672 = vpop.f32.mrf.mxu0
        %v2673 = vpop.f32.mrf.mxu0
        %v2674 = vpop.f32.mrf.mxu0
        %2675 = vdwg.mxu0
        %v2676 = vsel %vm1173, %v2623, -inf
        %2677 = vmax.xlane.f32.xlu0 %v2676
        %v2678 = vpop.xlane.xlu0 %2677
        %v2679 = vsel %vm1173, %v2671, -inf
        %2680 = vmax.xlane.f32.xlu0 %v2679
        %v2681 = vpop.xlane.xlu0 %2680
        %v2682 = vsub.f32 %v2623, %v2678
        %v2683 = vsub.f32 %v2671, %v2681
        %v2684 = vmul.f32 %v2682, 1.442695
        %v2685 = vpow.pop %v2684
        %v2686 = vmul.f32 %v2683, 1.442695
        %v2687 = vpow.pop %v2686
        %v2688 = vsel %vm1173, %v2685, 0.0
        %2689 = vadd.xlane.f32.xlu0 %v2688
        %v2690 = vpop.xlane.xlu0 %2689
        %v2691 = vsel %vm1173, %v2687, 0.0
        %2692 = vadd.xlane.f32.xlu0 %v2691
        %v2693 = vpop.xlane.xlu0 %2692
        %v2694 = vrcp.pop %v2690
        %v2695 = vrcp.pop %v2693
        %v2696 = vmul.f32 %v2685, %v2694
        %v2697 = vmul.f32 %v2687, %v2695
        %v2698 = vpack.c.bf16 %v2696, %v2696
        %v2699 = vpack.c.bf16 %v2697, %v2697
        %2700 = vrot.lane.b32.xlu0 %v2578, 64
        %v2701 = vpop.permute.xlu0 %2700
        %v2703 = vsel %vm1173, %v2698, 0
        %v2706 = vsel %vm1297, %v2701, 0
        %2708 = vmatprep.subr.bf16.mxu0 0
        %2709 = vmatpush1.bf16.msra.mxu0 0
        %2710 = vmatprep.subr.bf16.mxu0 0
        %2711 = vmatpush1.bf16.msra.mxu0 0
        %2712 = vmatprep.subr.bf16.mxu0 0
        %2713 = vmatpush1.bf16.msra.mxu0 0
        %2714 = vmatprep.subr.bf16.mxu0 0
        %2715 = vmatpush1.bf16.msra.mxu0 0
        %2716 = vmatprep.subr.bf16.mxu0 0
        %2717 = vmatpush1.bf16.msra.mxu0 0
        %2718 = vmatprep.subr.bf16.mxu0 0
        %2719 = vmatpush1.bf16.msra.mxu0 0
        %2720 = vmatprep.subr.bf16.mxu0 0
        %2721 = vmatpush1.bf16.msra.mxu0 0
        %2722 = vmatprep.subr.bf16.mxu0 0
        %2723 = vmatpush1.bf16.msra.mxu0 %v2706
        %2724 = vmatprep.subr.bf16.mxu0 0
        %2725 = vmatpush2.bf16.msra.mxu0 0
        %2726 = vmatprep.subr.bf16.mxu0 0
        %2727 = vmatpush2.bf16.msra.mxu0 0
        %2728 = vmatprep.subr.bf16.mxu0 0
        %2729 = vmatpush2.bf16.msra.mxu0 0
        %2730 = vmatprep.subr.bf16.mxu0 0
        %2731 = vmatpush2.bf16.msra.mxu0 0
        %2732 = vmatprep.subr.bf16.mxu0 0
        %2733 = vmatpush2.bf16.msra.mxu0 0
        %2734 = vmatprep.subr.bf16.mxu0 0
        %2735 = vmatpush2.bf16.msra.mxu0 0
        %2736 = vmatprep.subr.bf16.mxu0 0
        %2737 = vmatpush2.bf16.msra.mxu0 0
        %2738 = vmatprep.subr.bf16.mxu0 0
        %2739 = vmatpush2.bf16.msra.mxu0 0
        %2740 = vmatprep.mubr.bf16.mxu0 0
        %2741 = vmatmul.mubr.bf16.gmra.mxu0 %v2703
        %v2742 = vpop.f32.mrf.mxu0
        %v2743 = vadd.f32 0.0, %v2742
        %v2744 = vpop.f32.mrf.mxu0
        %v2745 = vpop.f32.mrf.mxu0
        %v2746 = vpop.f32.mrf.mxu0
        %2747 = vdwg.mxu0
        %2748 = vrot.lane.b32.xlu0 %v2579, 64
        %v2749 = vpop.permute.xlu0 %2748
        %v2751 = vsel %vm1173, %v2699, 0
        %v2754 = vsel %vm1297, %v2749, 0
        %2756 = vmatprep.subr.bf16.mxu0 0
        %2757 = vmatpush1.bf16.msra.mxu0 0
        %2758 = vmatprep.subr.bf16.mxu0 0
        %2759 = vmatpush1.bf16.msra.mxu0 0
        %2760 = vmatprep.subr.bf16.mxu0 0
        %2761 = vmatpush1.bf16.msra.mxu0 0
        %2762 = vmatprep.subr.bf16.mxu0 0
        %2763 = vmatpush1.bf16.msra.mxu0 0
        %2764 = vmatprep.subr.bf16.mxu0 0
        %2765 = vmatpush1.bf16.msra.mxu0 0
        %2766 = vmatprep.subr.bf16.mxu0 0
        %2767 = vmatpush1.bf16.msra.mxu0 0
        %2768 = vmatprep.subr.bf16.mxu0 0
        %2769 = vmatpush1.bf16.msra.mxu0 0
        %2770 = vmatprep.subr.bf16.mxu0 0
        %2771 = vmatpush1.bf16.msra.mxu0 %v2754
        %2772 = vmatprep.subr.bf16.mxu0 0
        %2773 = vmatpush2.bf16.msra.mxu0 0
        %2774 = vmatprep.subr.bf16.mxu0 0
        %2775 = vmatpush2.bf16.msra.mxu0 0
        %2776 = vmatprep.subr.bf16.mxu0 0
        %2777 = vmatpush2.bf16.msra.mxu0 0
        %2778 = vmatprep.subr.bf16.mxu0 0
        %2779 = vmatpush2.bf16.msra.mxu0 0
        %2780 = vmatprep.subr.bf16.mxu0 0
        %2781 = vmatpush2.bf16.msra.mxu0 0
        %2782 = vmatprep.subr.bf16.mxu0 0
        %2783 = vmatpush2.bf16.msra.mxu0 0
        %2784 = vmatprep.subr.bf16.mxu0 0
        %2785 = vmatpush2.bf16.msra.mxu0 0
        %2786 = vmatprep.subr.bf16.mxu0 0
        %2787 = vmatpush2.bf16.msra.mxu0 0
        %2788 = vmatprep.mubr.bf16.mxu0 0
        %2789 = vmatmul.mubr.bf16.gmra.mxu0 %v2751
        %v2790 = vpop.f32.mrf.mxu0
        %v2791 = vadd.f32 0.0, %v2790
        %v2792 = vpop.f32.mrf.mxu0
        %v2793 = vpop.f32.mrf.mxu0
        %v2794 = vpop.f32.mrf.mxu0
        %2795 = vdwg.mxu0
        %v2796 = vpack.c.bf16 %v2791, %v2743
        %2797 = vrot.lane.b32.xlu0 %v2578, 120
        %v2798 = vpop.permute.xlu0 %2797
        %2799 = vrot.lane.b32.xlu0 %v2578, 88
        %v2800 = vpop.permute.xlu0 %2799
        %v2802 = vsel %vm1173, %v2798, 0
        %v2805 = vsel %vm1173, %v2800, 0
        %2807 = vmatprep.subr.bf16.mxu0 0
        %2808 = vmatpush1.bf16.xpose.msra.mxu0 0
        %2809 = vmatprep.subr.bf16.mxu0 0
        %2810 = vmatpush1.bf16.xpose.msra.mxu0 0
        %2811 = vmatprep.subr.bf16.mxu0 0
        %2812 = vmatpush1.bf16.xpose.msra.mxu0 0
        %2813 = vmatprep.subr.bf16.mxu0 0
        %2814 = vmatpush1.bf16.xpose.msra.mxu0 0
        %2815 = vmatprep.subr.bf16.mxu0 0
        %2816 = vmatpush1.bf16.xpose.msra.mxu0 0
        %2817 = vmatprep.subr.bf16.mxu0 0
        %2818 = vmatpush1.bf16.xpose.msra.mxu0 0
        %2819 = vmatprep.subr.bf16.mxu0 0
        %2820 = vmatpush1.bf16.xpose.msra.mxu0 0
        %2821 = vmatprep.subr.bf16.mxu0 0
        %2822 = vmatpush1.bf16.xpose.msra.mxu0 %v2805
        %2823 = vmatprep.subr.bf16.mxu0 0
        %2824 = vmatpush2.bf16.xpose.msra.mxu0 0
        %2825 = vmatprep.subr.bf16.mxu0 0
        %2826 = vmatpush2.bf16.xpose.msra.mxu0 0
        %2827 = vmatprep.subr.bf16.mxu0 0
        %2828 = vmatpush2.bf16.xpose.msra.mxu0 0
        %2829 = vmatprep.subr.bf16.mxu0 0
        %2830 = vmatpush2.bf16.xpose.msra.mxu0 0
        %2831 = vmatprep.subr.bf16.mxu0 0
        %2832 = vmatpush2.bf16.xpose.msra.mxu0 0
        %2833 = vmatprep.subr.bf16.mxu0 0
        %2834 = vmatpush2.bf16.xpose.msra.mxu0 0
        %2835 = vmatprep.subr.bf16.mxu0 0
        %2836 = vmatpush2.bf16.xpose.msra.mxu0 0
        %2837 = vmatprep.subr.bf16.mxu0 0
        %2838 = vmatpush2.bf16.xpose.msra.mxu0 0
        %2839 = vmatprep.mubr.bf16.mxu0 0
        %2840 = vmatmul.mubr.bf16.gmra.mxu0 %v2802
        %v2841 = vpop.f32.mrf.mxu0
        %v2842 = vadd.f32 %v1035, %v2841
        %v2843 = vpop.f32.mrf.mxu0
        %v2844 = vpop.f32.mrf.mxu0
        %v2845 = vpop.f32.mrf.mxu0
        %2846 = vdwg.mxu0
        %2847 = vrot.lane.b32.xlu0 %v2579, 120
        %v2848 = vpop.permute.xlu0 %2847
        %2849 = vrot.lane.b32.xlu0 %v2579, 88
        %v2850 = vpop.permute.xlu0 %2849
        %v2852 = vsel %vm1173, %v2848, 0
        %v2855 = vsel %vm1173, %v2850, 0
        %2857 = vmatprep.subr.bf16.mxu0 0
        %2858 = vmatpush1.bf16.xpose.msra.mxu0 0
        %2859 = vmatprep.subr.bf16.mxu0 0
        %2860 = vmatpush1.bf16.xpose.msra.mxu0 0
        %2861 = vmatprep.subr.bf16.mxu0 0
        %2862 = vmatpush1.bf16.xpose.msra.mxu0 0
        %2863 = vmatprep.subr.bf16.mxu0 0
        %2864 = vmatpush1.bf16.xpose.msra.mxu0 0
        %2865 = vmatprep.subr.bf16.mxu0 0
        %2866 = vmatpush1.bf16.xpose.msra.mxu0 0
        %2867 = vmatprep.subr.bf16.mxu0 0
        %2868 = vmatpush1.bf16.xpose.msra.mxu0 0
        %2869 = vmatprep.subr.bf16.mxu0 0
        %2870 = vmatpush1.bf16.xpose.msra.mxu0 0
        %2871 = vmatprep.subr.bf16.mxu0 0
        %2872 = vmatpush1.bf16.xpose.msra.mxu0 %v2855
        %2873 = vmatprep.subr.bf16.mxu0 0
        %2874 = vmatpush2.bf16.xpose.msra.mxu0 0
        %2875 = vmatprep.subr.bf16.mxu0 0
        %2876 = vmatpush2.bf16.xpose.msra.mxu0 0
        %2877 = vmatprep.subr.bf16.mxu0 0
        %2878 = vmatpush2.bf16.xpose.msra.mxu0 0
        %2879 = vmatprep.subr.bf16.mxu0 0
        %2880 = vmatpush2.bf16.xpose.msra.mxu0 0
        %2881 = vmatprep.subr.bf16.mxu0 0
        %2882 = vmatpush2.bf16.xpose.msra.mxu0 0
        %2883 = vmatprep.subr.bf16.mxu0 0
        %2884 = vmatpush2.bf16.xpose.msra.mxu0 0
        %2885 = vmatprep.subr.bf16.mxu0 0
        %2886 = vmatpush2.bf16.xpose.msra.mxu0 0
        %2887 = vmatprep.subr.bf16.mxu0 0
        %2888 = vmatpush2.bf16.xpose.msra.mxu0 0
        %2889 = vmatprep.mubr.bf16.mxu0 0
        %2890 = vmatmul.mubr.bf16.gmra.mxu0 %v2852
        %v2891 = vpop.f32.mrf.mxu0
        %v2892 = vadd.f32 %v1036, %v2891
        %v2893 = vpop.f32.mrf.mxu0
        %v2894 = vpop.f32.mrf.mxu0
        %v2895 = vpop.f32.mrf.mxu0
        %2896 = vdwg.mxu0
        %v2897 = vsel %vm1173, %v2842, -inf
        %2898 = vmax.xlane.f32.xlu0 %v2897
        %v2899 = vpop.xlane.xlu0 %2898
        %v2900 = vsel %vm1173, %v2892, -inf
        %2901 = vmax.xlane.f32.xlu0 %v2900
        %v2902 = vpop.xlane.xlu0 %2901
        %v2903 = vsub.f32 %v2842, %v2899
        %v2904 = vsub.f32 %v2892, %v2902
        %v2905 = vmul.f32 %v2903, 1.442695
        %v2906 = vpow.pop %v2905
        %v2907 = vmul.f32 %v2904, 1.442695
        %v2908 = vpow.pop %v2907
        %v2909 = vsel %vm1173, %v2906, 0.0
        %2910 = vadd.xlane.f32.xlu0 %v2909
        %v2911 = vpop.xlane.xlu0 %2910
        %v2912 = vsel %vm1173, %v2908, 0.0
        %2913 = vadd.xlane.f32.xlu0 %v2912
        %v2914 = vpop.xlane.xlu0 %2913
        %v2915 = vrcp.pop %v2911
        %v2916 = vrcp.pop %v2914
        %v2917 = vmul.f32 %v2906, %v2915
        %v2918 = vmul.f32 %v2908, %v2916
        %v2919 = vpack.c.bf16 %v2917, %v2917
        %v2920 = vpack.c.bf16 %v2918, %v2918
        %2921 = vrot.lane.b32.xlu0 %v2578, 56
        %v2922 = vpop.permute.xlu0 %2921
        %v2924 = vsel %vm1173, %v2919, 0
        %v2927 = vsel %vm1297, %v2922, 0
        %2929 = vmatprep.subr.bf16.mxu0 0
        %2930 = vmatpush1.bf16.msra.mxu0 0
        %2931 = vmatprep.subr.bf16.mxu0 0
        %2932 = vmatpush1.bf16.msra.mxu0 0
        %2933 = vmatprep.subr.bf16.mxu0 0
        %2934 = vmatpush1.bf16.msra.mxu0 0
        %2935 = vmatprep.subr.bf16.mxu0 0
        %2936 = vmatpush1.bf16.msra.mxu0 0
        %2937 = vmatprep.subr.bf16.mxu0 0
        %2938 = vmatpush1.bf16.msra.mxu0 0
        %2939 = vmatprep.subr.bf16.mxu0 0
        %2940 = vmatpush1.bf16.msra.mxu0 0
        %2941 = vmatprep.subr.bf16.mxu0 0
        %2942 = vmatpush1.bf16.msra.mxu0 0
        %2943 = vmatprep.subr.bf16.mxu0 0
        %2944 = vmatpush1.bf16.msra.mxu0 %v2927
        %2945 = vmatprep.subr.bf16.mxu0 0
        %2946 = vmatpush2.bf16.msra.mxu0 0
        %2947 = vmatprep.subr.bf16.mxu0 0
        %2948 = vmatpush2.bf16.msra.mxu0 0
        %2949 = vmatprep.subr.bf16.mxu0 0
        %2950 = vmatpush2.bf16.msra.mxu0 0
        %2951 = vmatprep.subr.bf16.mxu0 0
        %2952 = vmatpush2.bf16.msra.mxu0 0
        %2953 = vmatprep.subr.bf16.mxu0 0
        %2954 = vmatpush2.bf16.msra.mxu0 0
        %2955 = vmatprep.subr.bf16.mxu0 0
        %2956 = vmatpush2.bf16.msra.mxu0 0
        %2957 = vmatprep.subr.bf16.mxu0 0
        %2958 = vmatpush2.bf16.msra.mxu0 0
        %2959 = vmatprep.subr.bf16.mxu0 0
        %2960 = vmatpush2.bf16.msra.mxu0 0
        %2961 = vmatprep.mubr.bf16.mxu0 0
        %2962 = vmatmul.mubr.bf16.gmra.mxu0 %v2924
        %v2963 = vpop.f32.mrf.mxu0
        %v2964 = vadd.f32 0.0, %v2963
        %v2965 = vpop.f32.mrf.mxu0
        %v2966 = vpop.f32.mrf.mxu0
        %v2967 = vpop.f32.mrf.mxu0
        %2968 = vdwg.mxu0
        %2969 = vrot.lane.b32.xlu0 %v2579, 56
        %v2970 = vpop.permute.xlu0 %2969
        %v2972 = vsel %vm1173, %v2920, 0
        %v2975 = vsel %vm1297, %v2970, 0
        %2977 = vmatprep.subr.bf16.mxu0 0
        %2978 = vmatpush1.bf16.msra.mxu0 0
        %2979 = vmatprep.subr.bf16.mxu0 0
        %2980 = vmatpush1.bf16.msra.mxu0 0
        %2981 = vmatprep.subr.bf16.mxu0 0
        %2982 = vmatpush1.bf16.msra.mxu0 0
        %2983 = vmatprep.subr.bf16.mxu0 0
        %2984 = vmatpush1.bf16.msra.mxu0 0
        %2985 = vmatprep.subr.bf16.mxu0 0
        %2986 = vmatpush1.bf16.msra.mxu0 0
        %2987 = vmatprep.subr.bf16.mxu0 0
        %2988 = vmatpush1.bf16.msra.mxu0 0
        %2989 = vmatprep.subr.bf16.mxu0 0
        %2990 = vmatpush1.bf16.msra.mxu0 0
        %2991 = vmatprep.subr.bf16.mxu0 0
        %2992 = vmatpush1.bf16.msra.mxu0 %v2975
        %2993 = vmatprep.subr.bf16.mxu0 0
        %2994 = vmatpush2.bf16.msra.mxu0 0
        %2995 = vmatprep.subr.bf16.mxu0 0
        %2996 = vmatpush2.bf16.msra.mxu0 0
        %2997 = vmatprep.subr.bf16.mxu0 0
        %2998 = vmatpush2.bf16.msra.mxu0 0
        %2999 = vmatprep.subr.bf16.mxu0 0
        %3000 = vmatpush2.bf16.msra.mxu0 0
        %3001 = vmatprep.subr.bf16.mxu0 0
        %3002 = vmatpush2.bf16.msra.mxu0 0
        %3003 = vmatprep.subr.bf16.mxu0 0
        %3004 = vmatpush2.bf16.msra.mxu0 0
        %3005 = vmatprep.subr.bf16.mxu0 0
        %3006 = vmatpush2.bf16.msra.mxu0 0
        %3007 = vmatprep.subr.bf16.mxu0 0
        %3008 = vmatpush2.bf16.msra.mxu0 0
        %3009 = vmatprep.mubr.bf16.mxu0 0
        %3010 = vmatmul.mubr.bf16.gmra.mxu0 %v2972
        %v3011 = vpop.f32.mrf.mxu0
        %v3012 = vadd.f32 0.0, %v3011
        %v3013 = vpop.f32.mrf.mxu0
        %v3014 = vpop.f32.mrf.mxu0
        %v3015 = vpop.f32.mrf.mxu0
        %3016 = vdwg.mxu0
        %v3017 = vpack.c.bf16 %v3012, %v2964
        %v3019 = vsel %vm1173, %v3017, 0
        %v3022 = vsel %vm1297, %v2572, 0
        %3024 = vmatprep.subr.bf16.mxu0 0
        %3025 = vmatpush1.bf16.msra.mxu0 0
        %3026 = vmatprep.subr.bf16.mxu0 0
        %3027 = vmatpush1.bf16.msra.mxu0 0
        %3028 = vmatprep.subr.bf16.mxu0 0
        %3029 = vmatpush1.bf16.msra.mxu0 0
        %3030 = vmatprep.subr.bf16.mxu0 0
        %3031 = vmatpush1.bf16.msra.mxu0 0
        %3032 = vmatprep.subr.bf16.mxu0 0
        %3033 = vmatpush1.bf16.msra.mxu0 0
        %3034 = vmatprep.subr.bf16.mxu0 0
        %3035 = vmatpush1.bf16.msra.mxu0 0
        %3036 = vmatprep.subr.bf16.mxu0 0
        %3037 = vmatpush1.bf16.msra.mxu0 0
        %3038 = vmatprep.subr.bf16.mxu0 0
        %3039 = vmatpush1.bf16.msra.mxu0 %v3022
        %3040 = vmatprep.subr.bf16.mxu0 0
        %3041 = vmatpush2.bf16.msra.mxu0 0
        %3042 = vmatprep.subr.bf16.mxu0 0
        %3043 = vmatpush2.bf16.msra.mxu0 0
        %3044 = vmatprep.subr.bf16.mxu0 0
        %3045 = vmatpush2.bf16.msra.mxu0 0
        %3046 = vmatprep.subr.bf16.mxu0 0
        %3047 = vmatpush2.bf16.msra.mxu0 0
        %3048 = vmatprep.subr.bf16.mxu0 0
        %3049 = vmatpush2.bf16.msra.mxu0 0
        %3050 = vmatprep.subr.bf16.mxu0 0
        %3051 = vmatpush2.bf16.msra.mxu0 0
        %3052 = vmatprep.subr.bf16.mxu0 0
        %3053 = vmatpush2.bf16.msra.mxu0 0
        %3054 = vmatprep.subr.bf16.mxu0 0
        %3055 = vmatpush2.bf16.msra.mxu0 0
        %3056 = vmatprep.mubr.bf16.mxu0 0
        %3057 = vmatmul.mubr.bf16.gmra.mxu0 %v3019
        %v3058 = vpop.f32.mrf.mxu0
        %v3059 = vadd.f32 0.0, %v3058
        %v3060 = vpop.f32.mrf.mxu0
        %v3061 = vpop.f32.mrf.mxu0
        %v3062 = vadd.f32 0.0, %v3061
        %v3063 = vpop.f32.mrf.mxu0
        %3064 = vdwg.mxu0
        %v3066 = vsel %vm1173, %v2796, 0
        %v3069 = vsel %vm1297, %v2571, 0
        %3071 = vmatprep.subr.bf16.mxu0 0
        %3072 = vmatpush1.bf16.msra.mxu0 0
        %3073 = vmatprep.subr.bf16.mxu0 0
        %3074 = vmatpush1.bf16.msra.mxu0 0
        %3075 = vmatprep.subr.bf16.mxu0 0
        %3076 = vmatpush1.bf16.msra.mxu0 0
        %3077 = vmatprep.subr.bf16.mxu0 0
        %3078 = vmatpush1.bf16.msra.mxu0 0
        %3079 = vmatprep.subr.bf16.mxu0 0
        %3080 = vmatpush1.bf16.msra.mxu0 0
        %3081 = vmatprep.subr.bf16.mxu0 0
        %3082 = vmatpush1.bf16.msra.mxu0 0
        %3083 = vmatprep.subr.bf16.mxu0 0
        %3084 = vmatpush1.bf16.msra.mxu0 0
        %3085 = vmatprep.subr.bf16.mxu0 0
        %3086 = vmatpush1.bf16.msra.mxu0 %v3069
        %3087 = vmatprep.subr.bf16.mxu0 0
        %3088 = vmatpush2.bf16.msra.mxu0 0
        %3089 = vmatprep.subr.bf16.mxu0 0
        %3090 = vmatpush2.bf16.msra.mxu0 0
        %3091 = vmatprep.subr.bf16.mxu0 0
        %3092 = vmatpush2.bf16.msra.mxu0 0
        %3093 = vmatprep.subr.bf16.mxu0 0
        %3094 = vmatpush2.bf16.msra.mxu0 0
        %3095 = vmatprep.subr.bf16.mxu0 0
        %3096 = vmatpush2.bf16.msra.mxu0 0
        %3097 = vmatprep.subr.bf16.mxu0 0
        %3098 = vmatpush2.bf16.msra.mxu0 0
        %3099 = vmatprep.subr.bf16.mxu0 0
        %3100 = vmatpush2.bf16.msra.mxu0 0
        %3101 = vmatprep.subr.bf16.mxu0 0
        %3102 = vmatpush2.bf16.msra.mxu0 0
        %3103 = vmatprep.mubr.bf16.mxu0 0
        %3104 = vmatmul.mubr.bf16.gmra.mxu0 %v3066
        %v3105 = vpop.f32.mrf.mxu0
        %v3106 = vadd.f32 %v3059, %v3105
        %v3107 = vpop.f32.mrf.mxu0
        %v3108 = vpop.f32.mrf.mxu0
        %v3109 = vadd.f32 %v3062, %v3108
        %v3110 = vpop.f32.mrf.mxu0
        %3111 = vdwg.mxu0
        %3112 = vrot.lane.b32.xlu0 %v2578, 112
        %v3113 = vpop.permute.xlu0 %3112
        %3114 = vrot.lane.b32.xlu0 %v2578, 80
        %v3115 = vpop.permute.xlu0 %3114
        %v3117 = vsel %vm1173, %v3113, 0
        %v3120 = vsel %vm1173, %v3115, 0
        %3122 = vmatprep.subr.bf16.mxu0 0
        %3123 = vmatpush1.bf16.xpose.msra.mxu0 0
        %3124 = vmatprep.subr.bf16.mxu0 0
        %3125 = vmatpush1.bf16.xpose.msra.mxu0 0
        %3126 = vmatprep.subr.bf16.mxu0 0
        %3127 = vmatpush1.bf16.xpose.msra.mxu0 0
        %3128 = vmatprep.subr.bf16.mxu0 0
        %3129 = vmatpush1.bf16.xpose.msra.mxu0 0
        %3130 = vmatprep.subr.bf16.mxu0 0
        %3131 = vmatpush1.bf16.xpose.msra.mxu0 0
        %3132 = vmatprep.subr.bf16.mxu0 0
        %3133 = vmatpush1.bf16.xpose.msra.mxu0 0
        %3134 = vmatprep.subr.bf16.mxu0 0
        %3135 = vmatpush1.bf16.xpose.msra.mxu0 0
        %3136 = vmatprep.subr.bf16.mxu0 0
        %3137 = vmatpush1.bf16.xpose.msra.mxu0 %v3120
        %3138 = vmatprep.subr.bf16.mxu0 0
        %3139 = vmatpush2.bf16.xpose.msra.mxu0 0
        %3140 = vmatprep.subr.bf16.mxu0 0
        %3141 = vmatpush2.bf16.xpose.msra.mxu0 0
        %3142 = vmatprep.subr.bf16.mxu0 0
        %3143 = vmatpush2.bf16.xpose.msra.mxu0 0
        %3144 = vmatprep.subr.bf16.mxu0 0
        %3145 = vmatpush2.bf16.xpose.msra.mxu0 0
        %3146 = vmatprep.subr.bf16.mxu0 0
        %3147 = vmatpush2.bf16.xpose.msra.mxu0 0
        %3148 = vmatprep.subr.bf16.mxu0 0
        %3149 = vmatpush2.bf16.xpose.msra.mxu0 0
        %3150 = vmatprep.subr.bf16.mxu0 0
        %3151 = vmatpush2.bf16.xpose.msra.mxu0 0
        %3152 = vmatprep.subr.bf16.mxu0 0
        %3153 = vmatpush2.bf16.xpose.msra.mxu0 0
        %3154 = vmatprep.mubr.bf16.mxu0 0
        %3155 = vmatmul.mubr.bf16.gmra.mxu0 %v3117
        %v3156 = vpop.f32.mrf.mxu0
        %v3157 = vadd.f32 %v1035, %v3156
        %v3158 = vpop.f32.mrf.mxu0
        %v3159 = vpop.f32.mrf.mxu0
        %v3160 = vpop.f32.mrf.mxu0
        %3161 = vdwg.mxu0
        %3162 = vrot.lane.b32.xlu0 %v2579, 112
        %v3163 = vpop.permute.xlu0 %3162
        %3164 = vrot.lane.b32.xlu0 %v2579, 80
        %v3165 = vpop.permute.xlu0 %3164
        %v3167 = vsel %vm1173, %v3163, 0
        %v3170 = vsel %vm1173, %v3165, 0
        %3172 = vmatprep.subr.bf16.mxu0 0
        %3173 = vmatpush1.bf16.xpose.msra.mxu0 0
        %3174 = vmatprep.subr.bf16.mxu0 0
        %3175 = vmatpush1.bf16.xpose.msra.mxu0 0
        %3176 = vmatprep.subr.bf16.mxu0 0
        %3177 = vmatpush1.bf16.xpose.msra.mxu0 0
        %3178 = vmatprep.subr.bf16.mxu0 0
        %3179 = vmatpush1.bf16.xpose.msra.mxu0 0
        %3180 = vmatprep.subr.bf16.mxu0 0
        %3181 = vmatpush1.bf16.xpose.msra.mxu0 0
        %3182 = vmatprep.subr.bf16.mxu0 0
        %3183 = vmatpush1.bf16.xpose.msra.mxu0 0
        %3184 = vmatprep.subr.bf16.mxu0 0
        %3185 = vmatpush1.bf16.xpose.msra.mxu0 0
        %3186 = vmatprep.subr.bf16.mxu0 0
        %3187 = vmatpush1.bf16.xpose.msra.mxu0 %v3170
        %3188 = vmatprep.subr.bf16.mxu0 0
        %3189 = vmatpush2.bf16.xpose.msra.mxu0 0
        %3190 = vmatprep.subr.bf16.mxu0 0
        %3191 = vmatpush2.bf16.xpose.msra.mxu0 0
        %3192 = vmatprep.subr.bf16.mxu0 0
        %3193 = vmatpush2.bf16.xpose.msra.mxu0 0
        %3194 = vmatprep.subr.bf16.mxu0 0
        %3195 = vmatpush2.bf16.xpose.msra.mxu0 0
        %3196 = vmatprep.subr.bf16.mxu0 0
        %3197 = vmatpush2.bf16.xpose.msra.mxu0 0
        %3198 = vmatprep.subr.bf16.mxu0 0
        %3199 = vmatpush2.bf16.xpose.msra.mxu0 0
        %3200 = vmatprep.subr.bf16.mxu0 0
        %3201 = vmatpush2.bf16.xpose.msra.mxu0 0
        %3202 = vmatprep.subr.bf16.mxu0 0
        %3203 = vmatpush2.bf16.xpose.msra.mxu0 0
        %3204 = vmatprep.mubr.bf16.mxu0 0
        %3205 = vmatmul.mubr.bf16.gmra.mxu0 %v3167
        %v3206 = vpop.f32.mrf.mxu0
        %v3207 = vadd.f32 %v1036, %v3206
        %v3208 = vpop.f32.mrf.mxu0
        %v3209 = vpop.f32.mrf.mxu0
        %v3210 = vpop.f32.mrf.mxu0
        %3211 = vdwg.mxu0
        %v3212 = vsel %vm1173, %v3157, -inf
        %3213 = vmax.xlane.f32.xlu0 %v3212
        %v3214 = vpop.xlane.xlu0 %3213
        %v3215 = vsel %vm1173, %v3207, -inf
        %3216 = vmax.xlane.f32.xlu0 %v3215
        %v3217 = vpop.xlane.xlu0 %3216
        %v3218 = vsub.f32 %v3157, %v3214
        %v3219 = vsub.f32 %v3207, %v3217
        %v3220 = vmul.f32 %v3218, 1.442695
        %v3221 = vpow.pop %v3220
        %v3222 = vmul.f32 %v3219, 1.442695
        %v3223 = vpow.pop %v3222
        %v3224 = vsel %vm1173, %v3221, 0.0
        %3225 = vadd.xlane.f32.xlu0 %v3224
        %v3226 = vpop.xlane.xlu0 %3225
        %v3227 = vsel %vm1173, %v3223, 0.0
        %3228 = vadd.xlane.f32.xlu0 %v3227
        %v3229 = vpop.xlane.xlu0 %3228
        %v3230 = vrcp.pop %v3226
        %v3231 = vrcp.pop %v3229
        %v3232 = vmul.f32 %v3221, %v3230
        %v3233 = vmul.f32 %v3223, %v3231
        %v3234 = vpack.c.bf16 %v3232, %v3232
        %v3235 = vpack.c.bf16 %v3233, %v3233
        %3236 = vrot.lane.b32.xlu0 %v2578, 48
        %v3237 = vpop.permute.xlu0 %3236
        %v3239 = vsel %vm1173, %v3234, 0
        %v3242 = vsel %vm1297, %v3237, 0
        %3244 = vmatprep.subr.bf16.mxu0 0
        %3245 = vmatpush1.bf16.msra.mxu0 0
        %3246 = vmatprep.subr.bf16.mxu0 0
        %3247 = vmatpush1.bf16.msra.mxu0 0
        %3248 = vmatprep.subr.bf16.mxu0 0
        %3249 = vmatpush1.bf16.msra.mxu0 0
        %3250 = vmatprep.subr.bf16.mxu0 0
        %3251 = vmatpush1.bf16.msra.mxu0 0
        %3252 = vmatprep.subr.bf16.mxu0 0
        %3253 = vmatpush1.bf16.msra.mxu0 0
        %3254 = vmatprep.subr.bf16.mxu0 0
        %3255 = vmatpush1.bf16.msra.mxu0 0
        %3256 = vmatprep.subr.bf16.mxu0 0
        %3257 = vmatpush1.bf16.msra.mxu0 0
        %3258 = vmatprep.subr.bf16.mxu0 0
        %3259 = vmatpush1.bf16.msra.mxu0 %v3242
        %3260 = vmatprep.subr.bf16.mxu0 0
        %3261 = vmatpush2.bf16.msra.mxu0 0
        %3262 = vmatprep.subr.bf16.mxu0 0
        %3263 = vmatpush2.bf16.msra.mxu0 0
        %3264 = vmatprep.subr.bf16.mxu0 0
        %3265 = vmatpush2.bf16.msra.mxu0 0
        %3266 = vmatprep.subr.bf16.mxu0 0
        %3267 = vmatpush2.bf16.msra.mxu0 0
        %3268 = vmatprep.subr.bf16.mxu0 0
        %3269 = vmatpush2.bf16.msra.mxu0 0
        %3270 = vmatprep.subr.bf16.mxu0 0
        %3271 = vmatpush2.bf16.msra.mxu0 0
        %3272 = vmatprep.subr.bf16.mxu0 0
        %3273 = vmatpush2.bf16.msra.mxu0 0
        %3274 = vmatprep.subr.bf16.mxu0 0
        %3275 = vmatpush2.bf16.msra.mxu0 0
        %3276 = vmatprep.mubr.bf16.mxu0 0
        %3277 = vmatmul.mubr.bf16.gmra.mxu0 %v3239
        %v3278 = vpop.f32.mrf.mxu0
        %v3279 = vadd.f32 0.0, %v3278
        %v3280 = vpop.f32.mrf.mxu0
        %v3281 = vpop.f32.mrf.mxu0
        %v3282 = vpop.f32.mrf.mxu0
        %3283 = vdwg.mxu0
        %3284 = vrot.lane.b32.xlu0 %v2579, 48
        %v3285 = vpop.permute.xlu0 %3284
        %v3287 = vsel %vm1173, %v3235, 0
        %v3290 = vsel %vm1297, %v3285, 0
        %3292 = vmatprep.subr.bf16.mxu0 0
        %3293 = vmatpush1.bf16.msra.mxu0 0
        %3294 = vmatprep.subr.bf16.mxu0 0
        %3295 = vmatpush1.bf16.msra.mxu0 0
        %3296 = vmatprep.subr.bf16.mxu0 0
        %3297 = vmatpush1.bf16.msra.mxu0 0
        %3298 = vmatprep.subr.bf16.mxu0 0
        %3299 = vmatpush1.bf16.msra.mxu0 0
        %3300 = vmatprep.subr.bf16.mxu0 0
        %3301 = vmatpush1.bf16.msra.mxu0 0
        %3302 = vmatprep.subr.bf16.mxu0 0
        %3303 = vmatpush1.bf16.msra.mxu0 0
        %3304 = vmatprep.subr.bf16.mxu0 0
        %3305 = vmatpush1.bf16.msra.mxu0 0
        %3306 = vmatprep.subr.bf16.mxu0 0
        %3307 = vmatpush1.bf16.msra.mxu0 %v3290
        %3308 = vmatprep.subr.bf16.mxu0 0
        %3309 = vmatpush2.bf16.msra.mxu0 0
        %3310 = vmatprep.subr.bf16.mxu0 0
        %3311 = vmatpush2.bf16.msra.mxu0 0
        %3312 = vmatprep.subr.bf16.mxu0 0
        %3313 = vmatpush2.bf16.msra.mxu0 0
        %3314 = vmatprep.subr.bf16.mxu0 0
        %3315 = vmatpush2.bf16.msra.mxu0 0
        %3316 = vmatprep.subr.bf16.mxu0 0
        %3317 = vmatpush2.bf16.msra.mxu0 0
        %3318 = vmatprep.subr.bf16.mxu0 0
        %3319 = vmatpush2.bf16.msra.mxu0 0
        %3320 = vmatprep.subr.bf16.mxu0 0
        %3321 = vmatpush2.bf16.msra.mxu0 0
        %3322 = vmatprep.subr.bf16.mxu0 0
        %3323 = vmatpush2.bf16.msra.mxu0 0
        %3324 = vmatprep.mubr.bf16.mxu0 0
        %3325 = vmatmul.mubr.bf16.gmra.mxu0 %v3287
        %v3326 = vpop.f32.mrf.mxu0
        %v3327 = vadd.f32 0.0, %v3326
        %v3328 = vpop.f32.mrf.mxu0
        %v3329 = vpop.f32.mrf.mxu0
        %v3330 = vpop.f32.mrf.mxu0
        %3331 = vdwg.mxu0
        %v3332 = vpack.c.bf16 %v3327, %v3279
        %v3334 = vsel %vm1173, %v3332, 0
        %v3337 = vsel %vm1297, %v2573, 0
        %3339 = vmatprep.subr.bf16.mxu0 0
        %3340 = vmatpush1.bf16.msra.mxu0 0
        %3341 = vmatprep.subr.bf16.mxu0 0
        %3342 = vmatpush1.bf16.msra.mxu0 0
        %3343 = vmatprep.subr.bf16.mxu0 0
        %3344 = vmatpush1.bf16.msra.mxu0 0
        %3345 = vmatprep.subr.bf16.mxu0 0
        %3346 = vmatpush1.bf16.msra.mxu0 0
        %3347 = vmatprep.subr.bf16.mxu0 0
        %3348 = vmatpush1.bf16.msra.mxu0 0
        %3349 = vmatprep.subr.bf16.mxu0 0
        %3350 = vmatpush1.bf16.msra.mxu0 0
        %3351 = vmatprep.subr.bf16.mxu0 0
        %3352 = vmatpush1.bf16.msra.mxu0 0
        %3353 = vmatprep.subr.bf16.mxu0 0
        %3354 = vmatpush1.bf16.msra.mxu0 %v3337
        %3355 = vmatprep.subr.bf16.mxu0 0
        %3356 = vmatpush2.bf16.msra.mxu0 0
        %3357 = vmatprep.subr.bf16.mxu0 0
        %3358 = vmatpush2.bf16.msra.mxu0 0
        %3359 = vmatprep.subr.bf16.mxu0 0
        %3360 = vmatpush2.bf16.msra.mxu0 0
        %3361 = vmatprep.subr.bf16.mxu0 0
        %3362 = vmatpush2.bf16.msra.mxu0 0
        %3363 = vmatprep.subr.bf16.mxu0 0
        %3364 = vmatpush2.bf16.msra.mxu0 0
        %3365 = vmatprep.subr.bf16.mxu0 0
        %3366 = vmatpush2.bf16.msra.mxu0 0
        %3367 = vmatprep.subr.bf16.mxu0 0
        %3368 = vmatpush2.bf16.msra.mxu0 0
        %3369 = vmatprep.subr.bf16.mxu0 0
        %3370 = vmatpush2.bf16.msra.mxu0 0
        %3371 = vmatprep.mubr.bf16.mxu0 0
        %3372 = vmatmul.mubr.bf16.gmra.mxu0 %v3334
        %v3373 = vpop.f32.mrf.mxu0
        %v3374 = vadd.f32 0.0, %v3373
        %v3375 = vpop.f32.mrf.mxu0
        %v3376 = vpop.f32.mrf.mxu0
        %v3377 = vadd.f32 0.0, %v3376
        %v3378 = vpop.f32.mrf.mxu0
        %3379 = vdwg.mxu0
        %v3380 = vadd.f32 %v3106, %v3374
        %v3381 = vadd.f32 %v3109, %v3377
        %3382 = vrot.lane.b32.xlu0 %v2578, 104
        %v3383 = vpop.permute.xlu0 %3382
        %3384 = vrot.lane.b32.xlu0 %v2578, 72
        %v3385 = vpop.permute.xlu0 %3384
        %v3387 = vsel %vm1173, %v3383, 0
        %v3390 = vsel %vm1173, %v3385, 0
        %3392 = vmatprep.subr.bf16.mxu0 0
        %3393 = vmatpush1.bf16.xpose.msra.mxu0 0
        %3394 = vmatprep.subr.bf16.mxu0 0
        %3395 = vmatpush1.bf16.xpose.msra.mxu0 0
        %3396 = vmatprep.subr.bf16.mxu0 0
        %3397 = vmatpush1.bf16.xpose.msra.mxu0 0
        %3398 = vmatprep.subr.bf16.mxu0 0
        %3399 = vmatpush1.bf16.xpose.msra.mxu0 0
        %3400 = vmatprep.subr.bf16.mxu0 0
        %3401 = vmatpush1.bf16.xpose.msra.mxu0 0
        %3402 = vmatprep.subr.bf16.mxu0 0
        %3403 = vmatpush1.bf16.xpose.msra.mxu0 0
        %3404 = vmatprep.subr.bf16.mxu0 0
        %3405 = vmatpush1.bf16.xpose.msra.mxu0 0
        %3406 = vmatprep.subr.bf16.mxu0 0
        %3407 = vmatpush1.bf16.xpose.msra.mxu0 %v3390
        %3408 = vmatprep.subr.bf16.mxu0 0
        %3409 = vmatpush2.bf16.xpose.msra.mxu0 0
        %3410 = vmatprep.subr.bf16.mxu0 0
        %3411 = vmatpush2.bf16.xpose.msra.mxu0 0
        %3412 = vmatprep.subr.bf16.mxu0 0
        %3413 = vmatpush2.bf16.xpose.msra.mxu0 0
        %3414 = vmatprep.subr.bf16.mxu0 0
        %3415 = vmatpush2.bf16.xpose.msra.mxu0 0
        %3416 = vmatprep.subr.bf16.mxu0 0
        %3417 = vmatpush2.bf16.xpose.msra.mxu0 0
        %3418 = vmatprep.subr.bf16.mxu0 0
        %3419 = vmatpush2.bf16.xpose.msra.mxu0 0
        %3420 = vmatprep.subr.bf16.mxu0 0
        %3421 = vmatpush2.bf16.xpose.msra.mxu0 0
        %3422 = vmatprep.subr.bf16.mxu0 0
        %3423 = vmatpush2.bf16.xpose.msra.mxu0 0
        %3424 = vmatprep.mubr.bf16.mxu0 0
        %3425 = vmatmul.mubr.bf16.gmra.mxu0 %v3387
        %v3426 = vpop.f32.mrf.mxu0
        %v3427 = vadd.f32 %v1035, %v3426
        %v3428 = vpop.f32.mrf.mxu0
        %v3429 = vpop.f32.mrf.mxu0
        %v3430 = vpop.f32.mrf.mxu0
        %3431 = vdwg.mxu0
        %3432 = vrot.lane.b32.xlu0 %v2579, 104
        %v3433 = vpop.permute.xlu0 %3432
        %3434 = vrot.lane.b32.xlu0 %v2579, 72
        %v3435 = vpop.permute.xlu0 %3434
        %v3437 = vsel %vm1173, %v3433, 0
        %v3440 = vsel %vm1173, %v3435, 0
        %3442 = vmatprep.subr.bf16.mxu0 0
        %3443 = vmatpush1.bf16.xpose.msra.mxu0 0
        %3444 = vmatprep.subr.bf16.mxu0 0
        %3445 = vmatpush1.bf16.xpose.msra.mxu0 0
        %3446 = vmatprep.subr.bf16.mxu0 0
        %3447 = vmatpush1.bf16.xpose.msra.mxu0 0
        %3448 = vmatprep.subr.bf16.mxu0 0
        %3449 = vmatpush1.bf16.xpose.msra.mxu0 0
        %3450 = vmatprep.subr.bf16.mxu0 0
        %3451 = vmatpush1.bf16.xpose.msra.mxu0 0
        %3452 = vmatprep.subr.bf16.mxu0 0
        %3453 = vmatpush1.bf16.xpose.msra.mxu0 0
        %3454 = vmatprep.subr.bf16.mxu0 0
        %3455 = vmatpush1.bf16.xpose.msra.mxu0 0
        %3456 = vmatprep.subr.bf16.mxu0 0
        %3457 = vmatpush1.bf16.xpose.msra.mxu0 %v3440
        %3458 = vmatprep.subr.bf16.mxu0 0
        %3459 = vmatpush2.bf16.xpose.msra.mxu0 0
        %3460 = vmatprep.subr.bf16.mxu0 0
        %3461 = vmatpush2.bf16.xpose.msra.mxu0 0
        %3462 = vmatprep.subr.bf16.mxu0 0
        %3463 = vmatpush2.bf16.xpose.msra.mxu0 0
        %3464 = vmatprep.subr.bf16.mxu0 0
        %3465 = vmatpush2.bf16.xpose.msra.mxu0 0
        %3466 = vmatprep.subr.bf16.mxu0 0
        %3467 = vmatpush2.bf16.xpose.msra.mxu0 0
        %3468 = vmatprep.subr.bf16.mxu0 0
        %3469 = vmatpush2.bf16.xpose.msra.mxu0 0
        %3470 = vmatprep.subr.bf16.mxu0 0
        %3471 = vmatpush2.bf16.xpose.msra.mxu0 0
        %3472 = vmatprep.subr.bf16.mxu0 0
        %3473 = vmatpush2.bf16.xpose.msra.mxu0 0
        %3474 = vmatprep.mubr.bf16.mxu0 0
        %3475 = vmatmul.mubr.bf16.gmra.mxu0 %v3437
        %v3476 = vpop.f32.mrf.mxu0
        %v3477 = vadd.f32 %v1036, %v3476
        %v3478 = vpop.f32.mrf.mxu0
        %v3479 = vpop.f32.mrf.mxu0
        %v3480 = vpop.f32.mrf.mxu0
        %3481 = vdwg.mxu0
        %v3482 = vsel %vm1173, %v3427, -inf
        %3483 = vmax.xlane.f32.xlu0 %v3482
        %v3484 = vpop.xlane.xlu0 %3483
        %v3485 = vsel %vm1173, %v3477, -inf
        %3486 = vmax.xlane.f32.xlu0 %v3485
        %v3487 = vpop.xlane.xlu0 %3486
        %v3488 = vsub.f32 %v3427, %v3484
        %v3489 = vsub.f32 %v3477, %v3487
        %v3490 = vmul.f32 %v3488, 1.442695
        %v3491 = vpow.pop %v3490
        %v3492 = vmul.f32 %v3489, 1.442695
        %v3493 = vpow.pop %v3492
        %v3494 = vsel %vm1173, %v3491, 0.0
        %3495 = vadd.xlane.f32.xlu0 %v3494
        %v3496 = vpop.xlane.xlu0 %3495
        %v3497 = vsel %vm1173, %v3493, 0.0
        %3498 = vadd.xlane.f32.xlu0 %v3497
        %v3499 = vpop.xlane.xlu0 %3498
        %v3500 = vrcp.pop %v3496
        %v3501 = vrcp.pop %v3499
        %v3502 = vmul.f32 %v3491, %v3500
        %v3503 = vmul.f32 %v3493, %v3501
        %v3504 = vpack.c.bf16 %v3502, %v3502
        %v3505 = vpack.c.bf16 %v3503, %v3503
        %3506 = vrot.lane.b32.xlu0 %v2578, 40
        %v3507 = vpop.permute.xlu0 %3506
        %v3509 = vsel %vm1173, %v3504, 0
        %v3512 = vsel %vm1297, %v3507, 0
        %3514 = vmatprep.subr.bf16.mxu0 0
        %3515 = vmatpush1.bf16.msra.mxu0 0
        %3516 = vmatprep.subr.bf16.mxu0 0
        %3517 = vmatpush1.bf16.msra.mxu0 0
        %3518 = vmatprep.subr.bf16.mxu0 0
        %3519 = vmatpush1.bf16.msra.mxu0 0
        %3520 = vmatprep.subr.bf16.mxu0 0
        %3521 = vmatpush1.bf16.msra.mxu0 0
        %3522 = vmatprep.subr.bf16.mxu0 0
        %3523 = vmatpush1.bf16.msra.mxu0 0
        %3524 = vmatprep.subr.bf16.mxu0 0
        %3525 = vmatpush1.bf16.msra.mxu0 0
        %3526 = vmatprep.subr.bf16.mxu0 0
        %3527 = vmatpush1.bf16.msra.mxu0 0
        %3528 = vmatprep.subr.bf16.mxu0 0
        %3529 = vmatpush1.bf16.msra.mxu0 %v3512
        %3530 = vmatprep.subr.bf16.mxu0 0
        %3531 = vmatpush2.bf16.msra.mxu0 0
        %3532 = vmatprep.subr.bf16.mxu0 0
        %3533 = vmatpush2.bf16.msra.mxu0 0
        %3534 = vmatprep.subr.bf16.mxu0 0
        %3535 = vmatpush2.bf16.msra.mxu0 0
        %3536 = vmatprep.subr.bf16.mxu0 0
        %3537 = vmatpush2.bf16.msra.mxu0 0
        %3538 = vmatprep.subr.bf16.mxu0 0
        %3539 = vmatpush2.bf16.msra.mxu0 0
        %3540 = vmatprep.subr.bf16.mxu0 0
        %3541 = vmatpush2.bf16.msra.mxu0 0
        %3542 = vmatprep.subr.bf16.mxu0 0
        %3543 = vmatpush2.bf16.msra.mxu0 0
        %3544 = vmatprep.subr.bf16.mxu0 0
        %3545 = vmatpush2.bf16.msra.mxu0 0
        %3546 = vmatprep.mubr.bf16.mxu0 0
        %3547 = vmatmul.mubr.bf16.gmra.mxu0 %v3509
        %v3548 = vpop.f32.mrf.mxu0
        %v3549 = vadd.f32 0.0, %v3548
        %v3550 = vpop.f32.mrf.mxu0
        %v3551 = vpop.f32.mrf.mxu0
        %v3552 = vpop.f32.mrf.mxu0
        %3553 = vdwg.mxu0
        %3554 = vrot.lane.b32.xlu0 %v2579, 40
        %v3555 = vpop.permute.xlu0 %3554
        %v3557 = vsel %vm1173, %v3505, 0
        %v3560 = vsel %vm1297, %v3555, 0
        %3562 = vmatprep.subr.bf16.mxu0 0
        %3563 = vmatpush1.bf16.msra.mxu0 0
        %3564 = vmatprep.subr.bf16.mxu0 0
        %3565 = vmatpush1.bf16.msra.mxu0 0
        %3566 = vmatprep.subr.bf16.mxu0 0
        %3567 = vmatpush1.bf16.msra.mxu0 0
        %3568 = vmatprep.subr.bf16.mxu0 0
        %3569 = vmatpush1.bf16.msra.mxu0 0
        %3570 = vmatprep.subr.bf16.mxu0 0
        %3571 = vmatpush1.bf16.msra.mxu0 0
        %3572 = vmatprep.subr.bf16.mxu0 0
        %3573 = vmatpush1.bf16.msra.mxu0 0
        %3574 = vmatprep.subr.bf16.mxu0 0
        %3575 = vmatpush1.bf16.msra.mxu0 0
        %3576 = vmatprep.subr.bf16.mxu0 0
        %3577 = vmatpush1.bf16.msra.mxu0 %v3560
        %3578 = vmatprep.subr.bf16.mxu0 0
        %3579 = vmatpush2.bf16.msra.mxu0 0
        %3580 = vmatprep.subr.bf16.mxu0 0
        %3581 = vmatpush2.bf16.msra.mxu0 0
        %3582 = vmatprep.subr.bf16.mxu0 0
        %3583 = vmatpush2.bf16.msra.mxu0 0
        %3584 = vmatprep.subr.bf16.mxu0 0
        %3585 = vmatpush2.bf16.msra.mxu0 0
        %3586 = vmatprep.subr.bf16.mxu0 0
        %3587 = vmatpush2.bf16.msra.mxu0 0
        %3588 = vmatprep.subr.bf16.mxu0 0
        %3589 = vmatpush2.bf16.msra.mxu0 0
        %3590 = vmatprep.subr.bf16.mxu0 0
        %3591 = vmatpush2.bf16.msra.mxu0 0
        %3592 = vmatprep.subr.bf16.mxu0 0
        %3593 = vmatpush2.bf16.msra.mxu0 0
        %3594 = vmatprep.mubr.bf16.mxu0 0
        %3595 = vmatmul.mubr.bf16.gmra.mxu0 %v3557
        %v3596 = vpop.f32.mrf.mxu0
        %v3597 = vadd.f32 0.0, %v3596
        %v3598 = vpop.f32.mrf.mxu0
        %v3599 = vpop.f32.mrf.mxu0
        %v3600 = vpop.f32.mrf.mxu0
        %3601 = vdwg.mxu0
        %v3602 = vpack.c.bf16 %v3597, %v3549
        %v3604 = vsel %vm1173, %v3602, 0
        %v3607 = vsel %vm1297, %v2574, 0
        %3609 = vmatprep.subr.bf16.mxu0 0
        %3610 = vmatpush1.bf16.msra.mxu0 0
        %3611 = vmatprep.subr.bf16.mxu0 0
        %3612 = vmatpush1.bf16.msra.mxu0 0
        %3613 = vmatprep.subr.bf16.mxu0 0
        %3614 = vmatpush1.bf16.msra.mxu0 0
        %3615 = vmatprep.subr.bf16.mxu0 0
        %3616 = vmatpush1.bf16.msra.mxu0 0
        %3617 = vmatprep.subr.bf16.mxu0 0
        %3618 = vmatpush1.bf16.msra.mxu0 0
        %3619 = vmatprep.subr.bf16.mxu0 0
        %3620 = vmatpush1.bf16.msra.mxu0 0
        %3621 = vmatprep.subr.bf16.mxu0 0
        %3622 = vmatpush1.bf16.msra.mxu0 0
        %3623 = vmatprep.subr.bf16.mxu0 0
        %3624 = vmatpush1.bf16.msra.mxu0 %v3607
        %3625 = vmatprep.subr.bf16.mxu0 0
        %3626 = vmatpush2.bf16.msra.mxu0 0
        %3627 = vmatprep.subr.bf16.mxu0 0
        %3628 = vmatpush2.bf16.msra.mxu0 0
        %3629 = vmatprep.subr.bf16.mxu0 0
        %3630 = vmatpush2.bf16.msra.mxu0 0
        %3631 = vmatprep.subr.bf16.mxu0 0
        %3632 = vmatpush2.bf16.msra.mxu0 0
        %3633 = vmatprep.subr.bf16.mxu0 0
        %3634 = vmatpush2.bf16.msra.mxu0 0
        %3635 = vmatprep.subr.bf16.mxu0 0
        %3636 = vmatpush2.bf16.msra.mxu0 0
        %3637 = vmatprep.subr.bf16.mxu0 0
        %3638 = vmatpush2.bf16.msra.mxu0 0
        %3639 = vmatprep.subr.bf16.mxu0 0
        %3640 = vmatpush2.bf16.msra.mxu0 0
        %3641 = vmatprep.mubr.bf16.mxu0 0
        %3642 = vmatmul.mubr.bf16.gmra.mxu0 %v3604
        %v3643 = vpop.f32.mrf.mxu0
        %v3644 = vadd.f32 0.0, %v3643
        %v3645 = vpop.f32.mrf.mxu0
        %v3646 = vpop.f32.mrf.mxu0
        %v3647 = vadd.f32 0.0, %v3646
        %v3648 = vpop.f32.mrf.mxu0
        %3649 = vdwg.mxu0
        %v3650 = vadd.f32 %v3380, %v3644
        %v3651 = vadd.f32 %v3381, %v3647
        %v3652 = vld [vmem:[%s45] sm:$0x1]
        %v3654 = vlaneseq
        %v3655 = vshrl.u32 %v3654, 7
        %v3656 = vsub.s32 0, %v3655
        %v3657 = vrot.slane %v3652, %v3656
        %v3659 = vadd.f32 %v3650, %v3657
        %v3660 = vadd.f32 %v3651, %v3657
        %v3661 = vadd.f32 %v2500, %v3659
        %v3662 = vadd.f32 %v2501, %v3660
        %v3663 = vld [vmem:[%s55] sm:$0x1]
        %v3664 = vld [vmem:[%s57] sm:$0x1]
        %v3665 = vsel %vm1116, %v3661, 0.0
        %3666 = vadd.xlane.f32.xlu0 %v3665
        %v3667 = vpop.xlane.xlu0 %3666
        %v3668 = vsel %vm1116, %v3662, 0.0
        %3669 = vadd.xlane.f32.xlu0 %v3668
        %v3670 = vpop.xlane.xlu0 %3669
        %v3671 = vmul.f32 %v3667, %v2264
        %v3672 = vmul.f32 %v3670, %v2264
        %v3673 = vsub.f32 %v3661, %v3671
        %v3674 = vsub.f32 %v3662, %v3672
        %v3675 = vmul.f32 %v3673, %v3673
        %v3676 = vmul.f32 %v3674, %v3674
        %v3677 = vsel %vm1116, %v3675, 0.0
        %3678 = vadd.xlane.f32.xlu0 %v3677
        %v3679 = vpop.xlane.xlu0 %3678
        %v3680 = vsel %vm1116, %v3676, 0.0
        %3681 = vadd.xlane.f32.xlu0 %v3680
        %v3682 = vpop.xlane.xlu0 %3681
        %v3683 = vmul.f32 %v3679, %v2264
        %v3684 = vmul.f32 %v3682, %v2264
        %v3685 = vadd.f32 %v3683, 1e-05
        %v3686 = vadd.f32 %v3684, 1e-05
        %v3687 = vrsqrt.pop %v3685
        %v3688 = vrsqrt.pop %v3686
        %v3689 = vmul.f32 %v3673, %v3687
        %v3690 = vmul.f32 %v3674, %v3688
        %v3692 = vlaneseq
        %v3693 = vshrl.u32 %v3692, 7
        %v3694 = vsub.s32 0, %v3693
        %v3695 = vrot.slane %v3663, %v3694
        %v3697 = vmul.f32 %v3689, %v3695
        %v3698 = vmul.f32 %v3690, %v3695
        %v3700 = vlaneseq
        %v3701 = vshrl.u32 %v3700, 7
        %v3702 = vsub.s32 0, %v3701
        %v3703 = vrot.slane %v3664, %v3702
        %v3705 = vadd.f32 %v3697, %v3703
        %v3706 = vadd.f32 %v3698, %v3703
        %v3707 = vpack.c.bf16 %v3706, %v3705
        %v3708 = vld [vmem:[%s47] sm:$0xf]
        %v3709 = vld [vmem:[%s47 + $0x4] sm:$0xf]
        %v3710 = vld [vmem:[%s47 + $0x8] sm:$0xf]
        %v3711 = vld [vmem:[%s47 + $0xc] sm:$0xf]
        %v3712 = vld [vmem:[%s49] sm:$0x1]
        %v3714 = vlaneseq
        %v3715 = vshrl.u32 %v3714, 7
        %v3716 = vsub.s32 0, %v3715
        %v3717 = vrot.slane %v3712, %v3716
        %v3723 = vunpack.c.l.b16 %v3708
        %v3724 = vunpack.c.l.b16 %v3709
        %v3725 = vunpack.c.l.b16 %v3710
        %v3726 = vunpack.c.l.b16 %v3711
        %v3727 = vpack.c.b16 %v3724, %v3723
        %v3728 = vpack.c.b16 %v3726, %v3725
        %v3732 = vsel %vm1116, %v3707, 0
        %3734 = vmatprep.subr.bf16.mxu0 0
        %3735 = vmatpush1.bf16.msra.mxu0 0
        %3736 = vmatprep.subr.bf16.mxu0 0
        %3737 = vmatpush1.bf16.msra.mxu0 0
        %3738 = vmatprep.subr.bf16.mxu0 0
        %3739 = vmatpush1.bf16.msra.mxu0 0
        %3740 = vmatprep.subr.bf16.mxu0 0
        %3741 = vmatpush1.bf16.msra.mxu0 0
        %3742 = vmatprep.subr.bf16.mxu0 0
        %3743 = vmatpush1.bf16.msra.mxu0 0
        %3744 = vmatprep.subr.bf16.mxu0 0
        %3745 = vmatpush1.bf16.msra.mxu0 0
        %3746 = vmatprep.subr.bf16.mxu0 0
        %3747 = vmatpush1.bf16.msra.mxu0 %v3728
        %3748 = vmatprep.subr.bf16.mxu0 0
        %3749 = vmatpush1.bf16.msra.mxu0 %v3727
        %3750 = vmatprep.subr.bf16.mxu0 0
        %3751 = vmatpush2.bf16.msra.mxu0 0
        %3752 = vmatprep.subr.bf16.mxu0 0
        %3753 = vmatpush2.bf16.msra.mxu0 0
        %3754 = vmatprep.subr.bf16.mxu0 0
        %3755 = vmatpush2.bf16.msra.mxu0 0
        %3756 = vmatprep.subr.bf16.mxu0 0
        %3757 = vmatpush2.bf16.msra.mxu0 0
        %3758 = vmatprep.subr.bf16.mxu0 0
        %3759 = vmatpush2.bf16.msra.mxu0 0
        %3760 = vmatprep.subr.bf16.mxu0 0
        %3761 = vmatpush2.bf16.msra.mxu0 0
        %3762 = vmatprep.subr.bf16.mxu0 0
        %3763 = vmatpush2.bf16.msra.mxu0 0
        %3764 = vmatprep.subr.bf16.mxu0 0
        %3765 = vmatpush2.bf16.msra.mxu0 0
        %3766 = vmatprep.mubr.bf16.mxu0 0
        %3767 = vmatmul.mubr.bf16.gmra.mxu0 %v3732
        %v3768 = vpop.f32.mrf.mxu0
        %v3769 = vadd.f32 %v3717, %v3768
        %v3770 = vpop.f32.mrf.mxu0
        %v3771 = vpop.f32.mrf.mxu0
        %v3772 = vadd.f32 %v3717, %v3771
        %v3773 = vpop.f32.mrf.mxu0
        %3774 = vdwg.mxu0
        %v3775 = vmax.f32 %v3769, 0.0
        %v3776 = vmax.f32 %v3772, 0.0
        %v3777 = vpack.c.bf16 %v3776, %v3775
        %v3778 = vld [vmem:[%s51] sm:$0xf]
        %v3779 = vld [vmem:[%s51 + $0x4] sm:$0xf]
        %v3780 = vld [vmem:[%s51 + $0x8] sm:$0xf]
        %v3781 = vld [vmem:[%s51 + $0xc] sm:$0xf]
        %v3782 = vld [vmem:[%s51 + $0x10] sm:$0xf]
        %v3783 = vld [vmem:[%s51 + $0x14] sm:$0xf]
        %v3784 = vld [vmem:[%s51 + $0x18] sm:$0xf]
        %v3785 = vld [vmem:[%s51 + $0x1c] sm:$0xf]
        %v3786 = vld [vmem:[%s53] sm:$0x1]
        %v3788 = vlaneseq
        %v3789 = vshrl.u32 %v3788, 7
        %v3790 = vsub.s32 0, %v3789
        %v3791 = vrot.slane %v3786, %v3790
        %v3801 = vunpack.c.l.b16 %v3778
        %v3802 = vunpack.c.l.b16 %v3779
        %v3803 = vunpack.c.l.b16 %v3780
        %v3804 = vunpack.c.l.b16 %v3781
        %v3805 = vunpack.c.l.b16 %v3782
        %v3806 = vunpack.c.l.b16 %v3783
        %v3807 = vunpack.c.l.b16 %v3784
        %v3808 = vunpack.c.l.b16 %v3785
        %v3809 = vpack.c.b16 %v3802, %v3801
        %v3810 = vpack.c.b16 %v3804, %v3803
        %v3811 = vpack.c.b16 %v3806, %v3805
        %v3812 = vpack.c.b16 %v3808, %v3807
        %v3818 = vsel %vm2411, %v3777, 0
        %3820 = vmatprep.subr.bf16.mxu0 0
        %3821 = vmatpush1.bf16.msra.mxu0 0
        %3822 = vmatprep.subr.bf16.mxu0 0
        %3823 = vmatpush1.bf16.msra.mxu0 0
        %3824 = vmatprep.subr.bf16.mxu0 0
        %3825 = vmatpush1.bf16.msra.mxu0 0
        %3826 = vmatprep.subr.bf16.mxu0 0
        %3827 = vmatpush1.bf16.msra.mxu0 0
        %3828 = vmatprep.subr.bf16.mxu0 0
        %3829 = vmatpush1.bf16.msra.mxu0 %v3812
        %3830 = vmatprep.subr.bf16.mxu0 0
        %3831 = vmatpush1.bf16.msra.mxu0 %v3811
        %3832 = vmatprep.subr.bf16.mxu0 0
        %3833 = vmatpush1.bf16.msra.mxu0 %v3810
        %3834 = vmatprep.subr.bf16.mxu0 0
        %3835 = vmatpush1.bf16.msra.mxu0 %v3809
        %3836 = vmatprep.subr.bf16.mxu0 0
        %3837 = vmatpush2.bf16.msra.mxu0 0
        %3838 = vmatprep.subr.bf16.mxu0 0
        %3839 = vmatpush2.bf16.msra.mxu0 0
        %3840 = vmatprep.subr.bf16.mxu0 0
        %3841 = vmatpush2.bf16.msra.mxu0 0
        %3842 = vmatprep.subr.bf16.mxu0 0
        %3843 = vmatpush2.bf16.msra.mxu0 0
        %3844 = vmatprep.subr.bf16.mxu0 0
        %3845 = vmatpush2.bf16.msra.mxu0 0
        %3846 = vmatprep.subr.bf16.mxu0 0
        %3847 = vmatpush2.bf16.msra.mxu0 0
        %3848 = vmatprep.subr.bf16.mxu0 0
        %3849 = vmatpush2.bf16.msra.mxu0 0
        %3850 = vmatprep.subr.bf16.mxu0 0
        %3851 = vmatpush2.bf16.msra.mxu0 0
        %3852 = vmatprep.mubr.bf16.mxu0 0
        %3853 = vmatmul.mubr.bf16.gmra.mxu0 %v3818
        %v3854 = vpop.f32.mrf.mxu0
        %v3855 = vadd.f32 %v3791, %v3854
        %v3856 = vpop.f32.mrf.mxu0
        %v3857 = vpop.f32.mrf.mxu0
        %v3858 = vadd.f32 %v3791, %v3857
        %v3859 = vpop.f32.mrf.mxu0
        %3860 = vdwg.mxu0
        %v3861 = vadd.f32 %v3705, %v3855
        %v3862 = vadd.f32 %v3706, %v3858
        %v3863 = vld [vmem:[%s59] sm:$0x1]
        %v3864 = vld [vmem:[%s61] sm:$0x1]
        %v3865 = vsel %vm1116, %v3861, 0.0
        %3866 = vadd.xlane.f32.xlu0 %v3865
        %v3867 = vpop.xlane.xlu0 %3866
        %v3868 = vsel %vm1116, %v3862, 0.0
        %3869 = vadd.xlane.f32.xlu0 %v3868
        %v3870 = vpop.xlane.xlu0 %3869
        %v3871 = vmul.f32 %v3867, %v2264
        %v3872 = vmul.f32 %v3870, %v2264
        %v3873 = vsub.f32 %v3861, %v3871
        %v3874 = vsub.f32 %v3862, %v3872
        %v3875 = vmul.f32 %v3873, %v3873
        %v3876 = vmul.f32 %v3874, %v3874
        %v3877 = vsel %vm1116, %v3875, 0.0
        %3878 = vadd.xlane.f32.xlu0 %v3877
        %v3879 = vpop.xlane.xlu0 %3878
        %v3880 = vsel %vm1116, %v3876, 0.0
        %3881 = vadd.xlane.f32.xlu0 %v3880
        %v3882 = vpop.xlane.xlu0 %3881
        %v3883 = vmul.f32 %v3879, %v2264
        %v3884 = vmul.f32 %v3882, %v2264
        %v3885 = vadd.f32 %v3883, 1e-05
        %v3886 = vadd.f32 %v3884, 1e-05
        %v3887 = vrsqrt.pop %v3885
        %v3888 = vrsqrt.pop %v3886
        %v3889 = vmul.f32 %v3873, %v3887
        %v3890 = vmul.f32 %v3874, %v3888
        %v3892 = vlaneseq
        %v3893 = vshrl.u32 %v3892, 7
        %v3894 = vsub.s32 0, %v3893
        %v3895 = vrot.slane %v3863, %v3894
        %v3897 = vmul.f32 %v3889, %v3895
        %v3898 = vmul.f32 %v3890, %v3895
        %v3900 = vlaneseq
        %v3901 = vshrl.u32 %v3900, 7
        %v3902 = vsub.s32 0, %v3901
        %v3903 = vrot.slane %v3864, %v3902
        %v3905 = vadd.f32 %v3897, %v3903
        %v3906 = vadd.f32 %v3898, %v3903
        %v3907 = vpack.c.bf16 %v3906, %v3905
        %v3908 = vld [vmem:[%s11] sm:$0xf]
        %v3909 = vld [vmem:[%s11 + $0x4] sm:$0xf]
        %v3910 = vld [vmem:[%s11 + $0x8] sm:$0xf]
        %v3911 = vld [vmem:[%s11 + $0xc] sm:$0xf]
        %v3912 = vld [vmem:[%s13] sm:$0x1]
        %v3914 = vlaneseq
        %v3915 = vshrl.u32 %v3914, 7
        %v3916 = vsub.s32 0, %v3915
        %v3917 = vrot.slane %v3912, %v3916
        %v3923 = vunpack.c.l.b16 %v3908
        %v3924 = vunpack.c.l.b16 %v3909
        %v3925 = vunpack.c.l.b16 %v3910
        %v3926 = vunpack.c.l.b16 %v3911
        %v3927 = vpack.c.b16 %v3924, %v3923
        %v3928 = vpack.c.b16 %v3926, %v3925
        %v3932 = vsel %vm1116, %v3907, 0
        %3934 = vmatprep.subr.bf16.mxu0 0
        %3935 = vmatpush1.bf16.msra.mxu0 0
        %3936 = vmatprep.subr.bf16.mxu0 0
        %3937 = vmatpush1.bf16.msra.mxu0 0
        %3938 = vmatprep.subr.bf16.mxu0 0
        %3939 = vmatpush1.bf16.msra.mxu0 0
        %3940 = vmatprep.subr.bf16.mxu0 0
        %3941 = vmatpush1.bf16.msra.mxu0 0
        %3942 = vmatprep.subr.bf16.mxu0 0
        %3943 = vmatpush1.bf16.msra.mxu0 0
        %3944 = vmatprep.subr.bf16.mxu0 0
        %3945 = vmatpush1.bf16.msra.mxu0 0
        %3946 = vmatprep.subr.bf16.mxu0 0
        %3947 = vmatpush1.bf16.msra.mxu0 %v3928
        %3948 = vmatprep.subr.bf16.mxu0 0
        %3949 = vmatpush1.bf16.msra.mxu0 %v3927
        %3950 = vmatprep.subr.bf16.mxu0 0
        %3951 = vmatpush2.bf16.msra.mxu0 0
        %3952 = vmatprep.subr.bf16.mxu0 0
        %3953 = vmatpush2.bf16.msra.mxu0 0
        %3954 = vmatprep.subr.bf16.mxu0 0
        %3955 = vmatpush2.bf16.msra.mxu0 0
        %3956 = vmatprep.subr.bf16.mxu0 0
        %3957 = vmatpush2.bf16.msra.mxu0 0
        %3958 = vmatprep.subr.bf16.mxu0 0
        %3959 = vmatpush2.bf16.msra.mxu0 0
        %3960 = vmatprep.subr.bf16.mxu0 0
        %3961 = vmatpush2.bf16.msra.mxu0 0
        %3962 = vmatprep.subr.bf16.mxu0 0
        %3963 = vmatpush2.bf16.msra.mxu0 0
        %3964 = vmatprep.subr.bf16.mxu0 0
        %3965 = vmatpush2.bf16.msra.mxu0 0
        %3966 = vmatprep.mubr.bf16.mxu0 0
        %3967 = vmatmul.mubr.bf16.gmra.mxu0 %v3932
        %v3968 = vpop.f32.mrf.mxu0
        %v3969 = vadd.f32 %v3917, %v3968
        %v3970 = vpop.f32.mrf.mxu0
        %v3971 = vpop.f32.mrf.mxu0
        %v3972 = vadd.f32 %v3917, %v3971
        %v3973 = vpop.f32.mrf.mxu0
        %3974 = vdwg.mxu0
        %v3975 = vxor.u32 %v3969, 2147483648
        %v3976 = vxor.u32 %v3972, 2147483648
        %v3977 = vmul.f32 %v3975, 1.442695
        %v3978 = vpow.pop %v3977
        %v3979 = vmul.f32 %v3976, 1.442695
        %v3980 = vpow.pop %v3979
        %v3981 = vadd.f32 %v3978, 1.0
        %v3982 = vadd.f32 %v3980, 1.0
        %v3983 = vrcp.pop %v3981
        %v3984 = vmul.f32 1.0, %v3983
        %v3985 = vrcp.pop %v3982
        %v3986 = vmul.f32 1.0, %v3985
        %3987 = vst [vmem:[%s1017] sm:$0xff] %v3984
        %3988 = vst [vmem:[%s1017 + $0x8] sm:$0xff] %v3986
        %s3989 = smul.u32 2, %s76
        %p3990 = scmp.lt.s32.totalorder %s3989, 3
        %s3991 = scalar_select %p3990, %s3989, 3
        %s3992 = smul.addr %s3991, 8
        %s3993 = scalar_lea.vmem %s63, %s3992
        // Predicated region
        $region157: #{time_series_transformer.1} parent=143 // pred_check
          %p3994 = pneg %p755
        $region158: #{time_series_transformer.1} parent=143 // pred_check_branch
          %3996 = sbr.rel (%p3994) target = $region160
        $region159: #{time_series_transformer.1} parent=143 // pred_region
          %s3997 = smul.u32 2, %s76
        $region160: #{time_series_transformer.1} parent=143 // pred_fallthru
          _
      $region144: #{time_series_transformer.1} parent=5 // pred_fallthru
        _
      %p3998 = scmp.le.s32.totalorder 2, %s71
      // Predicated region
      $region161: #{time_series_transformer.1} parent=5 // pred_check
        %p3999 = pneg %p3998
      $region162: #{time_series_transformer.1} parent=5 // pred_check_branch
        %4001 = sbr.rel (%p3999) target = $region164
      $region163: #{time_series_transformer.1} parent=5 // pred_region
        %s4002 = ssub.s32 %s71, 2
        // Predicated region
        $region165: #{time_series_transformer.1} parent=163 // pred_check
          %p4003 = pneg %p761
        $region166: #{time_series_transformer.1} parent=163 // pred_check_branch
          %4005 = sbr.rel (%p4003) target = $region168
        $region167: #{time_series_transformer.1} parent=163 // pred_region
          %s4006 = smul.u32 2, %s77
          %p4007 = scmp.lt.s32.totalorder %s4006, 3
          %s4008 = scalar_select %p4007, %s4006, 3
          %s4009 = smul.addr %s4008, 8
          %s4010 = scalar_lea.vmem %s63, %s4009
        $region168: #{time_series_transformer.1} parent=163 // pred_fallthru
          _
      $region164: #{time_series_transformer.1} parent=5 // pred_fallthru
        _
    $region6: #{time_series_transformer.1} parent=1 // loop_footer
      %s75 = sadd.s32 1, %s71
    $region7: #{time_series_transformer.1} parent=1 // loop_footer_branch
      %70 = sbr.rel target = $region3
    $region8: #{time_series_transformer.1} parent=1 // loop_exit
      _
    %4011 = vsyncpa [#allocation3], 1
    %s4012 = scalar_lea.sflag [#allocation3], 1
    %4013 = vsyncpa %s4012, 1
    %4014 = vsyncpa [#allocation5], 1

</llo_original>
